<compile_context>
chip_gen: v7x
topology: tpu7x:2x2x1
jax: 0.10.0
libtpu: 0.0.40
codegen_flags: <defaults>
</compile_context>

<pallas_src>
import functools
import math

import jax
import jax.numpy as jnp
import numpy as np
from jax import lax
from jax.experimental import pallas as pl
from jax.experimental.pallas import tpu as pltpu


def _attention_kernel(x_ref, wqkv_ref, wproj_ref, bproj_ref,
                      out_ref, attn_ref, acc_ref, *,
                      group_size, head_dim, n_valid):
    # x_ref     : (1, Np, C)        bf16
    # wqkv_ref  : (3, 1, C, G*Dh)   bf16  (scale folded into q block)
    # wproj_ref : (1, G*Dh, C)      bf16
    # bproj_ref : (1, C)            f32
    # out_ref   : (1, Np, C)              y, written once at the last group
    # attn_ref  : (1, G, Np, Np)          this group's attention maps
    # acc_ref   : (Np, C) f32 VMEM scratch accumulating y over groups
    G, Dh = group_size, head_dim
    Np = x_ref.shape[1]
    g_idx = pl.program_id(1)

    x = x_ref[0]                                                     # (Np, C) bf16

    # Group-wide QKV projections on the MXU: (Np, C) @ (C, G*Dh), full depth C.
    q = jnp.dot(x, wqkv_ref[0, 0],
                preferred_element_type=jnp.float32).astype(jnp.bfloat16)
    k = jnp.dot(x, wqkv_ref[1, 0],
                preferred_element_type=jnp.float32).astype(jnp.bfloat16)
    v = jnp.dot(x, wqkv_ref[2, 0],
                preferred_element_type=jnp.float32).astype(jnp.bfloat16)

    # Key-padding mask (static Python branch: only emitted when padding exists).
    if n_valid < Np:
        valid = lax.broadcasted_iota(jnp.int32, (Np, Np), 1) < n_valid
    else:
        valid = None

    o_heads = []
    for g in range(G):                       # static unroll, static lane slices
        sl = slice(g * Dh, (g + 1) * Dh)
        q_h, k_h, v_h = q[:, sl], k[:, sl], v[:, sl]

        # Scores: contract last dims directly (no explicit K^T materialization).
        s = lax.dot_general(q_h, k_h, (((1,), (1,)), ((), ())),
                            preferred_element_type=jnp.float32)     # (Np, Np) f32
        if valid is not None:
            s = jnp.where(valid, s, jnp.float32(-1e30))

        # Numerically stable softmax in f32; reciprocal on the EUP slot.
        m = jnp.max(s, axis=-1, keepdims=True)
        p = jnp.exp(s - m)
        denom = jnp.sum(p, axis=-1, keepdims=True)
        a = p * pl.reciprocal(denom, approx=True)                    # (Np, Np)

        attn_ref[0, g] = a.astype(attn_ref.dtype)                    # attn_drop = id

        o_heads.append(jnp.dot(a.astype(jnp.bfloat16), v_h,
                               preferred_element_type=jnp.float32)
                       .astype(jnp.bfloat16))                        # (Np, Dh)

    # Group output projection: (Np, G*Dh) @ (G*Dh, C), accumulated over groups.
    o_grp = jnp.concatenate(o_heads, axis=-1)                        # (Np, G*Dh)
    y_g = jnp.dot(o_grp, wproj_ref[0],
                  preferred_element_type=jnp.float32)                # (Np, C) f32

    @pl.when(g_idx == 0)
    def _():
        acc_ref[...] = jnp.zeros_like(acc_ref)

    acc_ref[...] += y_g

    @pl.when(g_idx == pl.num_programs(1) - 1)
    def _():
        out_ref[0] = (acc_ref[...] + bproj_ref[...]).astype(out_ref.dtype)


def attention_forward(x, w_qkv, w_proj, b_proj, *, num_heads,
                      attn_dtype=jnp.float32, max_group_heads=4):
    B, N, C = x.shape
    H = num_heads
    assert C % H == 0, "dim must be divisible by num_heads"
    Dh = C // H
    scale = Dh ** (-0.5)

    # Largest group size <= max_group_heads dividing H (H=8 -> 4, H=12 -> 4).
    G = max(g for g in range(1, min(H, max_group_heads) + 1) if H % g == 0)
    n_groups = H // G

    # Pad tokens to a multiple of 128 for lane-dense (N, N) tiles / attn stores.
    Np = ((N + 127) // 128) * 128
    x_p = x if Np == N else jnp.pad(x, ((0, 0), (0, Np - N), (0, 0)))
    x_bf16 = x_p.astype(jnp.bfloat16)

    # One-time weight repack (head-major, grouped); fold softmax scale into q.
    wqkv_heads = w_qkv.reshape(C, 3, H, Dh).transpose(1, 2, 0, 3)    # (3,H,C,Dh) f32
    wqkv_heads = wqkv_heads.at[0].multiply(scale)
    wqkv_grouped = (wqkv_heads.reshape(3, n_groups, G, C, Dh)
                    .transpose(0, 1, 3, 2, 4)
                    .reshape(3, n_groups, C, G * Dh)
                    .astype(jnp.bfloat16))                           # (3,ng,C,G*Dh)
    wproj_grouped = w_proj.reshape(n_groups, G * Dh, C).astype(jnp.bfloat16)
    b_proj_f32 = b_proj.reshape(1, C).astype(jnp.float32)

    kernel = functools.partial(_attention_kernel,
                               group_size=G, head_dim=Dh, n_valid=N)

    out_shapes = (
        jax.ShapeDtypeStruct((B, Np, C), x.dtype),
        jax.ShapeDtypeStruct((B, H, Np, Np), attn_dtype),
    )

    grid_spec = pltpu.PrefetchScalarGridSpec(
        num_scalar_prefetch=0,
        grid=(B, n_groups),
        in_specs=[
            pl.BlockSpec((1, Np, C), lambda b, g: (b, 0, 0)),            # x
            pl.BlockSpec((3, 1, C, G * Dh), lambda b, g: (0, g, 0, 0)),  # qkv w (group)
            pl.BlockSpec((1, G * Dh, C), lambda b, g: (g, 0, 0)),        # proj w (group)
            pl.BlockSpec((1, C), lambda b, g: (0, 0)),                   # proj bias
        ],
        out_specs=(
            pl.BlockSpec((1, Np, C), lambda b, g: (b, 0, 0)),            # y (accum over g)
            pl.BlockSpec((1, G, Np, Np), lambda b, g: (b, g, 0, 0)),     # attn per group
        ),
        scratch_shapes=[pltpu.VMEM((Np, C), jnp.float32)],
    )

    y_p, attn_p = pl.pallas_call(
        kernel,
        out_shape=out_shapes,
        grid_spec=grid_spec,
        compiler_params=pltpu.CompilerParams(
            dimension_semantics=("parallel", "arbitrary"),
            vmem_limit_bytes=48 * 1024 * 1024,   # < v7x 64 MiB physical VMEM
        ),
    )(x_bf16, wqkv_grouped, wproj_grouped, b_proj_f32)

    if Np == N:
        return y_p, attn_p
    return y_p[:, :N, :], attn_p[:, :, :N, :N]


def _reference(x, w_qkv, w_proj, b_proj, num_heads):
    """Pure-JAX f32 reference mirroring the PyTorch forward."""
    B, N, C = x.shape
    H = num_heads
    Dh = C // H
    scale = Dh ** (-0.5)
    qkv = jnp.einsum('bnc,cd->bnd', x, w_qkv)                        # (B, N, 3C)
    qkv = qkv.reshape(B, N, 3, H, Dh).transpose(2, 0, 3, 1, 4)
    q, k, v = qkv[0], qkv[1], qkv[2]                                 # (B, H, N, Dh)
    attn = jnp.einsum('bhnd,bhmd->bhnm', q, k) * scale
    attn = jax.nn.softmax(attn, axis=-1)
    o = jnp.einsum('bhnm,bhmd->bhnd', attn, v)
    o = o.transpose(0, 2, 1, 3).reshape(B, N, C)
    y = jnp.einsum('bnc,cd->bnd', o, w_proj) + b_proj.reshape(1, 1, C)
    return y, attn


if __name__ == "__main__":
    B, N, C = 2, 8, 32
    num_heads = 8

    key = jax.random.PRNGKey(0)
    kx, kqkv, kproj, kbias = jax.random.split(key, 4)

    x = jax.random.normal(kx, (B, N, C), dtype=jnp.float32)
    w_qkv = jax.random.normal(kqkv, (C, 3 * C), dtype=jnp.float32) / math.sqrt(C)
    w_proj = jax.random.normal(kproj, (C, C), dtype=jnp.float32) / math.sqrt(C)
    b_proj = jax.random.normal(kbias, (1, C), dtype=jnp.float32) * 0.01

    y, attn = attention_forward(x, w_qkv, w_proj, b_proj, num_heads=num_heads)
    jax.block_until_ready((y, attn))

    y_ref, attn_ref = _reference(x, w_qkv, w_proj, b_proj, num_heads)
    # bf16 MXU operands + approx EUP reciprocal -> relaxed tolerance vs f32 ref.
    np.testing.assert_allclose(np.asarray(attn), np.asarray(attn_ref),
                               rtol=3e-2, atol=3e-2)
    np.testing.assert_allclose(np.asarray(y), np.asarray(y_ref),
                               rtol=3e-2, atol=3e-2)

    print("KERNEL_OK")
</pallas_src>

<mosaic_0001>
module attributes {stable_mosaic.version = 11 : i64} {
  func.func @_attention_kernel(%arg0: i32, %arg1: i32, %arg2: memref<1x128x32xbf16, #tpu.memory_space<vmem>>, %arg3: memref<3x1x32x16xbf16, #tpu.memory_space<vmem>>, %arg4: memref<1x16x32xbf16, #tpu.memory_space<vmem>>, %arg5: memref<1x32xf32, #tpu.memory_space<vmem>>, %arg6: memref<1x128x32xf32, #tpu.memory_space<vmem>>, %arg7: memref<1x4x128x128xf32, #tpu.memory_space<vmem>>, %arg8: memref<128x32xf32, #tpu.memory_space<vmem>>) attributes {dimension_semantics = [#tpu.dimension_semantics<parallel>, #tpu.dimension_semantics<arbitrary>], iteration_bounds = array<i64: 2, 2>, scalar_prefetch = 0 : i64, scratch_operands = 1 : i64, tpu.core_type = #tpu.core_type<tc>, window_params = [{transform_indices = @transform_0, window_bounds = array<i64: 1, 128, 32>}, {transform_indices = @transform_1, window_bounds = array<i64: 3, 1, 32, 16>}, {transform_indices = @transform_2, window_bounds = array<i64: 1, 16, 32>}, {pipeline_mode = #tpu.pipeline_mode<synchronous>, transform_indices = @transform_3, window_bounds = array<i64: 1, 32>}, {transform_indices = @transform_4, window_bounds = array<i64: 1, 128, 32>}, {transform_indices = @transform_5, window_bounds = array<i64: 1, 4, 128, 128>}]} {
    %c0 = arith.constant 0 : index
    %c0_0 = arith.constant 0 : index
    %c0_1 = arith.constant 0 : index
    %0 = vector.load %arg2[%c0, %c0_0, %c0_1] : memref<1x128x32xbf16, #tpu.memory_space<vmem>>, vector<1x128x32xbf16>
    %1 = vector.shape_cast %0 : vector<1x128x32xbf16> to vector<128x32xbf16>
    %c0_2 = arith.constant 0 : index
    %c0_3 = arith.constant 0 : index
    %c0_4 = arith.constant 0 : index
    %c0_5 = arith.constant 0 : index
    %2 = vector.load %arg3[%c0_2, %c0_3, %c0_4, %c0_5] : memref<3x1x32x16xbf16, #tpu.memory_space<vmem>>, vector<1x1x32x16xbf16>
    %3 = vector.shape_cast %2 : vector<1x1x32x16xbf16> to vector<32x16xbf16>
    %cst = arith.constant dense<0.000000e+00> : vector<128x16xf32>
    %4 = tpu.matmul %1, %3, %cst {dimension_numbers = #tpu.dot_dimension_numbers<[1], [0], [0], [1], [0, 0, 1, 1], [], []>} : vector<128x32xbf16>, vector<32x16xbf16>, vector<128x16xf32> -> vector<128x16xf32>
    %5 = arith.truncf %4 : vector<128x16xf32> to vector<128x16xbf16>
    %c1 = arith.constant 1 : index
    %c0_6 = arith.constant 0 : index
    %c0_7 = arith.constant 0 : index
    %c0_8 = arith.constant 0 : index
    %6 = vector.load %arg3[%c1, %c0_6, %c0_7, %c0_8] : memref<3x1x32x16xbf16, #tpu.memory_space<vmem>>, vector<1x1x32x16xbf16>
    %7 = vector.shape_cast %6 : vector<1x1x32x16xbf16> to vector<32x16xbf16>
    %cst_9 = arith.constant dense<0.000000e+00> : vector<128x16xf32>
    %8 = tpu.matmul %1, %7, %cst_9 {dimension_numbers = #tpu.dot_dimension_numbers<[1], [0], [0], [1], [0, 0, 1, 1], [], []>} : vector<128x32xbf16>, vector<32x16xbf16>, vector<128x16xf32> -> vector<128x16xf32>
    %9 = arith.truncf %8 : vector<128x16xf32> to vector<128x16xbf16>
    %c2 = arith.constant 2 : index
    %c0_10 = arith.constant 0 : index
    %c0_11 = arith.constant 0 : index
    %c0_12 = arith.constant 0 : index
    %10 = vector.load %arg3[%c2, %c0_10, %c0_11, %c0_12] : memref<3x1x32x16xbf16, #tpu.memory_space<vmem>>, vector<1x1x32x16xbf16>
    %11 = vector.shape_cast %10 : vector<1x1x32x16xbf16> to vector<32x16xbf16>
    %cst_13 = arith.constant dense<0.000000e+00> : vector<128x16xf32>
    %12 = tpu.matmul %1, %11, %cst_13 {dimension_numbers = #tpu.dot_dimension_numbers<[1], [0], [0], [1], [0, 0, 1, 1], [], []>} : vector<128x32xbf16>, vector<32x16xbf16>, vector<128x16xf32> -> vector<128x16xf32>
    %13 = arith.truncf %12 : vector<128x16xf32> to vector<128x16xbf16>
    %14 = tpu.iota {dimensions = array<i32: 1>} : vector<128x128xi32>
    %c8_i32 = arith.constant 8 : i32
    %15 = vector.broadcast %c8_i32 : i32 to vector<128x128xi32>
    %16 = arith.cmpi slt, %14, %15 : vector<128x128xi32>
    %17 = vector.extract_strided_slice %5 {offsets = [0, 0], sizes = [128, 4], strides = [1, 1]} : vector<128x16xbf16> to vector<128x4xbf16>
    %18 = vector.extract_strided_slice %9 {offsets = [0, 0], sizes = [128, 4], strides = [1, 1]} : vector<128x16xbf16> to vector<128x4xbf16>
    %19 = vector.extract_strided_slice %13 {offsets = [0, 0], sizes = [128, 4], strides = [1, 1]} : vector<128x16xbf16> to vector<128x4xbf16>
    %cst_14 = arith.constant dense<0.000000e+00> : vector<128x128xf32>
    %20 = tpu.matmul %17, %18, %cst_14 {dimension_numbers = #tpu.dot_dimension_numbers<[1], [1], [0], [0], [0, 0, 1, 0], [], []>} : vector<128x4xbf16>, vector<128x4xbf16>, vector<128x128xf32> -> vector<128x128xf32>
    %cst_15 = arith.constant -1.000000e+30 : f32
    %21 = vector.broadcast %cst_15 : f32 to vector<128x128xf32>
    %22 = arith.select %16, %20, %21 : vector<128x128xi1>, vector<128x128xf32>
    %cst_16 = arith.constant dense<0xFF800000> : vector<128xf32>
    %23 = vector.multi_reduction <maximumf>, %22, %cst_16 [1] : vector<128x128xf32> to vector<128xf32>
    %24 = vector.shape_cast %23 : vector<128xf32> to vector<128x1xf32>
    %25 = vector.broadcast %24 : vector<128x1xf32> to vector<128x128xf32>
    %26 = arith.subf %22, %25 : vector<128x128xf32>
    %27 = math.exp %26 : vector<128x128xf32>
    %cst_17 = arith.constant dense<0.000000e+00> : vector<128xf32>
    %28 = vector.multi_reduction <add>, %27, %cst_17 [1] : vector<128x128xf32> to vector<128xf32>
    %29 = vector.shape_cast %28 : vector<128xf32> to vector<128x1xf32>
    %30 = tpu.reciprocal %29 {approx = true} : vector<128x1xf32> -> vector<128x1xf32>
    %31 = vector.broadcast %30 : vector<128x1xf32> to vector<128x128xf32>
    %32 = arith.mulf %27, %31 : vector<128x128xf32>
    %c0_18 = arith.constant 0 : index
    %c0_19 = arith.constant 0 : index
    %c0_20 = arith.constant 0 : index
    %c0_21 = arith.constant 0 : index
    %33 = vector.load %arg7[%c0_18, %c0_19, %c0_20, %c0_21] : memref<1x4x128x128xf32, #tpu.memory_space<vmem>>, vector<1x1x128x128xf32>
    %34 = vector.shape_cast %33 : vector<1x1x128x128xf32> to vector<128x128xf32>
    %35 = vector.shape_cast %32 : vector<128x128xf32> to vector<1x1x128x128xf32>
    tpu.vector_store %arg7[%c0_18, %c0_19, %c0_20, %c0_21], %35 {strides = array<i32>} : memref<1x4x128x128xf32, #tpu.memory_space<vmem>>, vector<1x1x128x128xf32>,
    %36 = arith.truncf %32 : vector<128x128xf32> to vector<128x128xbf16>
    %cst_22 = arith.constant dense<0.000000e+00> : vector<128x4xf32>
    %37 = tpu.matmul %36, %19, %cst_22 {dimension_numbers = #tpu.dot_dimension_numbers<[1], [0], [0], [1], [0, 0, 1, 1], [], []>} : vector<128x128xbf16>, vector<128x4xbf16>, vector<128x4xf32> -> vector<128x4xf32>
    %38 = arith.truncf %37 : vector<128x4xf32> to vector<128x4xbf16>
    %39 = vector.extract_strided_slice %5 {offsets = [0, 4], sizes = [128, 4], strides = [1, 1]} : vector<128x16xbf16> to vector<128x4xbf16>
    %40 = vector.extract_strided_slice %9 {offsets = [0, 4], sizes = [128, 4], strides = [1, 1]} : vector<128x16xbf16> to vector<128x4xbf16>
    %41 = vector.extract_strided_slice %13 {offsets = [0, 4], sizes = [128, 4], strides = [1, 1]} : vector<128x16xbf16> to vector<128x4xbf16>
    %cst_23 = arith.constant dense<0.000000e+00> : vector<128x128xf32>
    %42 = tpu.matmul %39, %40, %cst_23 {dimension_numbers = #tpu.dot_dimension_numbers<[1], [1], [0], [0], [0, 0, 1, 0], [], []>} : vector<128x4xbf16>, vector<128x4xbf16>, vector<128x128xf32> -> vector<128x128xf32>
    %cst_24 = arith.constant -1.000000e+30 : f32
    %43 = vector.broadcast %cst_24 : f32 to vector<128x128xf32>
    %44 = arith.select %16, %42, %43 : vector<128x128xi1>, vector<128x128xf32>
    %cst_25 = arith.constant dense<0xFF800000> : vector<128xf32>
    %45 = vector.multi_reduction <maximumf>, %44, %cst_25 [1] : vector<128x128xf32> to vector<128xf32>
    %46 = vector.shape_cast %45 : vector<128xf32> to vector<128x1xf32>
    %47 = vector.broadcast %46 : vector<128x1xf32> to vector<128x128xf32>
    %48 = arith.subf %44, %47 : vector<128x128xf32>
    %49 = math.exp %48 : vector<128x128xf32>
    %cst_26 = arith.constant dense<0.000000e+00> : vector<128xf32>
    %50 = vector.multi_reduction <add>, %49, %cst_26 [1] : vector<128x128xf32> to vector<128xf32>
    %51 = vector.shape_cast %50 : vector<128xf32> to vector<128x1xf32>
    %52 = tpu.reciprocal %51 {approx = true} : vector<128x1xf32> -> vector<128x1xf32>
    %53 = vector.broadcast %52 : vector<128x1xf32> to vector<128x128xf32>
    %54 = arith.mulf %49, %53 : vector<128x128xf32>
    %c0_27 = arith.constant 0 : index
    %c1_28 = arith.constant 1 : index
    %c0_29 = arith.constant 0 : index
    %c0_30 = arith.constant 0 : index
    %55 = vector.load %arg7[%c0_27, %c1_28, %c0_29, %c0_30] : memref<1x4x128x128xf32, #tpu.memory_space<vmem>>, vector<1x1x128x128xf32>
    %56 = vector.shape_cast %55 : vector<1x1x128x128xf32> to vector<128x128xf32>
    %57 = vector.shape_cast %54 : vector<128x128xf32> to vector<1x1x128x128xf32>
    tpu.vector_store %arg7[%c0_27, %c1_28, %c0_29, %c0_30], %57 {strides = array<i32>} : memref<1x4x128x128xf32, #tpu.memory_space<vmem>>, vector<1x1x128x128xf32>,
    %58 = arith.truncf %54 : vector<128x128xf32> to vector<128x128xbf16>
    %cst_31 = arith.constant dense<0.000000e+00> : vector<128x4xf32>
    %59 = tpu.matmul %58, %41, %cst_31 {dimension_numbers = #tpu.dot_dimension_numbers<[1], [0], [0], [1], [0, 0, 1, 1], [], []>} : vector<128x128xbf16>, vector<128x4xbf16>, vector<128x4xf32> -> vector<128x4xf32>
    %60 = arith.truncf %59 : vector<128x4xf32> to vector<128x4xbf16>
    %61 = vector.extract_strided_slice %5 {offsets = [0, 8], sizes = [128, 4], strides = [1, 1]} : vector<128x16xbf16> to vector<128x4xbf16>
    %62 = vector.extract_strided_slice %9 {offsets = [0, 8], sizes = [128, 4], strides = [1, 1]} : vector<128x16xbf16> to vector<128x4xbf16>
    %63 = vector.extract_strided_slice %13 {offsets = [0, 8], sizes = [128, 4], strides = [1, 1]} : vector<128x16xbf16> to vector<128x4xbf16>
    %cst_32 = arith.constant dense<0.000000e+00> : vector<128x128xf32>
    %64 = tpu.matmul %61, %62, %cst_32 {dimension_numbers = #tpu.dot_dimension_numbers<[1], [1], [0], [0], [0, 0, 1, 0], [], []>} : vector<128x4xbf16>, vector<128x4xbf16>, vector<128x128xf32> -> vector<128x128xf32>
    %cst_33 = arith.constant -1.000000e+30 : f32
    %65 = vector.broadcast %cst_33 : f32 to vector<128x128xf32>
    %66 = arith.select %16, %64, %65 : vector<128x128xi1>, vector<128x128xf32>
    %cst_34 = arith.constant dense<0xFF800000> : vector<128xf32>
    %67 = vector.multi_reduction <maximumf>, %66, %cst_34 [1] : vector<128x128xf32> to vector<128xf32>
    %68 = vector.shape_cast %67 : vector<128xf32> to vector<128x1xf32>
    %69 = vector.broadcast %68 : vector<128x1xf32> to vector<128x128xf32>
    %70 = arith.subf %66, %69 : vector<128x128xf32>
    %71 = math.exp %70 : vector<128x128xf32>
    %cst_35 = arith.constant dense<0.000000e+00> : vector<128xf32>
    %72 = vector.multi_reduction <add>, %71, %cst_35 [1] : vector<128x128xf32> to vector<128xf32>
    %73 = vector.shape_cast %72 : vector<128xf32> to vector<128x1xf32>
    %74 = tpu.reciprocal %73 {approx = true} : vector<128x1xf32> -> vector<128x1xf32>
    %75 = vector.broadcast %74 : vector<128x1xf32> to vector<128x128xf32>
    %76 = arith.mulf %71, %75 : vector<128x128xf32>
    %c0_36 = arith.constant 0 : index
    %c2_37 = arith.constant 2 : index
    %c0_38 = arith.constant 0 : index
    %c0_39 = arith.constant 0 : index
    %77 = vector.load %arg7[%c0_36, %c2_37, %c0_38, %c0_39] : memref<1x4x128x128xf32, #tpu.memory_space<vmem>>, vector<1x1x128x128xf32>
    %78 = vector.shape_cast %77 : vector<1x1x128x128xf32> to vector<128x128xf32>
    %79 = vector.shape_cast %76 : vector<128x128xf32> to vector<1x1x128x128xf32>
    tpu.vector_store %arg7[%c0_36, %c2_37, %c0_38, %c0_39], %79 {strides = array<i32>} : memref<1x4x128x128xf32, #tpu.memory_space<vmem>>, vector<1x1x128x128xf32>,
    %80 = arith.truncf %76 : vector<128x128xf32> to vector<128x128xbf16>
    %cst_40 = arith.constant dense<0.000000e+00> : vector<128x4xf32>
    %81 = tpu.matmul %80, %63, %cst_40 {dimension_numbers = #tpu.dot_dimension_numbers<[1], [0], [0], [1], [0, 0, 1, 1], [], []>} : vector<128x128xbf16>, vector<128x4xbf16>, vector<128x4xf32> -> vector<128x4xf32>
    %82 = arith.truncf %81 : vector<128x4xf32> to vector<128x4xbf16>
    %83 = vector.extract_strided_slice %5 {offsets = [0, 12], sizes = [128, 4], strides = [1, 1]} : vector<128x16xbf16> to vector<128x4xbf16>
    %84 = vector.extract_strided_slice %9 {offsets = [0, 12], sizes = [128, 4], strides = [1, 1]} : vector<128x16xbf16> to vector<128x4xbf16>
    %85 = vector.extract_strided_slice %13 {offsets = [0, 12], sizes = [128, 4], strides = [1, 1]} : vector<128x16xbf16> to vector<128x4xbf16>
    %cst_41 = arith.constant dense<0.000000e+00> : vector<128x128xf32>
    %86 = tpu.matmul %83, %84, %cst_41 {dimension_numbers = #tpu.dot_dimension_numbers<[1], [1], [0], [0], [0, 0, 1, 0], [], []>} : vector<128x4xbf16>, vector<128x4xbf16>, vector<128x128xf32> -> vector<128x128xf32>
    %cst_42 = arith.constant -1.000000e+30 : f32
    %87 = vector.broadcast %cst_42 : f32 to vector<128x128xf32>
    %88 = arith.select %16, %86, %87 : vector<128x128xi1>, vector<128x128xf32>
    %cst_43 = arith.constant dense<0xFF800000> : vector<128xf32>
    %89 = vector.multi_reduction <maximumf>, %88, %cst_43 [1] : vector<128x128xf32> to vector<128xf32>
    %90 = vector.shape_cast %89 : vector<128xf32> to vector<128x1xf32>
    %91 = vector.broadcast %90 : vector<128x1xf32> to vector<128x128xf32>
    %92 = arith.subf %88, %91 : vector<128x128xf32>
    %93 = math.exp %92 : vector<128x128xf32>
    %cst_44 = arith.constant dense<0.000000e+00> : vector<128xf32>
    %94 = vector.multi_reduction <add>, %93, %cst_44 [1] : vector<128x128xf32> to vector<128xf32>
    %95 = vector.shape_cast %94 : vector<128xf32> to vector<128x1xf32>
    %96 = tpu.reciprocal %95 {approx = true} : vector<128x1xf32> -> vector<128x1xf32>
    %97 = vector.broadcast %96 : vector<128x1xf32> to vector<128x128xf32>
    %98 = arith.mulf %93, %97 : vector<128x128xf32>
    %c0_45 = arith.constant 0 : index
    %c3 = arith.constant 3 : index
    %c0_46 = arith.constant 0 : index
    %c0_47 = arith.constant 0 : index
    %99 = vector.load %arg7[%c0_45, %c3, %c0_46, %c0_47] : memref<1x4x128x128xf32, #tpu.memory_space<vmem>>, vector<1x1x128x128xf32>
    %100 = vector.shape_cast %99 : vector<1x1x128x128xf32> to vector<128x128xf32>
    %101 = vector.shape_cast %98 : vector<128x128xf32> to vector<1x1x128x128xf32>
    tpu.vector_store %arg7[%c0_45, %c3, %c0_46, %c0_47], %101 {strides = array<i32>} : memref<1x4x128x128xf32, #tpu.memory_space<vmem>>, vector<1x1x128x128xf32>,
    %102 = arith.truncf %98 : vector<128x128xf32> to vector<128x128xbf16>
    %cst_48 = arith.constant dense<0.000000e+00> : vector<128x4xf32>
    %103 = tpu.matmul %102, %85, %cst_48 {dimension_numbers = #tpu.dot_dimension_numbers<[1], [0], [0], [1], [0, 0, 1, 1], [], []>} : vector<128x128xbf16>, vector<128x4xbf16>, vector<128x4xf32> -> vector<128x4xf32>
    %104 = arith.truncf %103 : vector<128x4xf32> to vector<128x4xbf16>
    %105 = tpu.concatenate %38, %60, %82, %104 in 1 : vector<128x4xbf16>, vector<128x4xbf16>, vector<128x4xbf16>, vector<128x4xbf16> -> vector<128x16xbf16>
    %c0_49 = arith.constant 0 : index
    %c0_50 = arith.constant 0 : index
    %c0_51 = arith.constant 0 : index
    %106 = vector.load %arg4[%c0_49, %c0_50, %c0_51] : memref<1x16x32xbf16, #tpu.memory_space<vmem>>, vector<1x16x32xbf16>
    %107 = vector.shape_cast %106 : vector<1x16x32xbf16> to vector<16x32xbf16>
    %cst_52 = arith.constant dense<0.000000e+00> : vector<128x32xf32>
    %108 = tpu.matmul %105, %107, %cst_52 {dimension_numbers = #tpu.dot_dimension_numbers<[1], [0], [0], [1], [0, 0, 1, 1], [], []>} : vector<128x16xbf16>, vector<16x32xbf16>, vector<128x32xf32> -> vector<128x32xf32>
    %c0_i32 = arith.constant 0 : i32
    %109 = arith.cmpi eq, %arg1, %c0_i32 : i32
    %110 = arith.extui %109 : i1 to i32
    %c0_i32_53 = arith.constant 0 : i32
    %111 = arith.cmpi ne, %110, %c0_i32_53 : i32
    scf.if %111 {
      %cst_59 = arith.constant 0.000000e+00 : f32
      %118 = vector.broadcast %cst_59 : f32 to vector<128x32xf32>
      %c0_60 = arith.constant 0 : index
      %c0_61 = arith.constant 0 : index
      %119 = vector.load %arg8[%c0_60, %c0_61] : memref<128x32xf32, #tpu.memory_space<vmem>>, vector<128x32xf32>
      tpu.vector_store %arg8[%c0_60, %c0_61], %118 {strides = array<i32>} : memref<128x32xf32, #tpu.memory_space<vmem>>, vector<128x32xf32>,
    } else {
    }
    %c0_54 = arith.constant 0 : index
    %c0_55 = arith.constant 0 : index
    %112 = vector.load %arg8[%c0_54, %c0_55] : memref<128x32xf32, #tpu.memory_space<vmem>>, vector<128x32xf32>
    %113 = arith.addf %112, %108 : vector<128x32xf32>
    %c0_56 = arith.constant 0 : index
    %c0_57 = arith.constant 0 : index
    %114 = vector.load %arg8[%c0_56, %c0_57] : memref<128x32xf32, #tpu.memory_space<vmem>>, vector<128x32xf32>
    tpu.vector_store %arg8[%c0_56, %c0_57], %113 {strides = array<i32>} : memref<128x32xf32, #tpu.memory_space<vmem>>, vector<128x32xf32>,
    %c1_i32 = arith.constant 1 : i32
    %115 = arith.cmpi eq, %arg1, %c1_i32 : i32
    %116 = arith.extui %115 : i1 to i32
    %c0_i32_58 = arith.constant 0 : i32
    %117 = arith.cmpi ne, %116, %c0_i32_58 : i32
    scf.if %117 {
      %c0_59 = arith.constant 0 : index
      %c0_60 = arith.constant 0 : index
      %118 = vector.load %arg8[%c0_59, %c0_60] : memref<128x32xf32, #tpu.memory_space<vmem>>, vector<128x32xf32>
      %c0_61 = arith.constant 0 : index
      %c0_62 = arith.constant 0 : index
      %119 = vector.load %arg5[%c0_61, %c0_62] : memref<1x32xf32, #tpu.memory_space<vmem>>, vector<1x32xf32>
      %120 = vector.broadcast %119 : vector<1x32xf32> to vector<128x32xf32>
      %121 = arith.addf %118, %120 : vector<128x32xf32>
      %c0_63 = arith.constant 0 : index
      %c0_64 = arith.constant 0 : index
      %c0_65 = arith.constant 0 : index
      %122 = vector.load %arg6[%c0_63, %c0_64, %c0_65] : memref<1x128x32xf32, #tpu.memory_space<vmem>>, vector<1x128x32xf32>
      %123 = vector.shape_cast %122 : vector<1x128x32xf32> to vector<128x32xf32>
      %124 = vector.shape_cast %121 : vector<128x32xf32> to vector<1x128x32xf32>
      tpu.vector_store %arg6[%c0_63, %c0_64, %c0_65], %124 {strides = array<i32>} : memref<1x128x32xf32, #tpu.memory_space<vmem>>, vector<1x128x32xf32>,
    } else {
    }
    return
  }
  func.func @transform_0(%arg0: i32, %arg1: i32) -> (i32, i32, i32) {
    %c0_i32 = arith.constant 0 : i32
    %c0_i32_0 = arith.constant 0 : i32
    %c0_i32_1 = arith.constant 0 : i32
    return %arg0, %c0_i32, %c0_i32_0 : i32, i32, i32
  }
  func.func @transform_1(%arg0: i32, %arg1: i32) -> (i32, i32, i32, i32) {
    %c0_i32 = arith.constant 0 : i32
    %c0_i32_0 = arith.constant 0 : i32
    %c0_i32_1 = arith.constant 0 : i32
    %c0_i32_2 = arith.constant 0 : i32
    return %c0_i32, %arg1, %c0_i32_0, %c0_i32_1 : i32, i32, i32, i32
  }
  func.func @transform_2(%arg0: i32, %arg1: i32) -> (i32, i32, i32) {
    %c0_i32 = arith.constant 0 : i32
    %c0_i32_0 = arith.constant 0 : i32
    %c0_i32_1 = arith.constant 0 : i32
    return %arg1, %c0_i32, %c0_i32_0 : i32, i32, i32
  }
  func.func @transform_3(%arg0: i32, %arg1: i32) -> (i32, i32) {
    %c0_i32 = arith.constant 0 : i32
    %c0_i32_0 = arith.constant 0 : i32
    %c0_i32_1 = arith.constant 0 : i32
    return %c0_i32, %c0_i32_0 : i32, i32
  }
  func.func @transform_4(%arg0: i32, %arg1: i32) -> (i32, i32, i32) {
    %c0_i32 = arith.constant 0 : i32
    %c0_i32_0 = arith.constant 0 : i32
    %c0_i32_1 = arith.constant 0 : i32
    return %arg0, %c0_i32, %c0_i32_0 : i32, i32, i32
  }
  func.func @transform_5(%arg0: i32, %arg1: i32) -> (i32, i32, i32, i32) {
    %c0_i32 = arith.constant 0 : i32
    %c0_i32_0 = arith.constant 0 : i32
    %c0_i32_1 = arith.constant 0 : i32
    return %arg0, %arg1, %c0_i32, %c0_i32_0 : i32, i32, i32, i32
  }
}

</mosaic_0001>

<llo_original>
// kernel: tpu_custom_call.1
$region0: #{tpu_custom_call.1}
  #allocation0 [shape = 'u32[]', space=smem, size = 0x4, offset = 0x4, fixed_abs, tag = 'smem constant byte address 0x4 - core index']
  #allocation1 [shape = 'u32[144,128]{1,0:T(1,128)}', space=vmem, size = 0x12000, scoped, tag = 'internal scratch']
  #allocation2 [shape = 'f32[128,32]{1,0:T(8,128)}', space=vmem, size = 0x10000, scoped, tag = 'scratch operand']
  %s0 = inlined_call_operand.vmem [shape: bf16[2,128,32], index: 0, kind: input, shape index: {}]
  %s1 = inlined_call_operand.vmem [shape: bf16[3,2,32,16], index: 1, kind: input, shape index: {}]
  %s2 = inlined_call_operand.vmem [shape: bf16[2,16,32], index: 2, kind: input, shape index: {}]
  %s3 = inlined_call_operand.vmem [shape: f32[1,32], index: 3, kind: input, shape index: {}]
  %s4 = inlined_call_operand.vmem [shape: f32[2,128,32], index: 4, kind: output, shape index: {0}]
  %s5 = inlined_call_operand.hbm [shape: f32[2,8,128,128], index: 5, kind: output, shape index: {1}]
  %6 = xla_tuple %s4, %s5
  %s7 = sld [smem:[#allocation0]]
  $region106: #{tpu_custom_call.1} parent=0
    _
  %s9 = ssub.s32 1, %s7
  %s10 = scalar_select 0, %s9, %s7
  $region1: #{tpu_custom_call.1} parent=0
    #allocation3 [shape = 'u8[49152]{0}', space=vmem, size = 0xc000, scoped, tag = 'input window, operand 1']
    #allocation4 [shape = 'u8[524288]{0}', space=vmem, size = 0x80000, scoped, tag = 'output window, operand 1']
    #allocation5 [shape = 's32[2]{0}', space=sflag, size = 0x8, scoped, tag = 'scoped memory for tpu_custom_call.1']
    %11 = vsyncpa [#allocation5], 0
    %s12 = scalar_lea.sflag [#allocation5], 1
    %13 = vsyncpa %s12, 0
    loop: start=0, step=1, limit=6
    $region2: #{tpu_custom_call.1} parent=1 // loop_pre_header
      _
    $region3: #{tpu_custom_call.1} parent=1 // loop_header
      %s15 = sphi 0, %s19
      %p16 = scmp.ge.s32.totalorder %s15, 6
      %s22 = sphi 0, %s34
      %s23 = sphi 0, %s30
      %s24 = sphi 0, %s22
      %s25 = sphi 0, %s23
      %s26 = sphi 0, %s24
      %s27 = sphi 0, %s25
      %s37 = sphi 0, %s39
      %s40 = sphi 0, %s37
      %s41 = sphi 0, %s40
      %s57 = sphi 0, %s41
      %s63 = sphi 0, %s65
      %s66 = sphi 0, %s63
      %s67 = sphi 0, %s66
      %s83 = sphi 0, %s67
      %s89 = sphi 0, %s91
      %s92 = sphi 0, %s89
      %s93 = sphi 0, %s92
      %s109 = sphi 0, %s93
      %s113 = sphi 0, %s113
      %s115 = sphi 0, %s113
      %s116 = sphi 0, %s115
      %s130 = sphi 0, %s116
      %s136 = sphi 0, %s138
      %s139 = sphi 0, %s136
      %s140 = sphi 0, %s139
      %s156 = sphi 0, %s140
      %s164 = sphi 0, %s166
      %s167 = sphi 0, %s164
      %s168 = sphi 0, %s167
      %s184 = sphi 0, %s168
    $region4: #{tpu_custom_call.1} parent=1 // loop_header_branch
      %18 = sbr.rel (%p16) target = $region8
    $region5: #{tpu_custom_call.1} parent=1 // loop_body
      %s20 = ssub.s32 %s15, 1
      %s21 = ssub.s32 %s15, 2
      %s28 = sadd.s32 1, %s23
      %p29 = scmp.ge.s32.totalorder %s28, 2
      %s30 = scalar_select %p29, 0, %s28
      %s31 = sadd.s32 1, %s22
      %s32 = scalar_select %p29, %s31, %s22
      %p33 = scmp.ge.s32.totalorder %s32, 2
      %s34 = scalar_select %p33, 0, %s32
      %s35 = ssub.s32 %s22, %s34
      %p36 = scmp.eq.s32.totalorder %s35, 0
      %s38 = sadd.s32 %s37, 1
      %s39 = scalar_select %p36, %s37, %s38
      %p42 = pneg %p36
      %p43 = scmp.eq.s32.totalorder %s15, 3
      %p44 = por %p42, %p43
      %p45 = scmp.ne.s32.totalorder %s37, %s40
      %p46 = scmp.eq.s32.totalorder %s15, 0
      %p47 = por %p45, %p46
      %p48 = scmp.ne.s32.totalorder %s37, %s40
      %p49 = scmp.eq.s32.totalorder %s20, 3
      %p50 = por %p48, %p49
      %p51 = scmp.ne.s32.totalorder %s40, %s41
      %p52 = scmp.eq.s32.totalorder %s20, 0
      %p53 = por %p51, %p52
      %p54 = scmp.ne.s32.totalorder %s40, %s41
      %p55 = scmp.eq.s32.totalorder %s21, 3
      %p56 = por %p54, %p55
      %p58 = scmp.ne.s32.totalorder %s41, %s57
      %p59 = scmp.eq.s32.totalorder %s21, 0
      %p60 = por %p58, %p59
      %s61 = ssub.s32 %s23, %s30
      %p62 = scmp.eq.s32.totalorder %s61, 0
      %s64 = sadd.s32 %s63, 1
      %s65 = scalar_select %p62, %s63, %s64
      %p68 = pneg %p62
      %p69 = scmp.eq.s32.totalorder %s15, 3
      %p70 = por %p68, %p69
      %p71 = scmp.ne.s32.totalorder %s63, %s66
      %p72 = scmp.eq.s32.totalorder %s15, 0
      %p73 = por %p71, %p72
      %p74 = scmp.ne.s32.totalorder %s63, %s66
      %p75 = scmp.eq.s32.totalorder %s20, 3
      %p76 = por %p74, %p75
      %p77 = scmp.ne.s32.totalorder %s66, %s67
      %p78 = scmp.eq.s32.totalorder %s20, 0
      %p79 = por %p77, %p78
      %p80 = scmp.ne.s32.totalorder %s66, %s67
      %p81 = scmp.eq.s32.totalorder %s21, 3
      %p82 = por %p80, %p81
      %p84 = scmp.ne.s32.totalorder %s67, %s83
      %p85 = scmp.eq.s32.totalorder %s21, 0
      %p86 = por %p84, %p85
      %s87 = ssub.s32 %s23, %s30
      %p88 = scmp.eq.s32.totalorder %s87, 0
      %s90 = sadd.s32 %s89, 1
      %s91 = scalar_select %p88, %s89, %s90
      %p94 = pneg %p88
      %p95 = scmp.eq.s32.totalorder %s15, 3
      %p96 = por %p94, %p95
      %p97 = scmp.ne.s32.totalorder %s89, %s92
      %p98 = scmp.eq.s32.totalorder %s15, 0
      %p99 = por %p97, %p98
      %p100 = scmp.ne.s32.totalorder %s89, %s92
      %p101 = scmp.eq.s32.totalorder %s20, 3
      %p102 = por %p100, %p101
      %p103 = scmp.ne.s32.totalorder %s92, %s93
      %p104 = scmp.eq.s32.totalorder %s20, 0
      %p105 = por %p103, %p104
      %p106 = scmp.ne.s32.totalorder %s92, %s93
      %p107 = scmp.eq.s32.totalorder %s21, 3
      %p108 = por %p106, %p107
      %p110 = scmp.ne.s32.totalorder %s93, %s109
      %p111 = scmp.eq.s32.totalorder %s21, 0
      %p112 = por %p110, %p111
      %s114 = sadd.s32 %s113, 1
      %p117 = scmp.eq.s32.totalorder %s15, 3
      %p118 = scmp.ne.s32.totalorder %s113, %s115
      %p119 = scmp.eq.s32.totalorder %s15, 0
      %p120 = por %p118, %p119
      %p121 = scmp.ne.s32.totalorder %s113, %s115
      %p122 = scmp.eq.s32.totalorder %s20, 3
      %p123 = por %p121, %p122
      %p124 = scmp.ne.s32.totalorder %s115, %s116
      %p125 = scmp.eq.s32.totalorder %s20, 0
      %p126 = por %p124, %p125
      %p127 = scmp.ne.s32.totalorder %s115, %s116
      %p128 = scmp.eq.s32.totalorder %s21, 3
      %p129 = por %p127, %p128
      %p131 = scmp.ne.s32.totalorder %s116, %s130
      %p132 = scmp.eq.s32.totalorder %s21, 0
      %p133 = por %p131, %p132
      %s134 = ssub.s32 %s22, %s34
      %p135 = scmp.eq.s32.totalorder %s134, 0
      %s137 = sadd.s32 %s136, 1
      %s138 = scalar_select %p135, %s136, %s137
      %p141 = pneg %p135
      %p142 = scmp.eq.s32.totalorder %s15, 3
      %p143 = por %p141, %p142
      %p144 = scmp.ne.s32.totalorder %s136, %s139
      %p145 = scmp.eq.s32.totalorder %s15, 0
      %p146 = por %p144, %p145
      %p147 = scmp.ne.s32.totalorder %s136, %s139
      %p148 = scmp.eq.s32.totalorder %s20, 3
      %p149 = por %p147, %p148
      %p150 = scmp.ne.s32.totalorder %s139, %s140
      %p151 = scmp.eq.s32.totalorder %s20, 0
      %p152 = por %p150, %p151
      %p153 = scmp.ne.s32.totalorder %s139, %s140
      %p154 = scmp.eq.s32.totalorder %s21, 3
      %p155 = por %p153, %p154
      %p157 = scmp.ne.s32.totalorder %s140, %s156
      %p158 = scmp.eq.s32.totalorder %s21, 0
      %p159 = por %p157, %p158
      %s160 = ssub.s32 %s22, %s34
      %s161 = ssub.s32 %s23, %s30
      %s162 = sor.u32 %s160, %s161
      %p163 = scmp.eq.s32.totalorder %s162, 0
      %s165 = sadd.s32 %s164, 1
      %s166 = scalar_select %p163, %s164, %s165
      %p169 = pneg %p163
      %p170 = scmp.eq.s32.totalorder %s15, 3
      %p171 = por %p169, %p170
      %p172 = scmp.ne.s32.totalorder %s164, %s167
      %p173 = scmp.eq.s32.totalorder %s15, 0
      %p174 = por %p172, %p173
      %p175 = scmp.ne.s32.totalorder %s164, %s167
      %p176 = scmp.eq.s32.totalorder %s20, 3
      %p177 = por %p175, %p176
      %p178 = scmp.ne.s32.totalorder %s167, %s168
      %p179 = scmp.eq.s32.totalorder %s20, 0
      %p180 = por %p178, %p179
      %p181 = scmp.ne.s32.totalorder %s167, %s168
      %p182 = scmp.eq.s32.totalorder %s21, 3
      %p183 = por %p181, %p182
      %p185 = scmp.ne.s32.totalorder %s168, %s184
      %p186 = scmp.eq.s32.totalorder %s21, 0
      %p187 = por %p185, %p186
      %p188 = scmp.le.s32.totalorder 1, %s15
      %p189 = scmp.lt.s32.totalorder %s15, 5
      %p190 = pnand %p188, %p189
      %p191 = pneg %p190
      // Predicated region
      $region9: #{tpu_custom_call.1} parent=5 // pred_check
        _
      $region10: #{tpu_custom_call.1} parent=5 // pred_check_branch
        %193 = sbr.rel (%p190) target = $region12
      $region11: #{tpu_custom_call.1} parent=5 // pred_region
        %s194 = ssub.s32 %s15, 1
        // Predicated region
        $region13: #{tpu_custom_call.1} parent=11 // pred_check
          %p195 = pneg %p126
        $region14: #{tpu_custom_call.1} parent=11 // pred_check_branch
          %197 = sbr.rel (%p195) target = $region16
        $region15: #{tpu_custom_call.1} parent=11 // pred_region
          _
        $region16: #{tpu_custom_call.1} parent=11 // pred_fallthru
          _
      $region12: #{tpu_custom_call.1} parent=5 // pred_fallthru
        _
      %p198 = scmp.lt.s32.totalorder %s15, 4
      // Predicated region
      $region17: #{tpu_custom_call.1} parent=5 // pred_check
        %p199 = pneg %p198
      $region18: #{tpu_custom_call.1} parent=5 // pred_check_branch
        %201 = sbr.rel (%p199) target = $region20
      $region19: #{tpu_custom_call.1} parent=5 // pred_region
        // Predicated region
        $region21: #{tpu_custom_call.1} parent=19 // pred_check
          %p202 = pneg %p47
        $region22: #{tpu_custom_call.1} parent=19 // pred_check_branch
          %204 = sbr.rel (%p202) target = $region24
        $region23: #{tpu_custom_call.1} parent=19 // pred_region
          %p205 = scmp.lt.s32.totalorder %s22, 1
          %s206 = scalar_select %p205, %s22, 1
          %s207 = smul.addr %s206, 16
          %s208 = smul.addr %s207, 4
          %s209 = scalar_lea.vmem %s0, %s208
        $region24: #{tpu_custom_call.1} parent=19 // pred_fallthru
          _
        // Predicated region
        $region25: #{tpu_custom_call.1} parent=19 // pred_check
          %p210 = pneg %p73
        $region26: #{tpu_custom_call.1} parent=19 // pred_check_branch
          %212 = sbr.rel (%p210) target = $region28
        $region27: #{tpu_custom_call.1} parent=19 // pred_region
          %s213 = sand.u32 %s63, 1
          %s214 = sand.u32 %s63, 1
          %s215 = smul.addr %s214, 48
          %s216 = scalar_lea.vmem [#allocation3], %s215
          %s217 = smul.addr %s23, 4
          %s218 = smul.addr %s217, 4
          %s219 = scalar_lea.vmem %s1, %s218
          // Predicated region
          $region29: #{tpu_custom_call.1} parent=27 // pred_check
            _
          $region30: #{tpu_custom_call.1} parent=27 // pred_check_branch
            %221 = sbr.rel (0) target = $region32
          $region31: #{tpu_custom_call.1} parent=27 // pred_region
            // Predicated region
            $region33: #{tpu_custom_call.1} parent=31 // pred_check
              _
            $region34: #{tpu_custom_call.1} parent=31 // pred_check_branch
              %223 = sbr.rel target = $region36
            $region35: #{tpu_custom_call.1} parent=31 // pred_region
              // Predicated region
              $region48: #{tpu_custom_call.1} parent=35 // pred_check
                _
              $region49: #{tpu_custom_call.1} parent=35 // pred_check_branch
                %260 = sbr.rel (0) target = $region51
              $region50: #{tpu_custom_call.1} parent=35 // pred_region
                loop: start=0, step=1, limit=1
                $region52: #{tpu_custom_call.1} parent=50 // loop_pre_header
                  _
                $region53: #{tpu_custom_call.1} parent=50 // loop_header
                  %s262 = sphi 0, %s266
                  %p263 = scmp.ge.s32.totalorder %s262, 1
                  %s267 = sphi %s219, %s219
                  %s268 = sphi %s216, %s216
                $region54: #{tpu_custom_call.1} parent=50 // loop_header_branch
                  %265 = sbr.rel (%p263) target = $region58
                $region55: #{tpu_custom_call.1} parent=50 // loop_body
                  _
                $region56: #{tpu_custom_call.1} parent=50 // loop_footer
                  %s266 = sadd.s32 1, %s262
                $region57: #{tpu_custom_call.1} parent=50 // loop_footer_branch
                  %261 = sbr.rel target = $region53
                $region58: #{tpu_custom_call.1} parent=50 // loop_exit
                  _
                loop: start=0, step=1, limit=1
                $region59: #{tpu_custom_call.1} parent=50 // loop_pre_header
                  _
                $region60: #{tpu_custom_call.1} parent=50 // loop_header
                  %s271 = sphi 0, %s275
                  %p272 = scmp.ge.s32.totalorder %s271, 1
                  %s276 = sphi %s219, %s219
                  %s277 = sphi %s216, %s216
                $region61: #{tpu_custom_call.1} parent=50 // loop_header_branch
                  %274 = sbr.rel (%p272) target = $region65
                $region62: #{tpu_custom_call.1} parent=50 // loop_body
                  %v278 = vld [vmem:[%s276] sm:$0xf]
                  %279 = vst [vmem:[%s277] sm:$0xf] %v278
                  %v280 = vld [vmem:[%s276 + $0x4] sm:$0xf]
                  %281 = vst [vmem:[%s277 + $0x4] sm:$0xf] %v280
                  %v282 = vld [vmem:[%s276 + $0x8] sm:$0xf]
                  %283 = vst [vmem:[%s277 + $0x8] sm:$0xf] %v282
                  %v284 = vld [vmem:[%s276 + $0xc] sm:$0xf]
                  %285 = vst [vmem:[%s277 + $0xc] sm:$0xf] %v284
                  %v286 = vld [vmem:[%s276 + $0x20] sm:$0xf]
                  %287 = vst [vmem:[%s277 + $0x10] sm:$0xf] %v286
                  %v288 = vld [vmem:[%s276 + $0x24] sm:$0xf]
                  %289 = vst [vmem:[%s277 + $0x14] sm:$0xf] %v288
                  %v290 = vld [vmem:[%s276 + $0x28] sm:$0xf]
                  %291 = vst [vmem:[%s277 + $0x18] sm:$0xf] %v290
                  %v292 = vld [vmem:[%s276 + $0x2c] sm:$0xf]
                  %293 = vst [vmem:[%s277 + $0x1c] sm:$0xf] %v292
                  %v294 = vld [vmem:[%s276 + $0x40] sm:$0xf]
                  %295 = vst [vmem:[%s277 + $0x20] sm:$0xf] %v294
                  %v296 = vld [vmem:[%s276 + $0x44] sm:$0xf]
                  %297 = vst [vmem:[%s277 + $0x24] sm:$0xf] %v296
                  %v298 = vld [vmem:[%s276 + $0x48] sm:$0xf]
                  %299 = vst [vmem:[%s277 + $0x28] sm:$0xf] %v298
                  %v300 = vld [vmem:[%s276 + $0x4c] sm:$0xf]
                  %301 = vst [vmem:[%s277 + $0x2c] sm:$0xf] %v300
                $region63: #{tpu_custom_call.1} parent=50 // loop_footer
                  %s275 = sadd.s32 1, %s271
                $region64: #{tpu_custom_call.1} parent=50 // loop_footer_branch
                  %270 = sbr.rel target = $region60
                $region65: #{tpu_custom_call.1} parent=50 // loop_exit
                  _
              $region51: #{tpu_custom_call.1} parent=35 // pred_fallthru
                _
            $region36: #{tpu_custom_call.1} parent=31 // pred_fallthru
              _
            // Predicated region
            $region37: #{tpu_custom_call.1} parent=31 // pred_check
              _
            $region38: #{tpu_custom_call.1} parent=31 // pred_check_branch
              %225 = sbr.rel (0) target = $region40
            $region39: #{tpu_custom_call.1} parent=31 // pred_region
              loop: start=0, step=1, limit=1
              $region41: #{tpu_custom_call.1} parent=39 // loop_pre_header
                _
              $region42: #{tpu_custom_call.1} parent=39 // loop_header
                %s228 = sphi 0, %s232
                %p229 = scmp.ge.s32.totalorder %s228, 1
                %s233 = sphi %s219, %s219
                %s234 = sphi %s216, %s216
              $region43: #{tpu_custom_call.1} parent=39 // loop_header_branch
                %231 = sbr.rel (%p229) target = $region47
              $region44: #{tpu_custom_call.1} parent=39 // loop_body
                %v235 = vld [vmem:[%s233] sm:$0xf]
                %236 = vst [vmem:[%s234] sm:$0xf] %v235
                %v237 = vld [vmem:[%s233 + $0x4] sm:$0xf]
                %238 = vst [vmem:[%s234 + $0x4] sm:$0xf] %v237
                %v239 = vld [vmem:[%s233 + $0x8] sm:$0xf]
                %240 = vst [vmem:[%s234 + $0x8] sm:$0xf] %v239
                %v241 = vld [vmem:[%s233 + $0xc] sm:$0xf]
                %242 = vst [vmem:[%s234 + $0xc] sm:$0xf] %v241
                %v243 = vld [vmem:[%s233 + $0x20] sm:$0xf]
                %244 = vst [vmem:[%s234 + $0x10] sm:$0xf] %v243
                %v245 = vld [vmem:[%s233 + $0x24] sm:$0xf]
                %246 = vst [vmem:[%s234 + $0x14] sm:$0xf] %v245
                %v247 = vld [vmem:[%s233 + $0x28] sm:$0xf]
                %248 = vst [vmem:[%s234 + $0x18] sm:$0xf] %v247
                %v249 = vld [vmem:[%s233 + $0x2c] sm:$0xf]
                %250 = vst [vmem:[%s234 + $0x1c] sm:$0xf] %v249
                %v251 = vld [vmem:[%s233 + $0x40] sm:$0xf]
                %252 = vst [vmem:[%s234 + $0x20] sm:$0xf] %v251
                %v253 = vld [vmem:[%s233 + $0x44] sm:$0xf]
                %254 = vst [vmem:[%s234 + $0x24] sm:$0xf] %v253
                %v255 = vld [vmem:[%s233 + $0x48] sm:$0xf]
                %256 = vst [vmem:[%s234 + $0x28] sm:$0xf] %v255
                %v257 = vld [vmem:[%s233 + $0x4c] sm:$0xf]
                %258 = vst [vmem:[%s234 + $0x2c] sm:$0xf] %v257
              $region45: #{tpu_custom_call.1} parent=39 // loop_footer
                %s232 = sadd.s32 1, %s228
              $region46: #{tpu_custom_call.1} parent=39 // loop_footer_branch
                %227 = sbr.rel target = $region42
              $region47: #{tpu_custom_call.1} parent=39 // loop_exit
                _
            $region40: #{tpu_custom_call.1} parent=31 // pred_fallthru
              _
          $region32: #{tpu_custom_call.1} parent=27 // pred_fallthru
            _
          %302 = vnop
        $region28: #{tpu_custom_call.1} parent=19 // pred_fallthru
          _
        // Predicated region
        $region66: #{tpu_custom_call.1} parent=19 // pred_check
          %p303 = pneg %p99
        $region67: #{tpu_custom_call.1} parent=19 // pred_check_branch
          %305 = sbr.rel (%p303) target = $region69
        $region68: #{tpu_custom_call.1} parent=19 // pred_region
          %p306 = scmp.lt.s32.totalorder %s23, 1
          %s307 = scalar_select %p306, %s23, 1
          %s308 = smul.addr %s307, 2
          %s309 = smul.addr %s308, 4
          %s310 = scalar_lea.vmem %s2, %s309
        $region69: #{tpu_custom_call.1} parent=19 // pred_fallthru
          _
      $region20: #{tpu_custom_call.1} parent=5 // pred_fallthru
        _
      %p311 = scmp.le.s32.totalorder 1, %s15
      %p312 = scmp.lt.s32.totalorder %s15, 5
      %p313 = pnand %p311, %p312
      %p314 = pneg %p313
      // Predicated region
      $region70: #{tpu_custom_call.1} parent=5 // pred_check
        _
      $region71: #{tpu_custom_call.1} parent=5 // pred_check_branch
        %316 = sbr.rel (%p313) target = $region73
      $region72: #{tpu_custom_call.1} parent=5 // pred_region
        %s317 = ssub.s32 %s15, 1
        %s318 = sand.u32 %s66, 1
        %s319 = sand.u32 %s66, 1
        %s320 = smul.addr %s319, 48
        %s321 = scalar_lea.vmem [#allocation3], %s320
        // Predicated region
        $region74: #{tpu_custom_call.1} parent=72 // pred_check
          %p322 = pneg %p79
        $region75: #{tpu_custom_call.1} parent=72 // pred_check_branch
          %324 = sbr.rel (%p322) target = $region77
        $region76: #{tpu_custom_call.1} parent=72 // pred_region
          _
        $region77: #{tpu_custom_call.1} parent=72 // pred_fallthru
          _
        %p325 = scmp.lt.s32.totalorder %s24, 1
        %s326 = scalar_select %p325, %s24, 1
        %s327 = smul.addr %s326, 16
        %s328 = smul.addr %s327, 4
        %s329 = scalar_lea.vmem %s0, %s328
        %p330 = pneg %p53
        %p331 = pneg %p50
        %s332 = sand.u32 %s66, 1
        %s333 = sand.u32 %s66, 1
        %s334 = smul.addr %s333, 48
        %s335 = scalar_lea.vmem [#allocation3], %s334
        %p336 = pneg %p79
        %p337 = pneg %p76
        %p338 = scmp.lt.s32.totalorder %s25, 1
        %s339 = scalar_select %p338, %s25, 1
        %s340 = smul.addr %s339, 2
        %s341 = smul.addr %s340, 4
        %s342 = scalar_lea.vmem %s2, %s341
        %p343 = pneg %p105
        %p344 = pneg %p102
        %p345 = pneg %p126
        %p346 = pneg %p123
        %p347 = pneg %p152
        %p348 = pneg %p149
        %p349 = scmp.lt.s32.totalorder %s24, 1
        %s350 = scalar_select %p349, %s24, 1
        %s351 = smul.addr %s350, 16
        %s352 = smul.addr %s351, 8
        %s353 = scalar_lea.vmem %s4, %s352
        %p354 = pneg %p180
        %p355 = pneg %p177
        %s356 = sand.u32 %s167, 1
        %s357 = scalar_lea.sflag [#allocation5], %s356
        %s358 = sand.u32 %s167, 1
        %s359 = smul.addr %s358, 512
        %s360 = scalar_lea.vmem [#allocation4], %s359
        %p361 = scmp.lt.s32.totalorder %s24, 1
        %s362 = scalar_select %p361, %s24, 1
        %s363 = smul.addr %s362, 16
        %s364 = smul.addr %s363, 4
        %s365 = scalar_lea.vmem %s0, %s364
        %p366 = scmp.lt.s32.totalorder %s25, 1
        %s367 = scalar_select %p366, %s25, 1
        %s368 = smul.addr %s367, 2
        %s369 = smul.addr %s368, 4
        %s370 = scalar_lea.vmem %s2, %s369
        %p371 = scmp.lt.s32.totalorder %s24, 1
        %s372 = scalar_select %p371, %s24, 1
        %s373 = smul.addr %s372, 16
        %s374 = smul.addr %s373, 8
        %s375 = scalar_lea.vmem %s4, %s374
        %s376 = smul.u32 4, %s25
        %v378 = vld [vmem:[%s365] sm:$0xf]
        %v379 = vld [vmem:[%s365 + $0x4] sm:$0xf]
        %v380 = vld [vmem:[%s365 + $0x8] sm:$0xf]
        %v381 = vld [vmem:[%s365 + $0xc] sm:$0xf]
        %v382 = vld [vmem:[%s365 + $0x10] sm:$0xf]
        %v383 = vld [vmem:[%s365 + $0x14] sm:$0xf]
        %v384 = vld [vmem:[%s365 + $0x18] sm:$0xf]
        %v385 = vld [vmem:[%s365 + $0x1c] sm:$0xf]
        %v386 = vld [vmem:[%s365 + $0x20] sm:$0xf]
        %v387 = vld [vmem:[%s365 + $0x24] sm:$0xf]
        %v388 = vld [vmem:[%s365 + $0x28] sm:$0xf]
        %v389 = vld [vmem:[%s365 + $0x2c] sm:$0xf]
        %v390 = vld [vmem:[%s365 + $0x30] sm:$0xf]
        %v391 = vld [vmem:[%s365 + $0x34] sm:$0xf]
        %v392 = vld [vmem:[%s365 + $0x38] sm:$0xf]
        %v393 = vld [vmem:[%s365 + $0x3c] sm:$0xf]
        %v394 = vld [vmem:[%s321] sm:$0xf]
        %v395 = vld [vmem:[%s321 + $0x4] sm:$0xf]
        %v396 = vld [vmem:[%s321 + $0x8] sm:$0xf]
        %v397 = vld [vmem:[%s321 + $0xc] sm:$0xf]
        %v414 = vunpack.c.l.b16 %v378
        %v415 = vunpack.c.l.b16 %v379
        %v416 = vunpack.c.l.b16 %v380
        %v417 = vunpack.c.l.b16 %v381
        %v418 = vunpack.c.l.b16 %v382
        %v419 = vunpack.c.l.b16 %v383
        %v420 = vunpack.c.l.b16 %v384
        %v421 = vunpack.c.l.b16 %v385
        %v422 = vunpack.c.l.b16 %v386
        %v423 = vunpack.c.l.b16 %v387
        %v424 = vunpack.c.l.b16 %v388
        %v425 = vunpack.c.l.b16 %v389
        %v426 = vunpack.c.l.b16 %v390
        %v427 = vunpack.c.l.b16 %v391
        %v428 = vunpack.c.l.b16 %v392
        %v429 = vunpack.c.l.b16 %v393
        %v430 = vpack.c.b16 %v415, %v414
        %v431 = vpack.c.b16 %v417, %v416
        %v432 = vpack.c.b16 %v419, %v418
        %v433 = vpack.c.b16 %v421, %v420
        %v434 = vpack.c.b16 %v423, %v422
        %v435 = vpack.c.b16 %v425, %v424
        %v436 = vpack.c.b16 %v427, %v426
        %v437 = vpack.c.b16 %v429, %v428
        %v442 = vunpack.c.l.b16 %v394
        %v443 = vunpack.c.l.b16 %v395
        %v444 = vunpack.c.l.b16 %v396
        %v445 = vunpack.c.l.b16 %v397
        %v446 = vpack.c.b16 %v443, %v442
        %v447 = vpack.c.b16 %v445, %v444
        %vm450 = vcmask 261120
        %v452 = vsel %vm450, %v430, 0
        %v455 = vsel %vm450, %v431, 0
        %v458 = vsel %vm450, %v432, 0
        %v461 = vsel %vm450, %v433, 0
        %v464 = vsel %vm450, %v434, 0
        %v467 = vsel %vm450, %v435, 0
        %v470 = vsel %vm450, %v436, 0
        %v473 = vsel %vm450, %v437, 0
        %475 = vmatprep.subr.bf16.mxu0 0
        %476 = vmatpush1.bf16.msra.mxu0 %v446
        %477 = vmatprep.subr.bf16.mxu0 0
        %478 = vmatpush1.bf16.msra.mxu0 %v447
        %479 = vmatprep.subr.bf16.mxu0 0
        %480 = vmatpush1.bf16.msra.mxu0 0
        %481 = vmatprep.subr.bf16.mxu0 0
        %482 = vmatpush1.bf16.msra.mxu0 0
        %483 = vmatprep.subr.bf16.mxu0 0
        %484 = vmatpush1.bf16.msra.mxu0 0
        %485 = vmatprep.subr.bf16.mxu0 0
        %486 = vmatpush1.bf16.msra.mxu0 0
        %487 = vmatprep.subr.bf16.mxu0 0
        %488 = vmatpush1.bf16.msra.mxu0 0
        %489 = vmatprep.subr.bf16.mxu0 0
        %490 = vmatpush1.bf16.msra.mxu0 0
        %491 = vmatprep.subr.bf16.mxu0 0
        %492 = vmatpush1.bf16.msra.mxu0 0
        %493 = vmatprep.subr.bf16.mxu0 0
        %494 = vmatpush1.bf16.msra.mxu0 0
        %495 = vmatprep.subr.bf16.mxu0 0
        %496 = vmatpush1.bf16.msra.mxu0 0
        %497 = vmatprep.subr.bf16.mxu0 0
        %498 = vmatpush1.bf16.msra.mxu0 0
        %499 = vmatprep.subr.bf16.mxu0 0
        %500 = vmatpush1.bf16.msra.mxu0 0
        %501 = vmatprep.subr.bf16.mxu0 0
        %502 = vmatpush1.bf16.msra.mxu0 0
        %503 = vmatprep.subr.bf16.mxu0 0
        %504 = vmatpush1.bf16.msra.mxu0 0
        %505 = vmatprep.subr.bf16.mxu0 0
        %506 = vmatpush1.bf16.msra.mxu0 0
        %507 = vmatprep.mubr.bf16.mxu0 0
        %508 = vmatmul.mubr.bf16.gmra.mrb[0].mxu0 %v452
        %v509 = vpop.f32.mrb[0].mxu0
        %v510 = vadd.f32 0.0, %v509
        %v511 = vpop.f32.mrb[0].mxu0
        %v512 = vpop.f32.mrb[0].mxu0
        %v513 = vadd.f32 0.0, %v512
        %v514 = vpop.f32.mrb[0].mxu0
        %515 = vmatprep.mubr.bf16.mxu0 0
        %516 = vmatmul.mubr.bf16.gmra.mrb[0].mxu0 %v455
        %v517 = vpop.f32.mrb[0].mxu0
        %v518 = vadd.f32 0.0, %v517
        %v519 = vpop.f32.mrb[0].mxu0
        %v520 = vpop.f32.mrb[0].mxu0
        %v521 = vadd.f32 0.0, %v520
        %v522 = vpop.f32.mrb[0].mxu0
        %523 = vmatprep.mubr.bf16.mxu0 0
        %524 = vmatmul.mubr.bf16.gmra.mrb[0].mxu0 %v458
        %v525 = vpop.f32.mrb[0].mxu0
        %v526 = vadd.f32 0.0, %v525
        %v527 = vpop.f32.mrb[0].mxu0
        %v528 = vpop.f32.mrb[0].mxu0
        %v529 = vadd.f32 0.0, %v528
        %v530 = vpop.f32.mrb[0].mxu0
        %531 = vmatprep.mubr.bf16.mxu0 0
        %532 = vmatmul.mubr.bf16.gmra.mrb[0].mxu0 %v461
        %v533 = vpop.f32.mrb[0].mxu0
        %v534 = vadd.f32 0.0, %v533
        %v535 = vpop.f32.mrb[0].mxu0
        %v536 = vpop.f32.mrb[0].mxu0
        %v537 = vadd.f32 0.0, %v536
        %v538 = vpop.f32.mrb[0].mxu0
        %539 = vmatprep.mubr.bf16.mxu0 0
        %540 = vmatmul.mubr.bf16.gmra.mrb[0].mxu0 %v464
        %v541 = vpop.f32.mrb[0].mxu0
        %v542 = vadd.f32 0.0, %v541
        %v543 = vpop.f32.mrb[0].mxu0
        %v544 = vpop.f32.mrb[0].mxu0
        %v545 = vadd.f32 0.0, %v544
        %v546 = vpop.f32.mrb[0].mxu0
        %547 = vmatprep.mubr.bf16.mxu0 0
        %548 = vmatmul.mubr.bf16.gmra.mrb[0].mxu0 %v467
        %v549 = vpop.f32.mrb[0].mxu0
        %v550 = vadd.f32 0.0, %v549
        %v551 = vpop.f32.mrb[0].mxu0
        %v552 = vpop.f32.mrb[0].mxu0
        %v553 = vadd.f32 0.0, %v552
        %v554 = vpop.f32.mrb[0].mxu0
        %555 = vmatprep.mubr.bf16.mxu0 0
        %556 = vmatmul.mubr.bf16.gmra.mrb[0].mxu0 %v470
        %v557 = vpop.f32.mrb[0].mxu0
        %v558 = vadd.f32 0.0, %v557
        %v559 = vpop.f32.mrb[0].mxu0
        %v560 = vpop.f32.mrb[0].mxu0
        %v561 = vadd.f32 0.0, %v560
        %v562 = vpop.f32.mrb[0].mxu0
        %563 = vmatprep.mubr.bf16.mxu0 0
        %564 = vmatmul.mubr.bf16.gmra.mrb[0].mxu0 %v473
        %v565 = vpop.f32.mrb[0].mxu0
        %v566 = vadd.f32 0.0, %v565
        %v567 = vpop.f32.mrb[0].mxu0
        %v568 = vpop.f32.mrb[0].mxu0
        %v569 = vadd.f32 0.0, %v568
        %v570 = vpop.f32.mrb[0].mxu0
        %571 = vdwg.mxu0
        %v572 = vpack.c.bf16 %v513, %v510
        %v573 = vpack.c.bf16 %v521, %v518
        %v574 = vpack.c.bf16 %v529, %v526
        %v575 = vpack.c.bf16 %v537, %v534
        %v576 = vpack.c.bf16 %v545, %v542
        %v577 = vpack.c.bf16 %v553, %v550
        %v578 = vpack.c.bf16 %v561, %v558
        %v579 = vpack.c.bf16 %v569, %v566
        %s580 = scalar_lea.vmem %s321, 16 [#allocation3]
        %v581 = vld [vmem:[%s580] sm:$0xf]
        %v582 = vld [vmem:[%s580 + $0x4] sm:$0xf]
        %v583 = vld [vmem:[%s580 + $0x8] sm:$0xf]
        %v584 = vld [vmem:[%s580 + $0xc] sm:$0xf]
        %v589 = vunpack.c.l.b16 %v581
        %v590 = vunpack.c.l.b16 %v582
        %v591 = vunpack.c.l.b16 %v583
        %v592 = vunpack.c.l.b16 %v584
        %v593 = vpack.c.b16 %v590, %v589
        %v594 = vpack.c.b16 %v592, %v591
        %597 = vmatprep.subr.bf16.mxu0 0
        %598 = vmatpush1.bf16.msra.mxu0 %v593
        %599 = vmatprep.subr.bf16.mxu0 0
        %600 = vmatpush1.bf16.msra.mxu0 %v594
        %601 = vmatprep.subr.bf16.mxu0 0
        %602 = vmatpush1.bf16.msra.mxu0 0
        %603 = vmatprep.subr.bf16.mxu0 0
        %604 = vmatpush1.bf16.msra.mxu0 0
        %605 = vmatprep.subr.bf16.mxu0 0
        %606 = vmatpush1.bf16.msra.mxu0 0
        %607 = vmatprep.subr.bf16.mxu0 0
        %608 = vmatpush1.bf16.msra.mxu0 0
        %609 = vmatprep.subr.bf16.mxu0 0
        %610 = vmatpush1.bf16.msra.mxu0 0
        %611 = vmatprep.subr.bf16.mxu0 0
        %612 = vmatpush1.bf16.msra.mxu0 0
        %613 = vmatprep.subr.bf16.mxu0 0
        %614 = vmatpush1.bf16.msra.mxu0 0
        %615 = vmatprep.subr.bf16.mxu0 0
        %616 = vmatpush1.bf16.msra.mxu0 0
        %617 = vmatprep.subr.bf16.mxu0 0
        %618 = vmatpush1.bf16.msra.mxu0 0
        %619 = vmatprep.subr.bf16.mxu0 0
        %620 = vmatpush1.bf16.msra.mxu0 0
        %621 = vmatprep.subr.bf16.mxu0 0
        %622 = vmatpush1.bf16.msra.mxu0 0
        %623 = vmatprep.subr.bf16.mxu0 0
        %624 = vmatpush1.bf16.msra.mxu0 0
        %625 = vmatprep.subr.bf16.mxu0 0
        %626 = vmatpush1.bf16.msra.mxu0 0
        %627 = vmatprep.subr.bf16.mxu0 0
        %628 = vmatpush1.bf16.msra.mxu0 0
        %629 = vmatprep.mubr.bf16.mxu0 0
        %630 = vmatmul.mubr.bf16.gmra.mrb[0].mxu0 %v452
        %v631 = vpop.f32.mrb[0].mxu0
        %v632 = vadd.f32 0.0, %v631
        %v633 = vpop.f32.mrb[0].mxu0
        %v634 = vpop.f32.mrb[0].mxu0
        %v635 = vadd.f32 0.0, %v634
        %v636 = vpop.f32.mrb[0].mxu0
        %637 = vmatprep.mubr.bf16.mxu0 0
        %638 = vmatmul.mubr.bf16.gmra.mrb[0].mxu0 %v455
        %v639 = vpop.f32.mrb[0].mxu0
        %v640 = vadd.f32 0.0, %v639
        %v641 = vpop.f32.mrb[0].mxu0
        %v642 = vpop.f32.mrb[0].mxu0
        %v643 = vadd.f32 0.0, %v642
        %v644 = vpop.f32.mrb[0].mxu0
        %645 = vmatprep.mubr.bf16.mxu0 0
        %646 = vmatmul.mubr.bf16.gmra.mrb[0].mxu0 %v458
        %v647 = vpop.f32.mrb[0].mxu0
        %v648 = vadd.f32 0.0, %v647
        %v649 = vpop.f32.mrb[0].mxu0
        %v650 = vpop.f32.mrb[0].mxu0
        %v651 = vadd.f32 0.0, %v650
        %v652 = vpop.f32.mrb[0].mxu0
        %653 = vmatprep.mubr.bf16.mxu0 0
        %654 = vmatmul.mubr.bf16.gmra.mrb[0].mxu0 %v461
        %v655 = vpop.f32.mrb[0].mxu0
        %v656 = vadd.f32 0.0, %v655
        %v657 = vpop.f32.mrb[0].mxu0
        %v658 = vpop.f32.mrb[0].mxu0
        %v659 = vadd.f32 0.0, %v658
        %v660 = vpop.f32.mrb[0].mxu0
        %661 = vmatprep.mubr.bf16.mxu0 0
        %662 = vmatmul.mubr.bf16.gmra.mrb[0].mxu0 %v464
        %v663 = vpop.f32.mrb[0].mxu0
        %v664 = vadd.f32 0.0, %v663
        %v665 = vpop.f32.mrb[0].mxu0
        %v666 = vpop.f32.mrb[0].mxu0
        %v667 = vadd.f32 0.0, %v666
        %v668 = vpop.f32.mrb[0].mxu0
        %669 = vmatprep.mubr.bf16.mxu0 0
        %670 = vmatmul.mubr.bf16.gmra.mrb[0].mxu0 %v467
        %v671 = vpop.f32.mrb[0].mxu0
        %v672 = vadd.f32 0.0, %v671
        %v673 = vpop.f32.mrb[0].mxu0
        %v674 = vpop.f32.mrb[0].mxu0
        %v675 = vadd.f32 0.0, %v674
        %v676 = vpop.f32.mrb[0].mxu0
        %677 = vmatprep.mubr.bf16.mxu0 0
        %678 = vmatmul.mubr.bf16.gmra.mrb[0].mxu0 %v470
        %v679 = vpop.f32.mrb[0].mxu0
        %v680 = vadd.f32 0.0, %v679
        %v681 = vpop.f32.mrb[0].mxu0
        %v682 = vpop.f32.mrb[0].mxu0
        %v683 = vadd.f32 0.0, %v682
        %v684 = vpop.f32.mrb[0].mxu0
        %685 = vmatprep.mubr.bf16.mxu0 0
        %686 = vmatmul.mubr.bf16.gmra.mrb[0].mxu0 %v473
        %v687 = vpop.f32.mrb[0].mxu0
        %v688 = vadd.f32 0.0, %v687
        %v689 = vpop.f32.mrb[0].mxu0
        %v690 = vpop.f32.mrb[0].mxu0
        %v691 = vadd.f32 0.0, %v690
        %v692 = vpop.f32.mrb[0].mxu0
        %693 = vdwg.mxu0
        %v694 = vpack.c.bf16 %v635, %v632
        %v695 = vpack.c.bf16 %v643, %v640
        %v696 = vpack.c.bf16 %v651, %v648
        %v697 = vpack.c.bf16 %v659, %v656
        %v698 = vpack.c.bf16 %v667, %v664
        %v699 = vpack.c.bf16 %v675, %v672
        %v700 = vpack.c.bf16 %v683, %v680
        %v701 = vpack.c.bf16 %v691, %v688
        %s702 = scalar_lea.vmem %s321, 32 [#allocation3]
        %v703 = vld [vmem:[%s702] sm:$0xf]
        %v704 = vld [vmem:[%s702 + $0x4] sm:$0xf]
        %v705 = vld [vmem:[%s702 + $0x8] sm:$0xf]
        %v706 = vld [vmem:[%s702 + $0xc] sm:$0xf]
        %v711 = vunpack.c.l.b16 %v703
        %v712 = vunpack.c.l.b16 %v704
        %v713 = vunpack.c.l.b16 %v705
        %v714 = vunpack.c.l.b16 %v706
        %v715 = vpack.c.b16 %v712, %v711
        %v716 = vpack.c.b16 %v714, %v713
        %719 = vmatprep.subr.bf16.mxu0 0
        %720 = vmatpush1.bf16.msra.mxu0 %v715
        %721 = vmatprep.subr.bf16.mxu0 0
        %722 = vmatpush1.bf16.msra.mxu0 %v716
        %723 = vmatprep.subr.bf16.mxu0 0
        %724 = vmatpush1.bf16.msra.mxu0 0
        %725 = vmatprep.subr.bf16.mxu0 0
        %726 = vmatpush1.bf16.msra.mxu0 0
        %727 = vmatprep.subr.bf16.mxu0 0
        %728 = vmatpush1.bf16.msra.mxu0 0
        %729 = vmatprep.subr.bf16.mxu0 0
        %730 = vmatpush1.bf16.msra.mxu0 0
        %731 = vmatprep.subr.bf16.mxu0 0
        %732 = vmatpush1.bf16.msra.mxu0 0
        %733 = vmatprep.subr.bf16.mxu0 0
        %734 = vmatpush1.bf16.msra.mxu0 0
        %735 = vmatprep.subr.bf16.mxu0 0
        %736 = vmatpush1.bf16.msra.mxu0 0
        %737 = vmatprep.subr.bf16.mxu0 0
        %738 = vmatpush1.bf16.msra.mxu0 0
        %739 = vmatprep.subr.bf16.mxu0 0
        %740 = vmatpush1.bf16.msra.mxu0 0
        %741 = vmatprep.subr.bf16.mxu0 0
        %742 = vmatpush1.bf16.msra.mxu0 0
        %743 = vmatprep.subr.bf16.mxu0 0
        %744 = vmatpush1.bf16.msra.mxu0 0
        %745 = vmatprep.subr.bf16.mxu0 0
        %746 = vmatpush1.bf16.msra.mxu0 0
        %747 = vmatprep.subr.bf16.mxu0 0
        %748 = vmatpush1.bf16.msra.mxu0 0
        %749 = vmatprep.subr.bf16.mxu0 0
        %750 = vmatpush1.bf16.msra.mxu0 0
        %751 = vmatprep.mubr.bf16.mxu0 0
        %752 = vmatmul.mubr.bf16.gmra.mrb[0].mxu0 %v452
        %v753 = vpop.f32.mrb[0].mxu0
        %v754 = vadd.f32 0.0, %v753
        %v755 = vpop.f32.mrb[0].mxu0
        %v756 = vpop.f32.mrb[0].mxu0
        %v757 = vadd.f32 0.0, %v756
        %v758 = vpop.f32.mrb[0].mxu0
        %759 = vmatprep.mubr.bf16.mxu0 0
        %760 = vmatmul.mubr.bf16.gmra.mrb[0].mxu0 %v455
        %v761 = vpop.f32.mrb[0].mxu0
        %v762 = vadd.f32 0.0, %v761
        %v763 = vpop.f32.mrb[0].mxu0
        %v764 = vpop.f32.mrb[0].mxu0
        %v765 = vadd.f32 0.0, %v764
        %v766 = vpop.f32.mrb[0].mxu0
        %767 = vmatprep.mubr.bf16.mxu0 0
        %768 = vmatmul.mubr.bf16.gmra.mrb[0].mxu0 %v458
        %v769 = vpop.f32.mrb[0].mxu0
        %v770 = vadd.f32 0.0, %v769
        %v771 = vpop.f32.mrb[0].mxu0
        %v772 = vpop.f32.mrb[0].mxu0
        %v773 = vadd.f32 0.0, %v772
        %v774 = vpop.f32.mrb[0].mxu0
        %775 = vmatprep.mubr.bf16.mxu0 0
        %776 = vmatmul.mubr.bf16.gmra.mrb[0].mxu0 %v461
        %v777 = vpop.f32.mrb[0].mxu0
        %v778 = vadd.f32 0.0, %v777
        %v779 = vpop.f32.mrb[0].mxu0
        %v780 = vpop.f32.mrb[0].mxu0
        %v781 = vadd.f32 0.0, %v780
        %v782 = vpop.f32.mrb[0].mxu0
        %783 = vmatprep.mubr.bf16.mxu0 0
        %784 = vmatmul.mubr.bf16.gmra.mrb[0].mxu0 %v464
        %v785 = vpop.f32.mrb[0].mxu0
        %v786 = vadd.f32 0.0, %v785
        %v787 = vpop.f32.mrb[0].mxu0
        %v788 = vpop.f32.mrb[0].mxu0
        %v789 = vadd.f32 0.0, %v788
        %v790 = vpop.f32.mrb[0].mxu0
        %791 = vmatprep.mubr.bf16.mxu0 0
        %792 = vmatmul.mubr.bf16.gmra.mrb[0].mxu0 %v467
        %v793 = vpop.f32.mrb[0].mxu0
        %v794 = vadd.f32 0.0, %v793
        %v795 = vpop.f32.mrb[0].mxu0
        %v796 = vpop.f32.mrb[0].mxu0
        %v797 = vadd.f32 0.0, %v796
        %v798 = vpop.f32.mrb[0].mxu0
        %799 = vmatprep.mubr.bf16.mxu0 0
        %800 = vmatmul.mubr.bf16.gmra.mrb[0].mxu0 %v470
        %v801 = vpop.f32.mrb[0].mxu0
        %v802 = vadd.f32 0.0, %v801
        %v803 = vpop.f32.mrb[0].mxu0
        %v804 = vpop.f32.mrb[0].mxu0
        %v805 = vadd.f32 0.0, %v804
        %v806 = vpop.f32.mrb[0].mxu0
        %807 = vmatprep.mubr.bf16.mxu0 0
        %808 = vmatmul.mubr.bf16.gmra.mrb[0].mxu0 %v473
        %v809 = vpop.f32.mrb[0].mxu0
        %v810 = vadd.f32 0.0, %v809
        %v811 = vpop.f32.mrb[0].mxu0
        %v812 = vpop.f32.mrb[0].mxu0
        %v813 = vadd.f32 0.0, %v812
        %v814 = vpop.f32.mrb[0].mxu0
        %815 = vdwg.mxu0
        %v816 = vpack.c.bf16 %v757, %v754
        %v817 = vpack.c.bf16 %v765, %v762
        %v818 = vpack.c.bf16 %v773, %v770
        %v819 = vpack.c.bf16 %v781, %v778
        %v820 = vpack.c.bf16 %v789, %v786
        %v821 = vpack.c.bf16 %v797, %v794
        %v822 = vpack.c.bf16 %v805, %v802
        %v823 = vpack.c.bf16 %v813, %v810
        %v824 = vlaneseq
        %v825 = vand.u32 %v824, 127
        %vm826 = vcmp.lt.s32.totalorder %v825, 8
        %vm827 = vcmask 31744
        %v829 = vsel %vm827, %v572, 0
        %v832 = vsel %vm827, %v573, 0
        %v835 = vsel %vm827, %v574, 0
        %v838 = vsel %vm827, %v575, 0
        %v841 = vsel %vm827, %v576, 0
        %v844 = vsel %vm827, %v577, 0
        %v847 = vsel %vm827, %v578, 0
        %v850 = vsel %vm827, %v579, 0
        %v853 = vsel %vm827, %v694, 0
        %v856 = vsel %vm827, %v695, 0
        %v859 = vsel %vm827, %v696, 0
        %v862 = vsel %vm827, %v697, 0
        %v865 = vsel %vm827, %v698, 0
        %v868 = vsel %vm827, %v699, 0
        %v871 = vsel %vm827, %v700, 0
        %v874 = vsel %vm827, %v701, 0
        %876 = vmatprep.subr.bf16.mxu0 0
        %877 = vmatpush1.bf16.xpose.msra.mxu0 %v853
        %878 = vmatprep.subr.bf16.mxu0 0
        %879 = vmatpush1.bf16.xpose.msra.mxu0 %v856
        %880 = vmatprep.subr.bf16.mxu0 0
        %881 = vmatpush1.bf16.xpose.msra.mxu0 %v859
        %882 = vmatprep.subr.bf16.mxu0 0
        %883 = vmatpush1.bf16.xpose.msra.mxu0 %v862
        %884 = vmatprep.subr.bf16.mxu0 0
        %885 = vmatpush1.bf16.xpose.msra.mxu0 %v865
        %886 = vmatprep.subr.bf16.mxu0 0
        %887 = vmatpush1.bf16.xpose.msra.mxu0 %v868
        %888 = vmatprep.subr.bf16.mxu0 0
        %889 = vmatpush1.bf16.xpose.msra.mxu0 %v871
        %890 = vmatprep.subr.bf16.mxu0 0
        %891 = vmatpush1.bf16.xpose.msra.mxu0 %v874
        %892 = vmatprep.subr.bf16.mxu0 0
        %893 = vmatpush1.bf16.xpose.msra.mxu0 0
        %894 = vmatprep.subr.bf16.mxu0 0
        %895 = vmatpush1.bf16.xpose.msra.mxu0 0
        %896 = vmatprep.subr.bf16.mxu0 0
        %897 = vmatpush1.bf16.xpose.msra.mxu0 0
        %898 = vmatprep.subr.bf16.mxu0 0
        %899 = vmatpush1.bf16.xpose.msra.mxu0 0
        %900 = vmatprep.subr.bf16.mxu0 0
        %901 = vmatpush1.bf16.xpose.msra.mxu0 0
        %902 = vmatprep.subr.bf16.mxu0 0
        %903 = vmatpush1.bf16.xpose.msra.mxu0 0
        %904 = vmatprep.subr.bf16.mxu0 0
        %905 = vmatpush1.bf16.xpose.msra.mxu0 0
        %906 = vmatprep.subr.bf16.mxu0 0
        %907 = vmatpush1.bf16.xpose.msra.mxu0 0
        %908 = vmatprep.mubr.bf16.mxu0 0
        %909 = vmatmul.mubr.bf16.gmra.mrb[0].mxu0 %v829
        %v910 = vpop.f32.mrb[0].mxu0
        %v911 = vadd.f32 0.0, %v910
        %v912 = vpop.f32.mrb[0].mxu0
        %v913 = vpop.f32.mrb[0].mxu0
        %v914 = vadd.f32 0.0, %v913
        %v915 = vpop.f32.mrb[0].mxu0
        %916 = vmatprep.mubr.bf16.mxu0 0
        %917 = vmatmul.mubr.bf16.gmra.mrb[0].mxu0 %v832
        %v918 = vpop.f32.mrb[0].mxu0
        %v919 = vadd.f32 0.0, %v918
        %v920 = vpop.f32.mrb[0].mxu0
        %v921 = vpop.f32.mrb[0].mxu0
        %v922 = vadd.f32 0.0, %v921
        %v923 = vpop.f32.mrb[0].mxu0
        %924 = vmatprep.mubr.bf16.mxu0 0
        %925 = vmatmul.mubr.bf16.gmra.mrb[0].mxu0 %v835
        %v926 = vpop.f32.mrb[0].mxu0
        %v927 = vadd.f32 0.0, %v926
        %v928 = vpop.f32.mrb[0].mxu0
        %v929 = vpop.f32.mrb[0].mxu0
        %v930 = vadd.f32 0.0, %v929
        %v931 = vpop.f32.mrb[0].mxu0
        %932 = vmatprep.mubr.bf16.mxu0 0
        %933 = vmatmul.mubr.bf16.gmra.mrb[0].mxu0 %v838
        %v934 = vpop.f32.mrb[0].mxu0
        %v935 = vadd.f32 0.0, %v934
        %v936 = vpop.f32.mrb[0].mxu0
        %v937 = vpop.f32.mrb[0].mxu0
        %v938 = vadd.f32 0.0, %v937
        %v939 = vpop.f32.mrb[0].mxu0
        %940 = vmatprep.mubr.bf16.mxu0 0
        %941 = vmatmul.mubr.bf16.gmra.mrb[0].mxu0 %v841
        %v942 = vpop.f32.mrb[0].mxu0
        %v943 = vadd.f32 0.0, %v942
        %v944 = vpop.f32.mrb[0].mxu0
        %v945 = vpop.f32.mrb[0].mxu0
        %v946 = vadd.f32 0.0, %v945
        %v947 = vpop.f32.mrb[0].mxu0
        %948 = vmatprep.mubr.bf16.mxu0 0
        %949 = vmatmul.mubr.bf16.gmra.mrb[0].mxu0 %v844
        %v950 = vpop.f32.mrb[0].mxu0
        %v951 = vadd.f32 0.0, %v950
        %v952 = vpop.f32.mrb[0].mxu0
        %v953 = vpop.f32.mrb[0].mxu0
        %v954 = vadd.f32 0.0, %v953
        %v955 = vpop.f32.mrb[0].mxu0
        %956 = vmatprep.mubr.bf16.mxu0 0
        %957 = vmatmul.mubr.bf16.gmra.mrb[0].mxu0 %v847
        %v958 = vpop.f32.mrb[0].mxu0
        %v959 = vadd.f32 0.0, %v958
        %v960 = vpop.f32.mrb[0].mxu0
        %v961 = vpop.f32.mrb[0].mxu0
        %v962 = vadd.f32 0.0, %v961
        %v963 = vpop.f32.mrb[0].mxu0
        %964 = vmatprep.mubr.bf16.mxu0 0
        %965 = vmatmul.mubr.bf16.gmra.mrb[0].mxu0 %v850
        %v966 = vpop.f32.mrb[0].mxu0
        %v967 = vadd.f32 0.0, %v966
        %v968 = vpop.f32.mrb[0].mxu0
        %v969 = vpop.f32.mrb[0].mxu0
        %v970 = vadd.f32 0.0, %v969
        %v971 = vpop.f32.mrb[0].mxu0
        %972 = vdwg.mxu0
        %v973 = vsel %vm826, %v911, -1e+30
        %v974 = vsel %vm826, %v914, -1e+30
        %v975 = vsel %vm826, %v919, -1e+30
        %v976 = vsel %vm826, %v922, -1e+30
        %v977 = vsel %vm826, %v927, -1e+30
        %v978 = vsel %vm826, %v930, -1e+30
        %v979 = vsel %vm826, %v935, -1e+30
        %v980 = vsel %vm826, %v938, -1e+30
        %v981 = vsel %vm826, %v943, -1e+30
        %v982 = vsel %vm826, %v946, -1e+30
        %v983 = vsel %vm826, %v951, -1e+30
        %v984 = vsel %vm826, %v954, -1e+30
        %v985 = vsel %vm826, %v959, -1e+30
        %v986 = vsel %vm826, %v962, -1e+30
        %v987 = vsel %vm826, %v967, -1e+30
        %v988 = vsel %vm826, %v970, -1e+30
        %989 = vmax.xlane.f32.xlu0 %v973
        %v990 = vpop.xlane.xlu0 %989
        %991 = vmax.xlane.f32.xlu0 %v974
        %v992 = vpop.xlane.xlu0 %991
        %993 = vmax.xlane.f32.xlu0 %v975
        %v994 = vpop.xlane.xlu0 %993
        %995 = vmax.xlane.f32.xlu0 %v976
        %v996 = vpop.xlane.xlu0 %995
        %997 = vmax.xlane.f32.xlu0 %v977
        %v998 = vpop.xlane.xlu0 %997
        %999 = vmax.xlane.f32.xlu0 %v978
        %v1000 = vpop.xlane.xlu0 %999
        %1001 = vmax.xlane.f32.xlu0 %v979
        %v1002 = vpop.xlane.xlu0 %1001
        %1003 = vmax.xlane.f32.xlu0 %v980
        %v1004 = vpop.xlane.xlu0 %1003
        %1005 = vmax.xlane.f32.xlu0 %v981
        %v1006 = vpop.xlane.xlu0 %1005
        %1007 = vmax.xlane.f32.xlu0 %v982
        %v1008 = vpop.xlane.xlu0 %1007
        %1009 = vmax.xlane.f32.xlu0 %v983
        %v1010 = vpop.xlane.xlu0 %1009
        %1011 = vmax.xlane.f32.xlu0 %v984
        %v1012 = vpop.xlane.xlu0 %1011
        %1013 = vmax.xlane.f32.xlu0 %v985
        %v1014 = vpop.xlane.xlu0 %1013
        %1015 = vmax.xlane.f32.xlu0 %v986
        %v1016 = vpop.xlane.xlu0 %1015
        %1017 = vmax.xlane.f32.xlu0 %v987
        %v1018 = vpop.xlane.xlu0 %1017
        %1019 = vmax.xlane.f32.xlu0 %v988
        %v1020 = vpop.xlane.xlu0 %1019
        %v1021 = vsub.f32 %v973, %v990
        %v1022 = vsub.f32 %v974, %v992
        %v1023 = vsub.f32 %v975, %v994
        %v1024 = vsub.f32 %v976, %v996
        %v1025 = vsub.f32 %v977, %v998
        %v1026 = vsub.f32 %v978, %v1000
        %v1027 = vsub.f32 %v979, %v1002
        %v1028 = vsub.f32 %v980, %v1004
        %v1029 = vsub.f32 %v981, %v1006
        %v1030 = vsub.f32 %v982, %v1008
        %v1031 = vsub.f32 %v983, %v1010
        %v1032 = vsub.f32 %v984, %v1012
        %v1033 = vsub.f32 %v985, %v1014
        %v1034 = vsub.f32 %v986, %v1016
        %v1035 = vsub.f32 %v987, %v1018
        %v1036 = vsub.f32 %v988, %v1020
        %v1037 = vmul.f32 %v1021, 1.442695
        %v1038 = vpow.pop %v1037
        %v1039 = vmul.f32 %v1022, 1.442695
        %v1040 = vpow.pop %v1039
        %v1041 = vmul.f32 %v1023, 1.442695
        %v1042 = vpow.pop %v1041
        %v1043 = vmul.f32 %v1024, 1.442695
        %v1044 = vpow.pop %v1043
        %v1045 = vmul.f32 %v1025, 1.442695
        %v1046 = vpow.pop %v1045
        %v1047 = vmul.f32 %v1026, 1.442695
        %v1048 = vpow.pop %v1047
        %v1049 = vmul.f32 %v1027, 1.442695
        %v1050 = vpow.pop %v1049
        %v1051 = vmul.f32 %v1028, 1.442695
        %v1052 = vpow.pop %v1051
        %v1053 = vmul.f32 %v1029, 1.442695
        %v1054 = vpow.pop %v1053
        %v1055 = vmul.f32 %v1030, 1.442695
        %v1056 = vpow.pop %v1055
        %v1057 = vmul.f32 %v1031, 1.442695
        %v1058 = vpow.pop %v1057
        %v1059 = vmul.f32 %v1032, 1.442695
        %v1060 = vpow.pop %v1059
        %v1061 = vmul.f32 %v1033, 1.442695
        %v1062 = vpow.pop %v1061
        %v1063 = vmul.f32 %v1034, 1.442695
        %v1064 = vpow.pop %v1063
        %v1065 = vmul.f32 %v1035, 1.442695
        %v1066 = vpow.pop %v1065
        %v1067 = vmul.f32 %v1036, 1.442695
        %v1068 = vpow.pop %v1067
        %1069 = vadd.xlane.f32.xlu0 %v1038
        %v1070 = vpop.xlane.xlu0 %1069
        %1071 = vadd.xlane.f32.xlu0 %v1040
        %v1072 = vpop.xlane.xlu0 %1071
        %1073 = vadd.xlane.f32.xlu0 %v1042
        %v1074 = vpop.xlane.xlu0 %1073
        %1075 = vadd.xlane.f32.xlu0 %v1044
        %v1076 = vpop.xlane.xlu0 %1075
        %1077 = vadd.xlane.f32.xlu0 %v1046
        %v1078 = vpop.xlane.xlu0 %1077
        %1079 = vadd.xlane.f32.xlu0 %v1048
        %v1080 = vpop.xlane.xlu0 %1079
        %1081 = vadd.xlane.f32.xlu0 %v1050
        %v1082 = vpop.xlane.xlu0 %1081
        %1083 = vadd.xlane.f32.xlu0 %v1052
        %v1084 = vpop.xlane.xlu0 %1083
        %1085 = vadd.xlane.f32.xlu0 %v1054
        %v1086 = vpop.xlane.xlu0 %1085
        %1087 = vadd.xlane.f32.xlu0 %v1056
        %v1088 = vpop.xlane.xlu0 %1087
        %1089 = vadd.xlane.f32.xlu0 %v1058
        %v1090 = vpop.xlane.xlu0 %1089
        %1091 = vadd.xlane.f32.xlu0 %v1060
        %v1092 = vpop.xlane.xlu0 %1091
        %1093 = vadd.xlane.f32.xlu0 %v1062
        %v1094 = vpop.xlane.xlu0 %1093
        %1095 = vadd.xlane.f32.xlu0 %v1064
        %v1096 = vpop.xlane.xlu0 %1095
        %1097 = vadd.xlane.f32.xlu0 %v1066
        %v1098 = vpop.xlane.xlu0 %1097
        %1099 = vadd.xlane.f32.xlu0 %v1068
        %v1100 = vpop.xlane.xlu0 %1099
        %v1101 = vrcp.pop %v1070
        %v1102 = vrcp.pop %v1072
        %v1103 = vrcp.pop %v1074
        %v1104 = vrcp.pop %v1076
        %v1105 = vrcp.pop %v1078
        %v1106 = vrcp.pop %v1080
        %v1107 = vrcp.pop %v1082
        %v1108 = vrcp.pop %v1084
        %v1109 = vrcp.pop %v1086
        %v1110 = vrcp.pop %v1088
        %v1111 = vrcp.pop %v1090
        %v1112 = vrcp.pop %v1092
        %v1113 = vrcp.pop %v1094
        %v1114 = vrcp.pop %v1096
        %v1115 = vrcp.pop %v1098
        %v1116 = vrcp.pop %v1100
        %v1117 = vmul.f32 %v1038, %v1101
        %v1118 = vmul.f32 %v1040, %v1102
        %v1119 = vmul.f32 %v1042, %v1103
        %v1120 = vmul.f32 %v1044, %v1104
        %v1121 = vmul.f32 %v1046, %v1105
        %v1122 = vmul.f32 %v1048, %v1106
        %v1123 = vmul.f32 %v1050, %v1107
        %v1124 = vmul.f32 %v1052, %v1108
        %v1125 = vmul.f32 %v1054, %v1109
        %v1126 = vmul.f32 %v1056, %v1110
        %v1127 = vmul.f32 %v1058, %v1111
        %v1128 = vmul.f32 %v1060, %v1112
        %v1129 = vmul.f32 %v1062, %v1113
        %v1130 = vmul.f32 %v1064, %v1114
        %v1131 = vmul.f32 %v1066, %v1115
        %v1132 = vmul.f32 %v1068, %v1116
        %1133 = vst [vmem:[%s360] sm:$0xff] %v1117
        %1134 = vst [vmem:[%s360 + $0x8] sm:$0xff] %v1118
        %1135 = vst [vmem:[%s360 + $0x10] sm:$0xff] %v1119
        %1136 = vst [vmem:[%s360 + $0x18] sm:$0xff] %v1120
        %1137 = vst [vmem:[%s360 + $0x20] sm:$0xff] %v1121
        %1138 = vst [vmem:[%s360 + $0x28] sm:$0xff] %v1122
        %1139 = vst [vmem:[%s360 + $0x30] sm:$0xff] %v1123
        %1140 = vst [vmem:[%s360 + $0x38] sm:$0xff] %v1124
        %1141 = vst [vmem:[%s360 + $0x40] sm:$0xff] %v1125
        %1142 = vst [vmem:[%s360 + $0x48] sm:$0xff] %v1126
        %1143 = vst [vmem:[%s360 + $0x50] sm:$0xff] %v1127
        %1144 = vst [vmem:[%s360 + $0x58] sm:$0xff] %v1128
        %1145 = vst [vmem:[%s360 + $0x60] sm:$0xff] %v1129
        %1146 = vst [vmem:[%s360 + $0x68] sm:$0xff] %v1130
        %1147 = vst [vmem:[%s360 + $0x70] sm:$0xff] %v1131
        %1148 = vst [vmem:[%s360 + $0x78] sm:$0xff] %v1132
        %v1149 = vpack.c.bf16 %v1118, %v1117
        %v1150 = vpack.c.bf16 %v1120, %v1119
        %v1151 = vpack.c.bf16 %v1122, %v1121
        %v1152 = vpack.c.bf16 %v1124, %v1123
        %v1153 = vpack.c.bf16 %v1126, %v1125
        %v1154 = vpack.c.bf16 %v1128, %v1127
        %v1155 = vpack.c.bf16 %v1130, %v1129
        %v1156 = vpack.c.bf16 %v1132, %v1131
        %1157 = vmatprep.subr.bf16.mxu0 0
        %1158 = vmatpush1.bf16.msra.mxu0 %v816
        %1159 = vmatprep.subr.bf16.mxu0 0
        %1160 = vmatpush1.bf16.msra.mxu0 %v817
        %1161 = vmatprep.subr.bf16.mxu0 0
        %1162 = vmatpush1.bf16.msra.mxu0 %v818
        %1163 = vmatprep.subr.bf16.mxu0 0
        %1164 = vmatpush1.bf16.msra.mxu0 %v819
        %1165 = vmatprep.subr.bf16.mxu0 0
        %1166 = vmatpush1.bf16.msra.mxu0 %v820
        %1167 = vmatprep.subr.bf16.mxu0 0
        %1168 = vmatpush1.bf16.msra.mxu0 %v821
        %1169 = vmatprep.subr.bf16.mxu0 0
        %1170 = vmatpush1.bf16.msra.mxu0 %v822
        %1171 = vmatprep.subr.bf16.mxu0 0
        %1172 = vmatpush1.bf16.msra.mxu0 %v823
        %1173 = vmatprep.subr.bf16.mxu0 0
        %1174 = vmatpush1.bf16.msra.mxu0 0
        %1175 = vmatprep.subr.bf16.mxu0 0
        %1176 = vmatpush1.bf16.msra.mxu0 0
        %1177 = vmatprep.subr.bf16.mxu0 0
        %1178 = vmatpush1.bf16.msra.mxu0 0
        %1179 = vmatprep.subr.bf16.mxu0 0
        %1180 = vmatpush1.bf16.msra.mxu0 0
        %1181 = vmatprep.subr.bf16.mxu0 0
        %1182 = vmatpush1.bf16.msra.mxu0 0
        %1183 = vmatprep.subr.bf16.mxu0 0
        %1184 = vmatpush1.bf16.msra.mxu0 0
        %1185 = vmatprep.subr.bf16.mxu0 0
        %1186 = vmatpush1.bf16.msra.mxu0 0
        %1187 = vmatprep.subr.bf16.mxu0 0
        %1188 = vmatpush1.bf16.msra.mxu0 0
        %1189 = vmatprep.mubr.bf16.mxu0 0
        %1190 = vmatmul.mubr.bf16.gmra.mrb[0].mxu0 %v1149
        %v1191 = vpop.f32.mrb[0].mxu0
        %v1192 = vadd.f32 0.0, %v1191
        %v1193 = vpop.f32.mrb[0].mxu0
        %v1194 = vpop.f32.mrb[0].mxu0
        %v1195 = vadd.f32 0.0, %v1194
        %v1196 = vpop.f32.mrb[0].mxu0
        %1197 = vmatprep.mubr.bf16.mxu0 0
        %1198 = vmatmul.mubr.bf16.gmra.mrb[0].mxu0 %v1150
        %v1199 = vpop.f32.mrb[0].mxu0
        %v1200 = vadd.f32 0.0, %v1199
        %v1201 = vpop.f32.mrb[0].mxu0
        %v1202 = vpop.f32.mrb[0].mxu0
        %v1203 = vadd.f32 0.0, %v1202
        %v1204 = vpop.f32.mrb[0].mxu0
        %1205 = vmatprep.mubr.bf16.mxu0 0
        %1206 = vmatmul.mubr.bf16.gmra.mrb[0].mxu0 %v1151
        %v1207 = vpop.f32.mrb[0].mxu0
        %v1208 = vadd.f32 0.0, %v1207
        %v1209 = vpop.f32.mrb[0].mxu0
        %v1210 = vpop.f32.mrb[0].mxu0
        %v1211 = vadd.f32 0.0, %v1210
        %v1212 = vpop.f32.mrb[0].mxu0
        %1213 = vmatprep.mubr.bf16.mxu0 0
        %1214 = vmatmul.mubr.bf16.gmra.mrb[0].mxu0 %v1152
        %v1215 = vpop.f32.mrb[0].mxu0
        %v1216 = vadd.f32 0.0, %v1215
        %v1217 = vpop.f32.mrb[0].mxu0
        %v1218 = vpop.f32.mrb[0].mxu0
        %v1219 = vadd.f32 0.0, %v1218
        %v1220 = vpop.f32.mrb[0].mxu0
        %1221 = vmatprep.mubr.bf16.mxu0 0
        %1222 = vmatmul.mubr.bf16.gmra.mrb[0].mxu0 %v1153
        %v1223 = vpop.f32.mrb[0].mxu0
        %v1224 = vadd.f32 0.0, %v1223
        %v1225 = vpop.f32.mrb[0].mxu0
        %v1226 = vpop.f32.mrb[0].mxu0
        %v1227 = vadd.f32 0.0, %v1226
        %v1228 = vpop.f32.mrb[0].mxu0
        %1229 = vmatprep.mubr.bf16.mxu0 0
        %1230 = vmatmul.mubr.bf16.gmra.mrb[0].mxu0 %v1154
        %v1231 = vpop.f32.mrb[0].mxu0
        %v1232 = vadd.f32 0.0, %v1231
        %v1233 = vpop.f32.mrb[0].mxu0
        %v1234 = vpop.f32.mrb[0].mxu0
        %v1235 = vadd.f32 0.0, %v1234
        %v1236 = vpop.f32.mrb[0].mxu0
        %1237 = vmatprep.mubr.bf16.mxu0 0
        %1238 = vmatmul.mubr.bf16.gmra.mrb[0].mxu0 %v1155
        %v1239 = vpop.f32.mrb[0].mxu0
        %v1240 = vadd.f32 0.0, %v1239
        %v1241 = vpop.f32.mrb[0].mxu0
        %v1242 = vpop.f32.mrb[0].mxu0
        %v1243 = vadd.f32 0.0, %v1242
        %v1244 = vpop.f32.mrb[0].mxu0
        %1245 = vmatprep.mubr.bf16.mxu0 0
        %1246 = vmatmul.mubr.bf16.gmra.mrb[0].mxu0 %v1156
        %v1247 = vpop.f32.mrb[0].mxu0
        %v1248 = vadd.f32 0.0, %v1247
        %v1249 = vpop.f32.mrb[0].mxu0
        %v1250 = vpop.f32.mrb[0].mxu0
        %v1251 = vadd.f32 0.0, %v1250
        %v1252 = vpop.f32.mrb[0].mxu0
        %1253 = vdwg.mxu0
        %v1254 = vpack.c.bf16 %v1195, %v1192
        %v1255 = vpack.c.bf16 %v1203, %v1200
        %v1256 = vpack.c.bf16 %v1211, %v1208
        %v1257 = vpack.c.bf16 %v1219, %v1216
        %v1258 = vpack.c.bf16 %v1227, %v1224
        %v1259 = vpack.c.bf16 %v1235, %v1232
        %v1260 = vpack.c.bf16 %v1243, %v1240
        %v1261 = vpack.c.bf16 %v1251, %v1248
        %1270 = vrot.lane.b32.xlu0 %v572, 124
        %v1271 = vpop.permute.xlu0 %1270
        %1272 = vrot.lane.b32.xlu0 %v573, 124
        %v1273 = vpop.permute.xlu0 %1272
        %1274 = vrot.lane.b32.xlu0 %v574, 124
        %v1275 = vpop.permute.xlu0 %1274
        %1276 = vrot.lane.b32.xlu0 %v575, 124
        %v1277 = vpop.permute.xlu0 %1276
        %1278 = vrot.lane.b32.xlu0 %v576, 124
        %v1279 = vpop.permute.xlu0 %1278
        %1280 = vrot.lane.b32.xlu0 %v577, 124
        %v1281 = vpop.permute.xlu0 %1280
        %1282 = vrot.lane.b32.xlu0 %v578, 124
        %v1283 = vpop.permute.xlu0 %1282
        %1284 = vrot.lane.b32.xlu0 %v579, 124
        %v1285 = vpop.permute.xlu0 %1284
        %1294 = vrot.lane.b32.xlu0 %v694, 124
        %v1295 = vpop.permute.xlu0 %1294
        %1296 = vrot.lane.b32.xlu0 %v695, 124
        %v1297 = vpop.permute.xlu0 %1296
        %1298 = vrot.lane.b32.xlu0 %v696, 124
        %v1299 = vpop.permute.xlu0 %1298
        %1300 = vrot.lane.b32.xlu0 %v697, 124
        %v1301 = vpop.permute.xlu0 %1300
        %1302 = vrot.lane.b32.xlu0 %v698, 124
        %v1303 = vpop.permute.xlu0 %1302
        %1304 = vrot.lane.b32.xlu0 %v699, 124
        %v1305 = vpop.permute.xlu0 %1304
        %1306 = vrot.lane.b32.xlu0 %v700, 124
        %v1307 = vpop.permute.xlu0 %1306
        %1308 = vrot.lane.b32.xlu0 %v701, 124
        %v1309 = vpop.permute.xlu0 %1308
        %v1311 = vsel %vm827, %v1271, 0
        %v1314 = vsel %vm827, %v1273, 0
        %v1317 = vsel %vm827, %v1275, 0
        %v1320 = vsel %vm827, %v1277, 0
        %v1323 = vsel %vm827, %v1279, 0
        %v1326 = vsel %vm827, %v1281, 0
        %v1329 = vsel %vm827, %v1283, 0
        %v1332 = vsel %vm827, %v1285, 0
        %v1335 = vsel %vm827, %v1295, 0
        %v1338 = vsel %vm827, %v1297, 0
        %v1341 = vsel %vm827, %v1299, 0
        %v1344 = vsel %vm827, %v1301, 0
        %v1347 = vsel %vm827, %v1303, 0
        %v1350 = vsel %vm827, %v1305, 0
        %v1353 = vsel %vm827, %v1307, 0
        %v1356 = vsel %vm827, %v1309, 0
        %1358 = vmatprep.subr.bf16.mxu0 0
        %1359 = vmatpush1.bf16.xpose.msra.mxu0 %v1335
        %1360 = vmatprep.subr.bf16.mxu0 0
        %1361 = vmatpush1.bf16.xpose.msra.mxu0 %v1338
        %1362 = vmatprep.subr.bf16.mxu0 0
        %1363 = vmatpush1.bf16.xpose.msra.mxu0 %v1341
        %1364 = vmatprep.subr.bf16.mxu0 0
        %1365 = vmatpush1.bf16.xpose.msra.mxu0 %v1344
        %1366 = vmatprep.subr.bf16.mxu0 0
        %1367 = vmatpush1.bf16.xpose.msra.mxu0 %v1347
        %1368 = vmatprep.subr.bf16.mxu0 0
        %1369 = vmatpush1.bf16.xpose.msra.mxu0 %v1350
        %1370 = vmatprep.subr.bf16.mxu0 0
        %1371 = vmatpush1.bf16.xpose.msra.mxu0 %v1353
        %1372 = vmatprep.subr.bf16.mxu0 0
        %1373 = vmatpush1.bf16.xpose.msra.mxu0 %v1356
        %1374 = vmatprep.subr.bf16.mxu0 0
        %1375 = vmatpush1.bf16.xpose.msra.mxu0 0
        %1376 = vmatprep.subr.bf16.mxu0 0
        %1377 = vmatpush1.bf16.xpose.msra.mxu0 0
        %1378 = vmatprep.subr.bf16.mxu0 0
        %1379 = vmatpush1.bf16.xpose.msra.mxu0 0
        %1380 = vmatprep.subr.bf16.mxu0 0
        %1381 = vmatpush1.bf16.xpose.msra.mxu0 0
        %1382 = vmatprep.subr.bf16.mxu0 0
        %1383 = vmatpush1.bf16.xpose.msra.mxu0 0
        %1384 = vmatprep.subr.bf16.mxu0 0
        %1385 = vmatpush1.bf16.xpose.msra.mxu0 0
        %1386 = vmatprep.subr.bf16.mxu0 0
        %1387 = vmatpush1.bf16.xpose.msra.mxu0 0
        %1388 = vmatprep.subr.bf16.mxu0 0
        %1389 = vmatpush1.bf16.xpose.msra.mxu0 0
        %1390 = vmatprep.mubr.bf16.mxu0 0
        %1391 = vmatmul.mubr.bf16.gmra.mrb[0].mxu0 %v1311
        %v1392 = vpop.f32.mrb[0].mxu0
        %v1393 = vadd.f32 0.0, %v1392
        %v1394 = vpop.f32.mrb[0].mxu0
        %v1395 = vpop.f32.mrb[0].mxu0
        %v1396 = vadd.f32 0.0, %v1395
        %v1397 = vpop.f32.mrb[0].mxu0
        %1398 = vmatprep.mubr.bf16.mxu0 0
        %1399 = vmatmul.mubr.bf16.gmra.mrb[0].mxu0 %v1314
        %v1400 = vpop.f32.mrb[0].mxu0
        %v1401 = vadd.f32 0.0, %v1400
        %v1402 = vpop.f32.mrb[0].mxu0
        %v1403 = vpop.f32.mrb[0].mxu0
        %v1404 = vadd.f32 0.0, %v1403
        %v1405 = vpop.f32.mrb[0].mxu0
        %1406 = vmatprep.mubr.bf16.mxu0 0
        %1407 = vmatmul.mubr.bf16.gmra.mrb[0].mxu0 %v1317
        %v1408 = vpop.f32.mrb[0].mxu0
        %v1409 = vadd.f32 0.0, %v1408
        %v1410 = vpop.f32.mrb[0].mxu0
        %v1411 = vpop.f32.mrb[0].mxu0
        %v1412 = vadd.f32 0.0, %v1411
        %v1413 = vpop.f32.mrb[0].mxu0
        %1414 = vmatprep.mubr.bf16.mxu0 0
        %1415 = vmatmul.mubr.bf16.gmra.mrb[0].mxu0 %v1320
        %v1416 = vpop.f32.mrb[0].mxu0
        %v1417 = vadd.f32 0.0, %v1416
        %v1418 = vpop.f32.mrb[0].mxu0
        %v1419 = vpop.f32.mrb[0].mxu0
        %v1420 = vadd.f32 0.0, %v1419
        %v1421 = vpop.f32.mrb[0].mxu0
        %1422 = vmatprep.mubr.bf16.mxu0 0
        %1423 = vmatmul.mubr.bf16.gmra.mrb[0].mxu0 %v1323
        %v1424 = vpop.f32.mrb[0].mxu0
        %v1425 = vadd.f32 0.0, %v1424
        %v1426 = vpop.f32.mrb[0].mxu0
        %v1427 = vpop.f32.mrb[0].mxu0
        %v1428 = vadd.f32 0.0, %v1427
        %v1429 = vpop.f32.mrb[0].mxu0
        %1430 = vmatprep.mubr.bf16.mxu0 0
        %1431 = vmatmul.mubr.bf16.gmra.mrb[0].mxu0 %v1326
        %v1432 = vpop.f32.mrb[0].mxu0
        %v1433 = vadd.f32 0.0, %v1432
        %v1434 = vpop.f32.mrb[0].mxu0
        %v1435 = vpop.f32.mrb[0].mxu0
        %v1436 = vadd.f32 0.0, %v1435
        %v1437 = vpop.f32.mrb[0].mxu0
        %1438 = vmatprep.mubr.bf16.mxu0 0
        %1439 = vmatmul.mubr.bf16.gmra.mrb[0].mxu0 %v1329
        %v1440 = vpop.f32.mrb[0].mxu0
        %v1441 = vadd.f32 0.0, %v1440
        %v1442 = vpop.f32.mrb[0].mxu0
        %v1443 = vpop.f32.mrb[0].mxu0
        %v1444 = vadd.f32 0.0, %v1443
        %v1445 = vpop.f32.mrb[0].mxu0
        %1446 = vmatprep.mubr.bf16.mxu0 0
        %1447 = vmatmul.mubr.bf16.gmra.mrb[0].mxu0 %v1332
        %v1448 = vpop.f32.mrb[0].mxu0
        %v1449 = vadd.f32 0.0, %v1448
        %v1450 = vpop.f32.mrb[0].mxu0
        %v1451 = vpop.f32.mrb[0].mxu0
        %v1452 = vadd.f32 0.0, %v1451
        %v1453 = vpop.f32.mrb[0].mxu0
        %1454 = vdwg.mxu0
        %v1455 = vsel %vm826, %v1393, -1e+30
        %v1456 = vsel %vm826, %v1396, -1e+30
        %v1457 = vsel %vm826, %v1401, -1e+30
        %v1458 = vsel %vm826, %v1404, -1e+30
        %v1459 = vsel %vm826, %v1409, -1e+30
        %v1460 = vsel %vm826, %v1412, -1e+30
        %v1461 = vsel %vm826, %v1417, -1e+30
        %v1462 = vsel %vm826, %v1420, -1e+30
        %v1463 = vsel %vm826, %v1425, -1e+30
        %v1464 = vsel %vm826, %v1428, -1e+30
        %v1465 = vsel %vm826, %v1433, -1e+30
        %v1466 = vsel %vm826, %v1436, -1e+30
        %v1467 = vsel %vm826, %v1441, -1e+30
        %v1468 = vsel %vm826, %v1444, -1e+30
        %v1469 = vsel %vm826, %v1449, -1e+30
        %v1470 = vsel %vm826, %v1452, -1e+30
        %1471 = vmax.xlane.f32.xlu0 %v1455
        %v1472 = vpop.xlane.xlu0 %1471
        %1473 = vmax.xlane.f32.xlu0 %v1456
        %v1474 = vpop.xlane.xlu0 %1473
        %1475 = vmax.xlane.f32.xlu0 %v1457
        %v1476 = vpop.xlane.xlu0 %1475
        %1477 = vmax.xlane.f32.xlu0 %v1458
        %v1478 = vpop.xlane.xlu0 %1477
        %1479 = vmax.xlane.f32.xlu0 %v1459
        %v1480 = vpop.xlane.xlu0 %1479
        %1481 = vmax.xlane.f32.xlu0 %v1460
        %v1482 = vpop.xlane.xlu0 %1481
        %1483 = vmax.xlane.f32.xlu0 %v1461
        %v1484 = vpop.xlane.xlu0 %1483
        %1485 = vmax.xlane.f32.xlu0 %v1462
        %v1486 = vpop.xlane.xlu0 %1485
        %1487 = vmax.xlane.f32.xlu0 %v1463
        %v1488 = vpop.xlane.xlu0 %1487
        %1489 = vmax.xlane.f32.xlu0 %v1464
        %v1490 = vpop.xlane.xlu0 %1489
        %1491 = vmax.xlane.f32.xlu0 %v1465
        %v1492 = vpop.xlane.xlu0 %1491
        %1493 = vmax.xlane.f32.xlu0 %v1466
        %v1494 = vpop.xlane.xlu0 %1493
        %1495 = vmax.xlane.f32.xlu0 %v1467
        %v1496 = vpop.xlane.xlu0 %1495
        %1497 = vmax.xlane.f32.xlu0 %v1468
        %v1498 = vpop.xlane.xlu0 %1497
        %1499 = vmax.xlane.f32.xlu0 %v1469
        %v1500 = vpop.xlane.xlu0 %1499
        %1501 = vmax.xlane.f32.xlu0 %v1470
        %v1502 = vpop.xlane.xlu0 %1501
        %v1503 = vsub.f32 %v1455, %v1472
        %v1504 = vsub.f32 %v1456, %v1474
        %v1505 = vsub.f32 %v1457, %v1476
        %v1506 = vsub.f32 %v1458, %v1478
        %v1507 = vsub.f32 %v1459, %v1480
        %v1508 = vsub.f32 %v1460, %v1482
        %v1509 = vsub.f32 %v1461, %v1484
        %v1510 = vsub.f32 %v1462, %v1486
        %v1511 = vsub.f32 %v1463, %v1488
        %v1512 = vsub.f32 %v1464, %v1490
        %v1513 = vsub.f32 %v1465, %v1492
        %v1514 = vsub.f32 %v1466, %v1494
        %v1515 = vsub.f32 %v1467, %v1496
        %v1516 = vsub.f32 %v1468, %v1498
        %v1517 = vsub.f32 %v1469, %v1500
        %v1518 = vsub.f32 %v1470, %v1502
        %v1519 = vmul.f32 %v1503, 1.442695
        %v1520 = vpow.pop %v1519
        %v1521 = vmul.f32 %v1504, 1.442695
        %v1522 = vpow.pop %v1521
        %v1523 = vmul.f32 %v1505, 1.442695
        %v1524 = vpow.pop %v1523
        %v1525 = vmul.f32 %v1506, 1.442695
        %v1526 = vpow.pop %v1525
        %v1527 = vmul.f32 %v1507, 1.442695
        %v1528 = vpow.pop %v1527
        %v1529 = vmul.f32 %v1508, 1.442695
        %v1530 = vpow.pop %v1529
        %v1531 = vmul.f32 %v1509, 1.442695
        %v1532 = vpow.pop %v1531
        %v1533 = vmul.f32 %v1510, 1.442695
        %v1534 = vpow.pop %v1533
        %v1535 = vmul.f32 %v1511, 1.442695
        %v1536 = vpow.pop %v1535
        %v1537 = vmul.f32 %v1512, 1.442695
        %v1538 = vpow.pop %v1537
        %v1539 = vmul.f32 %v1513, 1.442695
        %v1540 = vpow.pop %v1539
        %v1541 = vmul.f32 %v1514, 1.442695
        %v1542 = vpow.pop %v1541
        %v1543 = vmul.f32 %v1515, 1.442695
        %v1544 = vpow.pop %v1543
        %v1545 = vmul.f32 %v1516, 1.442695
        %v1546 = vpow.pop %v1545
        %v1547 = vmul.f32 %v1517, 1.442695
        %v1548 = vpow.pop %v1547
        %v1549 = vmul.f32 %v1518, 1.442695
        %v1550 = vpow.pop %v1549
        %1551 = vadd.xlane.f32.xlu0 %v1520
        %v1552 = vpop.xlane.xlu0 %1551
        %1553 = vadd.xlane.f32.xlu0 %v1522
        %v1554 = vpop.xlane.xlu0 %1553
        %1555 = vadd.xlane.f32.xlu0 %v1524
        %v1556 = vpop.xlane.xlu0 %1555
        %1557 = vadd.xlane.f32.xlu0 %v1526
        %v1558 = vpop.xlane.xlu0 %1557
        %1559 = vadd.xlane.f32.xlu0 %v1528
        %v1560 = vpop.xlane.xlu0 %1559
        %1561 = vadd.xlane.f32.xlu0 %v1530
        %v1562 = vpop.xlane.xlu0 %1561
        %1563 = vadd.xlane.f32.xlu0 %v1532
        %v1564 = vpop.xlane.xlu0 %1563
        %1565 = vadd.xlane.f32.xlu0 %v1534
        %v1566 = vpop.xlane.xlu0 %1565
        %1567 = vadd.xlane.f32.xlu0 %v1536
        %v1568 = vpop.xlane.xlu0 %1567
        %1569 = vadd.xlane.f32.xlu0 %v1538
        %v1570 = vpop.xlane.xlu0 %1569
        %1571 = vadd.xlane.f32.xlu0 %v1540
        %v1572 = vpop.xlane.xlu0 %1571
        %1573 = vadd.xlane.f32.xlu0 %v1542
        %v1574 = vpop.xlane.xlu0 %1573
        %1575 = vadd.xlane.f32.xlu0 %v1544
        %v1576 = vpop.xlane.xlu0 %1575
        %1577 = vadd.xlane.f32.xlu0 %v1546
        %v1578 = vpop.xlane.xlu0 %1577
        %1579 = vadd.xlane.f32.xlu0 %v1548
        %v1580 = vpop.xlane.xlu0 %1579
        %1581 = vadd.xlane.f32.xlu0 %v1550
        %v1582 = vpop.xlane.xlu0 %1581
        %v1583 = vrcp.pop %v1552
        %v1584 = vrcp.pop %v1554
        %v1585 = vrcp.pop %v1556
        %v1586 = vrcp.pop %v1558
        %v1587 = vrcp.pop %v1560
        %v1588 = vrcp.pop %v1562
        %v1589 = vrcp.pop %v1564
        %v1590 = vrcp.pop %v1566
        %v1591 = vrcp.pop %v1568
        %v1592 = vrcp.pop %v1570
        %v1593 = vrcp.pop %v1572
        %v1594 = vrcp.pop %v1574
        %v1595 = vrcp.pop %v1576
        %v1596 = vrcp.pop %v1578
        %v1597 = vrcp.pop %v1580
        %v1598 = vrcp.pop %v1582
        %v1599 = vmul.f32 %v1520, %v1583
        %v1600 = vmul.f32 %v1522, %v1584
        %v1601 = vmul.f32 %v1524, %v1585
        %v1602 = vmul.f32 %v1526, %v1586
        %v1603 = vmul.f32 %v1528, %v1587
        %v1604 = vmul.f32 %v1530, %v1588
        %v1605 = vmul.f32 %v1532, %v1589
        %v1606 = vmul.f32 %v1534, %v1590
        %v1607 = vmul.f32 %v1536, %v1591
        %v1608 = vmul.f32 %v1538, %v1592
        %v1609 = vmul.f32 %v1540, %v1593
        %v1610 = vmul.f32 %v1542, %v1594
        %v1611 = vmul.f32 %v1544, %v1595
        %v1612 = vmul.f32 %v1546, %v1596
        %v1613 = vmul.f32 %v1548, %v1597
        %v1614 = vmul.f32 %v1550, %v1598
        %s1615 = scalar_lea.vmem %s360, 128 [#allocation4]
        %1616 = vst [vmem:[%s1615] sm:$0xff] %v1599
        %1617 = vst [vmem:[%s1615 + $0x8] sm:$0xff] %v1600
        %1618 = vst [vmem:[%s1615 + $0x10] sm:$0xff] %v1601
        %1619 = vst [vmem:[%s1615 + $0x18] sm:$0xff] %v1602
        %1620 = vst [vmem:[%s1615 + $0x20] sm:$0xff] %v1603
        %1621 = vst [vmem:[%s1615 + $0x28] sm:$0xff] %v1604
        %1622 = vst [vmem:[%s1615 + $0x30] sm:$0xff] %v1605
        %1623 = vst [vmem:[%s1615 + $0x38] sm:$0xff] %v1606
        %1624 = vst [vmem:[%s1615 + $0x40] sm:$0xff] %v1607
        %1625 = vst [vmem:[%s1615 + $0x48] sm:$0xff] %v1608
        %1626 = vst [vmem:[%s1615 + $0x50] sm:$0xff] %v1609
        %1627 = vst [vmem:[%s1615 + $0x58] sm:$0xff] %v1610
        %1628 = vst [vmem:[%s1615 + $0x60] sm:$0xff] %v1611
        %1629 = vst [vmem:[%s1615 + $0x68] sm:$0xff] %v1612
        %1630 = vst [vmem:[%s1615 + $0x70] sm:$0xff] %v1613
        %1631 = vst [vmem:[%s1615 + $0x78] sm:$0xff] %v1614
        %v1632 = vpack.c.bf16 %v1600, %v1599
        %v1633 = vpack.c.bf16 %v1602, %v1601
        %v1634 = vpack.c.bf16 %v1604, %v1603
        %v1635 = vpack.c.bf16 %v1606, %v1605
        %v1636 = vpack.c.bf16 %v1608, %v1607
        %v1637 = vpack.c.bf16 %v1610, %v1609
        %v1638 = vpack.c.bf16 %v1612, %v1611
        %v1639 = vpack.c.bf16 %v1614, %v1613
        %1648 = vrot.lane.b32.xlu0 %v816, 124
        %v1649 = vpop.permute.xlu0 %1648
        %1650 = vrot.lane.b32.xlu0 %v817, 124
        %v1651 = vpop.permute.xlu0 %1650
        %1652 = vrot.lane.b32.xlu0 %v818, 124
        %v1653 = vpop.permute.xlu0 %1652
        %1654 = vrot.lane.b32.xlu0 %v819, 124
        %v1655 = vpop.permute.xlu0 %1654
        %1656 = vrot.lane.b32.xlu0 %v820, 124
        %v1657 = vpop.permute.xlu0 %1656
        %1658 = vrot.lane.b32.xlu0 %v821, 124
        %v1659 = vpop.permute.xlu0 %1658
        %1660 = vrot.lane.b32.xlu0 %v822, 124
        %v1661 = vpop.permute.xlu0 %1660
        %1662 = vrot.lane.b32.xlu0 %v823, 124
        %v1663 = vpop.permute.xlu0 %1662
        %1672 = vmatprep.subr.bf16.mxu0 0
        %1673 = vmatpush1.bf16.msra.mxu0 %v1649
        %1674 = vmatprep.subr.bf16.mxu0 0
        %1675 = vmatpush1.bf16.msra.mxu0 %v1651
        %1676 = vmatprep.subr.bf16.mxu0 0
        %1677 = vmatpush1.bf16.msra.mxu0 %v1653
        %1678 = vmatprep.subr.bf16.mxu0 0
        %1679 = vmatpush1.bf16.msra.mxu0 %v1655
        %1680 = vmatprep.subr.bf16.mxu0 0
        %1681 = vmatpush1.bf16.msra.mxu0 %v1657
        %1682 = vmatprep.subr.bf16.mxu0 0
        %1683 = vmatpush1.bf16.msra.mxu0 %v1659
        %1684 = vmatprep.subr.bf16.mxu0 0
        %1685 = vmatpush1.bf16.msra.mxu0 %v1661
        %1686 = vmatprep.subr.bf16.mxu0 0
        %1687 = vmatpush1.bf16.msra.mxu0 %v1663
        %1688 = vmatprep.subr.bf16.mxu0 0
        %1689 = vmatpush1.bf16.msra.mxu0 0
        %1690 = vmatprep.subr.bf16.mxu0 0
        %1691 = vmatpush1.bf16.msra.mxu0 0
        %1692 = vmatprep.subr.bf16.mxu0 0
        %1693 = vmatpush1.bf16.msra.mxu0 0
        %1694 = vmatprep.subr.bf16.mxu0 0
        %1695 = vmatpush1.bf16.msra.mxu0 0
        %1696 = vmatprep.subr.bf16.mxu0 0
        %1697 = vmatpush1.bf16.msra.mxu0 0
        %1698 = vmatprep.subr.bf16.mxu0 0
        %1699 = vmatpush1.bf16.msra.mxu0 0
        %1700 = vmatprep.subr.bf16.mxu0 0
        %1701 = vmatpush1.bf16.msra.mxu0 0
        %1702 = vmatprep.subr.bf16.mxu0 0
        %1703 = vmatpush1.bf16.msra.mxu0 0
        %1704 = vmatprep.mubr.bf16.mxu0 0
        %1705 = vmatmul.mubr.bf16.gmra.mrb[0].mxu0 %v1632
        %v1706 = vpop.f32.mrb[0].mxu0
        %v1707 = vadd.f32 0.0, %v1706
        %v1708 = vpop.f32.mrb[0].mxu0
        %v1709 = vpop.f32.mrb[0].mxu0
        %v1710 = vadd.f32 0.0, %v1709
        %v1711 = vpop.f32.mrb[0].mxu0
        %1712 = vmatprep.mubr.bf16.mxu0 0
        %1713 = vmatmul.mubr.bf16.gmra.mrb[0].mxu0 %v1633
        %v1714 = vpop.f32.mrb[0].mxu0
        %v1715 = vadd.f32 0.0, %v1714
        %v1716 = vpop.f32.mrb[0].mxu0
        %v1717 = vpop.f32.mrb[0].mxu0
        %v1718 = vadd.f32 0.0, %v1717
        %v1719 = vpop.f32.mrb[0].mxu0
        %1720 = vmatprep.mubr.bf16.mxu0 0
        %1721 = vmatmul.mubr.bf16.gmra.mrb[0].mxu0 %v1634
        %v1722 = vpop.f32.mrb[0].mxu0
        %v1723 = vadd.f32 0.0, %v1722
        %v1724 = vpop.f32.mrb[0].mxu0
        %v1725 = vpop.f32.mrb[0].mxu0
        %v1726 = vadd.f32 0.0, %v1725
        %v1727 = vpop.f32.mrb[0].mxu0
        %1728 = vmatprep.mubr.bf16.mxu0 0
        %1729 = vmatmul.mubr.bf16.gmra.mrb[0].mxu0 %v1635
        %v1730 = vpop.f32.mrb[0].mxu0
        %v1731 = vadd.f32 0.0, %v1730
        %v1732 = vpop.f32.mrb[0].mxu0
        %v1733 = vpop.f32.mrb[0].mxu0
        %v1734 = vadd.f32 0.0, %v1733
        %v1735 = vpop.f32.mrb[0].mxu0
        %1736 = vmatprep.mubr.bf16.mxu0 0
        %1737 = vmatmul.mubr.bf16.gmra.mrb[0].mxu0 %v1636
        %v1738 = vpop.f32.mrb[0].mxu0
        %v1739 = vadd.f32 0.0, %v1738
        %v1740 = vpop.f32.mrb[0].mxu0
        %v1741 = vpop.f32.mrb[0].mxu0
        %v1742 = vadd.f32 0.0, %v1741
        %v1743 = vpop.f32.mrb[0].mxu0
        %1744 = vmatprep.mubr.bf16.mxu0 0
        %1745 = vmatmul.mubr.bf16.gmra.mrb[0].mxu0 %v1637
        %v1746 = vpop.f32.mrb[0].mxu0
        %v1747 = vadd.f32 0.0, %v1746
        %v1748 = vpop.f32.mrb[0].mxu0
        %v1749 = vpop.f32.mrb[0].mxu0
        %v1750 = vadd.f32 0.0, %v1749
        %v1751 = vpop.f32.mrb[0].mxu0
        %1752 = vmatprep.mubr.bf16.mxu0 0
        %1753 = vmatmul.mubr.bf16.gmra.mrb[0].mxu0 %v1638
        %v1754 = vpop.f32.mrb[0].mxu0
        %v1755 = vadd.f32 0.0, %v1754
        %v1756 = vpop.f32.mrb[0].mxu0
        %v1757 = vpop.f32.mrb[0].mxu0
        %v1758 = vadd.f32 0.0, %v1757
        %v1759 = vpop.f32.mrb[0].mxu0
        %1760 = vmatprep.mubr.bf16.mxu0 0
        %1761 = vmatmul.mubr.bf16.gmra.mrb[0].mxu0 %v1639
        %v1762 = vpop.f32.mrb[0].mxu0
        %v1763 = vadd.f32 0.0, %v1762
        %v1764 = vpop.f32.mrb[0].mxu0
        %v1765 = vpop.f32.mrb[0].mxu0
        %v1766 = vadd.f32 0.0, %v1765
        %v1767 = vpop.f32.mrb[0].mxu0
        %1768 = vdwg.mxu0
        %v1769 = vpack.c.bf16 %v1710, %v1707
        %v1770 = vpack.c.bf16 %v1718, %v1715
        %v1771 = vpack.c.bf16 %v1726, %v1723
        %v1772 = vpack.c.bf16 %v1734, %v1731
        %v1773 = vpack.c.bf16 %v1742, %v1739
        %v1774 = vpack.c.bf16 %v1750, %v1747
        %v1775 = vpack.c.bf16 %v1758, %v1755
        %v1776 = vpack.c.bf16 %v1766, %v1763
        %1777 = vrot.lane.b32.xlu0 %v572, 120
        %v1778 = vpop.permute.xlu0 %1777
        %1779 = vrot.lane.b32.xlu0 %v573, 120
        %v1780 = vpop.permute.xlu0 %1779
        %1781 = vrot.lane.b32.xlu0 %v574, 120
        %v1782 = vpop.permute.xlu0 %1781
        %1783 = vrot.lane.b32.xlu0 %v575, 120
        %v1784 = vpop.permute.xlu0 %1783
        %1785 = vrot.lane.b32.xlu0 %v576, 120
        %v1786 = vpop.permute.xlu0 %1785
        %1787 = vrot.lane.b32.xlu0 %v577, 120
        %v1788 = vpop.permute.xlu0 %1787
        %1789 = vrot.lane.b32.xlu0 %v578, 120
        %v1790 = vpop.permute.xlu0 %1789
        %1791 = vrot.lane.b32.xlu0 %v579, 120
        %v1792 = vpop.permute.xlu0 %1791
        %1793 = vrot.lane.b32.xlu0 %v694, 120
        %v1794 = vpop.permute.xlu0 %1793
        %1795 = vrot.lane.b32.xlu0 %v695, 120
        %v1796 = vpop.permute.xlu0 %1795
        %1797 = vrot.lane.b32.xlu0 %v696, 120
        %v1798 = vpop.permute.xlu0 %1797
        %1799 = vrot.lane.b32.xlu0 %v697, 120
        %v1800 = vpop.permute.xlu0 %1799
        %1801 = vrot.lane.b32.xlu0 %v698, 120
        %v1802 = vpop.permute.xlu0 %1801
        %1803 = vrot.lane.b32.xlu0 %v699, 120
        %v1804 = vpop.permute.xlu0 %1803
        %1805 = vrot.lane.b32.xlu0 %v700, 120
        %v1806 = vpop.permute.xlu0 %1805
        %1807 = vrot.lane.b32.xlu0 %v701, 120
        %v1808 = vpop.permute.xlu0 %1807
        %v1810 = vsel %vm827, %v1778, 0
        %v1813 = vsel %vm827, %v1780, 0
        %v1816 = vsel %vm827, %v1782, 0
        %v1819 = vsel %vm827, %v1784, 0
        %v1822 = vsel %vm827, %v1786, 0
        %v1825 = vsel %vm827, %v1788, 0
        %v1828 = vsel %vm827, %v1790, 0
        %v1831 = vsel %vm827, %v1792, 0
        %v1834 = vsel %vm827, %v1794, 0
        %v1837 = vsel %vm827, %v1796, 0
        %v1840 = vsel %vm827, %v1798, 0
        %v1843 = vsel %vm827, %v1800, 0
        %v1846 = vsel %vm827, %v1802, 0
        %v1849 = vsel %vm827, %v1804, 0
        %v1852 = vsel %vm827, %v1806, 0
        %v1855 = vsel %vm827, %v1808, 0
        %1857 = vmatprep.subr.bf16.mxu0 0
        %1858 = vmatpush1.bf16.xpose.msra.mxu0 %v1834
        %1859 = vmatprep.subr.bf16.mxu0 0
        %1860 = vmatpush1.bf16.xpose.msra.mxu0 %v1837
        %1861 = vmatprep.subr.bf16.mxu0 0
        %1862 = vmatpush1.bf16.xpose.msra.mxu0 %v1840
        %1863 = vmatprep.subr.bf16.mxu0 0
        %1864 = vmatpush1.bf16.xpose.msra.mxu0 %v1843
        %1865 = vmatprep.subr.bf16.mxu0 0
        %1866 = vmatpush1.bf16.xpose.msra.mxu0 %v1846
        %1867 = vmatprep.subr.bf16.mxu0 0
        %1868 = vmatpush1.bf16.xpose.msra.mxu0 %v1849
        %1869 = vmatprep.subr.bf16.mxu0 0
        %1870 = vmatpush1.bf16.xpose.msra.mxu0 %v1852
        %1871 = vmatprep.subr.bf16.mxu0 0
        %1872 = vmatpush1.bf16.xpose.msra.mxu0 %v1855
        %1873 = vmatprep.subr.bf16.mxu0 0
        %1874 = vmatpush1.bf16.xpose.msra.mxu0 0
        %1875 = vmatprep.subr.bf16.mxu0 0
        %1876 = vmatpush1.bf16.xpose.msra.mxu0 0
        %1877 = vmatprep.subr.bf16.mxu0 0
        %1878 = vmatpush1.bf16.xpose.msra.mxu0 0
        %1879 = vmatprep.subr.bf16.mxu0 0
        %1880 = vmatpush1.bf16.xpose.msra.mxu0 0
        %1881 = vmatprep.subr.bf16.mxu0 0
        %1882 = vmatpush1.bf16.xpose.msra.mxu0 0
        %1883 = vmatprep.subr.bf16.mxu0 0
        %1884 = vmatpush1.bf16.xpose.msra.mxu0 0
        %1885 = vmatprep.subr.bf16.mxu0 0
        %1886 = vmatpush1.bf16.xpose.msra.mxu0 0
        %1887 = vmatprep.subr.bf16.mxu0 0
        %1888 = vmatpush1.bf16.xpose.msra.mxu0 0
        %1889 = vmatprep.mubr.bf16.mxu0 0
        %1890 = vmatmul.mubr.bf16.gmra.mrb[0].mxu0 %v1810
        %v1891 = vpop.f32.mrb[0].mxu0
        %v1892 = vadd.f32 0.0, %v1891
        %v1893 = vpop.f32.mrb[0].mxu0
        %v1894 = vpop.f32.mrb[0].mxu0
        %v1895 = vadd.f32 0.0, %v1894
        %v1896 = vpop.f32.mrb[0].mxu0
        %1897 = vmatprep.mubr.bf16.mxu0 0
        %1898 = vmatmul.mubr.bf16.gmra.mrb[0].mxu0 %v1813
        %v1899 = vpop.f32.mrb[0].mxu0
        %v1900 = vadd.f32 0.0, %v1899
        %v1901 = vpop.f32.mrb[0].mxu0
        %v1902 = vpop.f32.mrb[0].mxu0
        %v1903 = vadd.f32 0.0, %v1902
        %v1904 = vpop.f32.mrb[0].mxu0
        %1905 = vmatprep.mubr.bf16.mxu0 0
        %1906 = vmatmul.mubr.bf16.gmra.mrb[0].mxu0 %v1816
        %v1907 = vpop.f32.mrb[0].mxu0
        %v1908 = vadd.f32 0.0, %v1907
        %v1909 = vpop.f32.mrb[0].mxu0
        %v1910 = vpop.f32.mrb[0].mxu0
        %v1911 = vadd.f32 0.0, %v1910
        %v1912 = vpop.f32.mrb[0].mxu0
        %1913 = vmatprep.mubr.bf16.mxu0 0
        %1914 = vmatmul.mubr.bf16.gmra.mrb[0].mxu0 %v1819
        %v1915 = vpop.f32.mrb[0].mxu0
        %v1916 = vadd.f32 0.0, %v1915
        %v1917 = vpop.f32.mrb[0].mxu0
        %v1918 = vpop.f32.mrb[0].mxu0
        %v1919 = vadd.f32 0.0, %v1918
        %v1920 = vpop.f32.mrb[0].mxu0
        %1921 = vmatprep.mubr.bf16.mxu0 0
        %1922 = vmatmul.mubr.bf16.gmra.mrb[0].mxu0 %v1822
        %v1923 = vpop.f32.mrb[0].mxu0
        %v1924 = vadd.f32 0.0, %v1923
        %v1925 = vpop.f32.mrb[0].mxu0
        %v1926 = vpop.f32.mrb[0].mxu0
        %v1927 = vadd.f32 0.0, %v1926
        %v1928 = vpop.f32.mrb[0].mxu0
        %1929 = vmatprep.mubr.bf16.mxu0 0
        %1930 = vmatmul.mubr.bf16.gmra.mrb[0].mxu0 %v1825
        %v1931 = vpop.f32.mrb[0].mxu0
        %v1932 = vadd.f32 0.0, %v1931
        %v1933 = vpop.f32.mrb[0].mxu0
        %v1934 = vpop.f32.mrb[0].mxu0
        %v1935 = vadd.f32 0.0, %v1934
        %v1936 = vpop.f32.mrb[0].mxu0
        %1937 = vmatprep.mubr.bf16.mxu0 0
        %1938 = vmatmul.mubr.bf16.gmra.mrb[0].mxu0 %v1828
        %v1939 = vpop.f32.mrb[0].mxu0
        %v1940 = vadd.f32 0.0, %v1939
        %v1941 = vpop.f32.mrb[0].mxu0
        %v1942 = vpop.f32.mrb[0].mxu0
        %v1943 = vadd.f32 0.0, %v1942
        %v1944 = vpop.f32.mrb[0].mxu0
        %1945 = vmatprep.mubr.bf16.mxu0 0
        %1946 = vmatmul.mubr.bf16.gmra.mrb[0].mxu0 %v1831
        %v1947 = vpop.f32.mrb[0].mxu0
        %v1948 = vadd.f32 0.0, %v1947
        %v1949 = vpop.f32.mrb[0].mxu0
        %v1950 = vpop.f32.mrb[0].mxu0
        %v1951 = vadd.f32 0.0, %v1950
        %v1952 = vpop.f32.mrb[0].mxu0
        %1953 = vdwg.mxu0
        %v1954 = vsel %vm826, %v1892, -1e+30
        %v1955 = vsel %vm826, %v1895, -1e+30
        %v1956 = vsel %vm826, %v1900, -1e+30
        %v1957 = vsel %vm826, %v1903, -1e+30
        %v1958 = vsel %vm826, %v1908, -1e+30
        %v1959 = vsel %vm826, %v1911, -1e+30
        %v1960 = vsel %vm826, %v1916, -1e+30
        %v1961 = vsel %vm826, %v1919, -1e+30
        %v1962 = vsel %vm826, %v1924, -1e+30
        %v1963 = vsel %vm826, %v1927, -1e+30
        %v1964 = vsel %vm826, %v1932, -1e+30
        %v1965 = vsel %vm826, %v1935, -1e+30
        %v1966 = vsel %vm826, %v1940, -1e+30
        %v1967 = vsel %vm826, %v1943, -1e+30
        %v1968 = vsel %vm826, %v1948, -1e+30
        %v1969 = vsel %vm826, %v1951, -1e+30
        %1970 = vmax.xlane.f32.xlu0 %v1954
        %v1971 = vpop.xlane.xlu0 %1970
        %1972 = vmax.xlane.f32.xlu0 %v1955
        %v1973 = vpop.xlane.xlu0 %1972
        %1974 = vmax.xlane.f32.xlu0 %v1956
        %v1975 = vpop.xlane.xlu0 %1974
        %1976 = vmax.xlane.f32.xlu0 %v1957
        %v1977 = vpop.xlane.xlu0 %1976
        %1978 = vmax.xlane.f32.xlu0 %v1958
        %v1979 = vpop.xlane.xlu0 %1978
        %1980 = vmax.xlane.f32.xlu0 %v1959
        %v1981 = vpop.xlane.xlu0 %1980
        %1982 = vmax.xlane.f32.xlu0 %v1960
        %v1983 = vpop.xlane.xlu0 %1982
        %1984 = vmax.xlane.f32.xlu0 %v1961
        %v1985 = vpop.xlane.xlu0 %1984
        %1986 = vmax.xlane.f32.xlu0 %v1962
        %v1987 = vpop.xlane.xlu0 %1986
        %1988 = vmax.xlane.f32.xlu0 %v1963
        %v1989 = vpop.xlane.xlu0 %1988
        %1990 = vmax.xlane.f32.xlu0 %v1964
        %v1991 = vpop.xlane.xlu0 %1990
        %1992 = vmax.xlane.f32.xlu0 %v1965
        %v1993 = vpop.xlane.xlu0 %1992
        %1994 = vmax.xlane.f32.xlu0 %v1966
        %v1995 = vpop.xlane.xlu0 %1994
        %1996 = vmax.xlane.f32.xlu0 %v1967
        %v1997 = vpop.xlane.xlu0 %1996
        %1998 = vmax.xlane.f32.xlu0 %v1968
        %v1999 = vpop.xlane.xlu0 %1998
        %2000 = vmax.xlane.f32.xlu0 %v1969
        %v2001 = vpop.xlane.xlu0 %2000
        %v2002 = vsub.f32 %v1954, %v1971
        %v2003 = vsub.f32 %v1955, %v1973
        %v2004 = vsub.f32 %v1956, %v1975
        %v2005 = vsub.f32 %v1957, %v1977
        %v2006 = vsub.f32 %v1958, %v1979
        %v2007 = vsub.f32 %v1959, %v1981
        %v2008 = vsub.f32 %v1960, %v1983
        %v2009 = vsub.f32 %v1961, %v1985
        %v2010 = vsub.f32 %v1962, %v1987
        %v2011 = vsub.f32 %v1963, %v1989
        %v2012 = vsub.f32 %v1964, %v1991
        %v2013 = vsub.f32 %v1965, %v1993
        %v2014 = vsub.f32 %v1966, %v1995
        %v2015 = vsub.f32 %v1967, %v1997
        %v2016 = vsub.f32 %v1968, %v1999
        %v2017 = vsub.f32 %v1969, %v2001
        %v2018 = vmul.f32 %v2002, 1.442695
        %v2019 = vpow.pop %v2018
        %v2020 = vmul.f32 %v2003, 1.442695
        %v2021 = vpow.pop %v2020
        %v2022 = vmul.f32 %v2004, 1.442695
        %v2023 = vpow.pop %v2022
        %v2024 = vmul.f32 %v2005, 1.442695
        %v2025 = vpow.pop %v2024
        %v2026 = vmul.f32 %v2006, 1.442695
        %v2027 = vpow.pop %v2026
        %v2028 = vmul.f32 %v2007, 1.442695
        %v2029 = vpow.pop %v2028
        %v2030 = vmul.f32 %v2008, 1.442695
        %v2031 = vpow.pop %v2030
        %v2032 = vmul.f32 %v2009, 1.442695
        %v2033 = vpow.pop %v2032
        %v2034 = vmul.f32 %v2010, 1.442695
        %v2035 = vpow.pop %v2034
        %v2036 = vmul.f32 %v2011, 1.442695
        %v2037 = vpow.pop %v2036
        %v2038 = vmul.f32 %v2012, 1.442695
        %v2039 = vpow.pop %v2038
        %v2040 = vmul.f32 %v2013, 1.442695
        %v2041 = vpow.pop %v2040
        %v2042 = vmul.f32 %v2014, 1.442695
        %v2043 = vpow.pop %v2042
        %v2044 = vmul.f32 %v2015, 1.442695
        %v2045 = vpow.pop %v2044
        %v2046 = vmul.f32 %v2016, 1.442695
        %v2047 = vpow.pop %v2046
        %v2048 = vmul.f32 %v2017, 1.442695
        %v2049 = vpow.pop %v2048
        %2050 = vadd.xlane.f32.xlu0 %v2019
        %v2051 = vpop.xlane.xlu0 %2050
        %2052 = vadd.xlane.f32.xlu0 %v2021
        %v2053 = vpop.xlane.xlu0 %2052
        %2054 = vadd.xlane.f32.xlu0 %v2023
        %v2055 = vpop.xlane.xlu0 %2054
        %2056 = vadd.xlane.f32.xlu0 %v2025
        %v2057 = vpop.xlane.xlu0 %2056
        %2058 = vadd.xlane.f32.xlu0 %v2027
        %v2059 = vpop.xlane.xlu0 %2058
        %2060 = vadd.xlane.f32.xlu0 %v2029
        %v2061 = vpop.xlane.xlu0 %2060
        %2062 = vadd.xlane.f32.xlu0 %v2031
        %v2063 = vpop.xlane.xlu0 %2062
        %2064 = vadd.xlane.f32.xlu0 %v2033
        %v2065 = vpop.xlane.xlu0 %2064
        %2066 = vadd.xlane.f32.xlu0 %v2035
        %v2067 = vpop.xlane.xlu0 %2066
        %2068 = vadd.xlane.f32.xlu0 %v2037
        %v2069 = vpop.xlane.xlu0 %2068
        %2070 = vadd.xlane.f32.xlu0 %v2039
        %v2071 = vpop.xlane.xlu0 %2070
        %2072 = vadd.xlane.f32.xlu0 %v2041
        %v2073 = vpop.xlane.xlu0 %2072
        %2074 = vadd.xlane.f32.xlu0 %v2043
        %v2075 = vpop.xlane.xlu0 %2074
        %2076 = vadd.xlane.f32.xlu0 %v2045
        %v2077 = vpop.xlane.xlu0 %2076
        %2078 = vadd.xlane.f32.xlu0 %v2047
        %v2079 = vpop.xlane.xlu0 %2078
        %2080 = vadd.xlane.f32.xlu0 %v2049
        %v2081 = vpop.xlane.xlu0 %2080
        %v2082 = vrcp.pop %v2051
        %v2083 = vrcp.pop %v2053
        %v2084 = vrcp.pop %v2055
        %v2085 = vrcp.pop %v2057
        %v2086 = vrcp.pop %v2059
        %v2087 = vrcp.pop %v2061
        %v2088 = vrcp.pop %v2063
        %v2089 = vrcp.pop %v2065
        %v2090 = vrcp.pop %v2067
        %v2091 = vrcp.pop %v2069
        %v2092 = vrcp.pop %v2071
        %v2093 = vrcp.pop %v2073
        %v2094 = vrcp.pop %v2075
        %v2095 = vrcp.pop %v2077
        %v2096 = vrcp.pop %v2079
        %v2097 = vrcp.pop %v2081
        %v2098 = vmul.f32 %v2019, %v2082
        %v2099 = vmul.f32 %v2021, %v2083
        %v2100 = vmul.f32 %v2023, %v2084
        %v2101 = vmul.f32 %v2025, %v2085
        %v2102 = vmul.f32 %v2027, %v2086
        %v2103 = vmul.f32 %v2029, %v2087
        %v2104 = vmul.f32 %v2031, %v2088
        %v2105 = vmul.f32 %v2033, %v2089
        %v2106 = vmul.f32 %v2035, %v2090
        %v2107 = vmul.f32 %v2037, %v2091
        %v2108 = vmul.f32 %v2039, %v2092
        %v2109 = vmul.f32 %v2041, %v2093
        %v2110 = vmul.f32 %v2043, %v2094
        %v2111 = vmul.f32 %v2045, %v2095
        %v2112 = vmul.f32 %v2047, %v2096
        %v2113 = vmul.f32 %v2049, %v2097
        %s2114 = scalar_lea.vmem %s360, 256 [#allocation4]
        %2115 = vst [vmem:[%s2114] sm:$0xff] %v2098
        %2116 = vst [vmem:[%s2114 + $0x8] sm:$0xff] %v2099
        %2117 = vst [vmem:[%s2114 + $0x10] sm:$0xff] %v2100
        %2118 = vst [vmem:[%s2114 + $0x18] sm:$0xff] %v2101
        %2119 = vst [vmem:[%s2114 + $0x20] sm:$0xff] %v2102
        %2120 = vst [vmem:[%s2114 + $0x28] sm:$0xff] %v2103
        %2121 = vst [vmem:[%s2114 + $0x30] sm:$0xff] %v2104
        %2122 = vst [vmem:[%s2114 + $0x38] sm:$0xff] %v2105
        %2123 = vst [vmem:[%s2114 + $0x40] sm:$0xff] %v2106
        %2124 = vst [vmem:[%s2114 + $0x48] sm:$0xff] %v2107
        %2125 = vst [vmem:[%s2114 + $0x50] sm:$0xff] %v2108
        %2126 = vst [vmem:[%s2114 + $0x58] sm:$0xff] %v2109
        %2127 = vst [vmem:[%s2114 + $0x60] sm:$0xff] %v2110
        %2128 = vst [vmem:[%s2114 + $0x68] sm:$0xff] %v2111
        %2129 = vst [vmem:[%s2114 + $0x70] sm:$0xff] %v2112
        %2130 = vst [vmem:[%s2114 + $0x78] sm:$0xff] %v2113
        %v2131 = vpack.c.bf16 %v2099, %v2098
        %v2132 = vpack.c.bf16 %v2101, %v2100
        %v2133 = vpack.c.bf16 %v2103, %v2102
        %v2134 = vpack.c.bf16 %v2105, %v2104
        %v2135 = vpack.c.bf16 %v2107, %v2106
        %v2136 = vpack.c.bf16 %v2109, %v2108
        %v2137 = vpack.c.bf16 %v2111, %v2110
        %v2138 = vpack.c.bf16 %v2113, %v2112
        %2139 = vrot.lane.b32.xlu0 %v816, 120
        %v2140 = vpop.permute.xlu0 %2139
        %2141 = vrot.lane.b32.xlu0 %v817, 120
        %v2142 = vpop.permute.xlu0 %2141
        %2143 = vrot.lane.b32.xlu0 %v818, 120
        %v2144 = vpop.permute.xlu0 %2143
        %2145 = vrot.lane.b32.xlu0 %v819, 120
        %v2146 = vpop.permute.xlu0 %2145
        %2147 = vrot.lane.b32.xlu0 %v820, 120
        %v2148 = vpop.permute.xlu0 %2147
        %2149 = vrot.lane.b32.xlu0 %v821, 120
        %v2150 = vpop.permute.xlu0 %2149
        %2151 = vrot.lane.b32.xlu0 %v822, 120
        %v2152 = vpop.permute.xlu0 %2151
        %2153 = vrot.lane.b32.xlu0 %v823, 120
        %v2154 = vpop.permute.xlu0 %2153
        %2163 = vmatprep.subr.bf16.mxu0 0
        %2164 = vmatpush1.bf16.msra.mxu0 %v2140
        %2165 = vmatprep.subr.bf16.mxu0 0
        %2166 = vmatpush1.bf16.msra.mxu0 %v2142
        %2167 = vmatprep.subr.bf16.mxu0 0
        %2168 = vmatpush1.bf16.msra.mxu0 %v2144
        %2169 = vmatprep.subr.bf16.mxu0 0
        %2170 = vmatpush1.bf16.msra.mxu0 %v2146
        %2171 = vmatprep.subr.bf16.mxu0 0
        %2172 = vmatpush1.bf16.msra.mxu0 %v2148
        %2173 = vmatprep.subr.bf16.mxu0 0
        %2174 = vmatpush1.bf16.msra.mxu0 %v2150
        %2175 = vmatprep.subr.bf16.mxu0 0
        %2176 = vmatpush1.bf16.msra.mxu0 %v2152
        %2177 = vmatprep.subr.bf16.mxu0 0
        %2178 = vmatpush1.bf16.msra.mxu0 %v2154
        %2179 = vmatprep.subr.bf16.mxu0 0
        %2180 = vmatpush1.bf16.msra.mxu0 0
        %2181 = vmatprep.subr.bf16.mxu0 0
        %2182 = vmatpush1.bf16.msra.mxu0 0
        %2183 = vmatprep.subr.bf16.mxu0 0
        %2184 = vmatpush1.bf16.msra.mxu0 0
        %2185 = vmatprep.subr.bf16.mxu0 0
        %2186 = vmatpush1.bf16.msra.mxu0 0
        %2187 = vmatprep.subr.bf16.mxu0 0
        %2188 = vmatpush1.bf16.msra.mxu0 0
        %2189 = vmatprep.subr.bf16.mxu0 0
        %2190 = vmatpush1.bf16.msra.mxu0 0
        %2191 = vmatprep.subr.bf16.mxu0 0
        %2192 = vmatpush1.bf16.msra.mxu0 0
        %2193 = vmatprep.subr.bf16.mxu0 0
        %2194 = vmatpush1.bf16.msra.mxu0 0
        %2195 = vmatprep.mubr.bf16.mxu0 0
        %2196 = vmatmul.mubr.bf16.gmra.mrb[0].mxu0 %v2131
        %v2197 = vpop.f32.mrb[0].mxu0
        %v2198 = vadd.f32 0.0, %v2197
        %v2199 = vpop.f32.mrb[0].mxu0
        %v2200 = vpop.f32.mrb[0].mxu0
        %v2201 = vadd.f32 0.0, %v2200
        %v2202 = vpop.f32.mrb[0].mxu0
        %2203 = vmatprep.mubr.bf16.mxu0 0
        %2204 = vmatmul.mubr.bf16.gmra.mrb[0].mxu0 %v2132
        %v2205 = vpop.f32.mrb[0].mxu0
        %v2206 = vadd.f32 0.0, %v2205
        %v2207 = vpop.f32.mrb[0].mxu0
        %v2208 = vpop.f32.mrb[0].mxu0
        %v2209 = vadd.f32 0.0, %v2208
        %v2210 = vpop.f32.mrb[0].mxu0
        %2211 = vmatprep.mubr.bf16.mxu0 0
        %2212 = vmatmul.mubr.bf16.gmra.mrb[0].mxu0 %v2133
        %v2213 = vpop.f32.mrb[0].mxu0
        %v2214 = vadd.f32 0.0, %v2213
        %v2215 = vpop.f32.mrb[0].mxu0
        %v2216 = vpop.f32.mrb[0].mxu0
        %v2217 = vadd.f32 0.0, %v2216
        %v2218 = vpop.f32.mrb[0].mxu0
        %2219 = vmatprep.mubr.bf16.mxu0 0
        %2220 = vmatmul.mubr.bf16.gmra.mrb[0].mxu0 %v2134
        %v2221 = vpop.f32.mrb[0].mxu0
        %v2222 = vadd.f32 0.0, %v2221
        %v2223 = vpop.f32.mrb[0].mxu0
        %v2224 = vpop.f32.mrb[0].mxu0
        %v2225 = vadd.f32 0.0, %v2224
        %v2226 = vpop.f32.mrb[0].mxu0
        %2227 = vmatprep.mubr.bf16.mxu0 0
        %2228 = vmatmul.mubr.bf16.gmra.mrb[0].mxu0 %v2135
        %v2229 = vpop.f32.mrb[0].mxu0
        %v2230 = vadd.f32 0.0, %v2229
        %v2231 = vpop.f32.mrb[0].mxu0
        %v2232 = vpop.f32.mrb[0].mxu0
        %v2233 = vadd.f32 0.0, %v2232
        %v2234 = vpop.f32.mrb[0].mxu0
        %2235 = vmatprep.mubr.bf16.mxu0 0
        %2236 = vmatmul.mubr.bf16.gmra.mrb[0].mxu0 %v2136
        %v2237 = vpop.f32.mrb[0].mxu0
        %v2238 = vadd.f32 0.0, %v2237
        %v2239 = vpop.f32.mrb[0].mxu0
        %v2240 = vpop.f32.mrb[0].mxu0
        %v2241 = vadd.f32 0.0, %v2240
        %v2242 = vpop.f32.mrb[0].mxu0
        %2243 = vmatprep.mubr.bf16.mxu0 0
        %2244 = vmatmul.mubr.bf16.gmra.mrb[0].mxu0 %v2137
        %v2245 = vpop.f32.mrb[0].mxu0
        %v2246 = vadd.f32 0.0, %v2245
        %v2247 = vpop.f32.mrb[0].mxu0
        %v2248 = vpop.f32.mrb[0].mxu0
        %v2249 = vadd.f32 0.0, %v2248
        %v2250 = vpop.f32.mrb[0].mxu0
        %2251 = vmatprep.mubr.bf16.mxu0 0
        %2252 = vmatmul.mubr.bf16.gmra.mrb[0].mxu0 %v2138
        %v2253 = vpop.f32.mrb[0].mxu0
        %v2254 = vadd.f32 0.0, %v2253
        %v2255 = vpop.f32.mrb[0].mxu0
        %v2256 = vpop.f32.mrb[0].mxu0
        %v2257 = vadd.f32 0.0, %v2256
        %v2258 = vpop.f32.mrb[0].mxu0
        %2259 = vdwg.mxu0
        %v2260 = vpack.c.bf16 %v2201, %v2198
        %v2261 = vpack.c.bf16 %v2209, %v2206
        %v2262 = vpack.c.bf16 %v2217, %v2214
        %v2263 = vpack.c.bf16 %v2225, %v2222
        %v2264 = vpack.c.bf16 %v2233, %v2230
        %v2265 = vpack.c.bf16 %v2241, %v2238
        %v2266 = vpack.c.bf16 %v2249, %v2246
        %v2267 = vpack.c.bf16 %v2257, %v2254
        %2268 = vrot.lane.b32.xlu0 %v572, 116
        %v2269 = vpop.permute.xlu0 %2268
        %2270 = vrot.lane.b32.xlu0 %v573, 116
        %v2271 = vpop.permute.xlu0 %2270
        %2272 = vrot.lane.b32.xlu0 %v574, 116
        %v2273 = vpop.permute.xlu0 %2272
        %2274 = vrot.lane.b32.xlu0 %v575, 116
        %v2275 = vpop.permute.xlu0 %2274
        %2276 = vrot.lane.b32.xlu0 %v576, 116
        %v2277 = vpop.permute.xlu0 %2276
        %2278 = vrot.lane.b32.xlu0 %v577, 116
        %v2279 = vpop.permute.xlu0 %2278
        %2280 = vrot.lane.b32.xlu0 %v578, 116
        %v2281 = vpop.permute.xlu0 %2280
        %2282 = vrot.lane.b32.xlu0 %v579, 116
        %v2283 = vpop.permute.xlu0 %2282
        %2284 = vrot.lane.b32.xlu0 %v694, 116
        %v2285 = vpop.permute.xlu0 %2284
        %2286 = vrot.lane.b32.xlu0 %v695, 116
        %v2287 = vpop.permute.xlu0 %2286
        %2288 = vrot.lane.b32.xlu0 %v696, 116
        %v2289 = vpop.permute.xlu0 %2288
        %2290 = vrot.lane.b32.xlu0 %v697, 116
        %v2291 = vpop.permute.xlu0 %2290
        %2292 = vrot.lane.b32.xlu0 %v698, 116
        %v2293 = vpop.permute.xlu0 %2292
        %2294 = vrot.lane.b32.xlu0 %v699, 116
        %v2295 = vpop.permute.xlu0 %2294
        %2296 = vrot.lane.b32.xlu0 %v700, 116
        %v2297 = vpop.permute.xlu0 %2296
        %2298 = vrot.lane.b32.xlu0 %v701, 116
        %v2299 = vpop.permute.xlu0 %2298
        %v2301 = vsel %vm827, %v2269, 0
        %v2304 = vsel %vm827, %v2271, 0
        %v2307 = vsel %vm827, %v2273, 0
        %v2310 = vsel %vm827, %v2275, 0
        %v2313 = vsel %vm827, %v2277, 0
        %v2316 = vsel %vm827, %v2279, 0
        %v2319 = vsel %vm827, %v2281, 0
        %v2322 = vsel %vm827, %v2283, 0
        %v2325 = vsel %vm827, %v2285, 0
        %v2328 = vsel %vm827, %v2287, 0
        %v2331 = vsel %vm827, %v2289, 0
        %v2334 = vsel %vm827, %v2291, 0
        %v2337 = vsel %vm827, %v2293, 0
        %v2340 = vsel %vm827, %v2295, 0
        %v2343 = vsel %vm827, %v2297, 0
        %v2346 = vsel %vm827, %v2299, 0
        %2348 = vmatprep.subr.bf16.mxu0 0
        %2349 = vmatpush1.bf16.xpose.msra.mxu0 %v2325
        %2350 = vmatprep.subr.bf16.mxu0 0
        %2351 = vmatpush1.bf16.xpose.msra.mxu0 %v2328
        %2352 = vmatprep.subr.bf16.mxu0 0
        %2353 = vmatpush1.bf16.xpose.msra.mxu0 %v2331
        %2354 = vmatprep.subr.bf16.mxu0 0
        %2355 = vmatpush1.bf16.xpose.msra.mxu0 %v2334
        %2356 = vmatprep.subr.bf16.mxu0 0
        %2357 = vmatpush1.bf16.xpose.msra.mxu0 %v2337
        %2358 = vmatprep.subr.bf16.mxu0 0
        %2359 = vmatpush1.bf16.xpose.msra.mxu0 %v2340
        %2360 = vmatprep.subr.bf16.mxu0 0
        %2361 = vmatpush1.bf16.xpose.msra.mxu0 %v2343
        %2362 = vmatprep.subr.bf16.mxu0 0
        %2363 = vmatpush1.bf16.xpose.msra.mxu0 %v2346
        %2364 = vmatprep.subr.bf16.mxu0 0
        %2365 = vmatpush1.bf16.xpose.msra.mxu0 0
        %2366 = vmatprep.subr.bf16.mxu0 0
        %2367 = vmatpush1.bf16.xpose.msra.mxu0 0
        %2368 = vmatprep.subr.bf16.mxu0 0
        %2369 = vmatpush1.bf16.xpose.msra.mxu0 0
        %2370 = vmatprep.subr.bf16.mxu0 0
        %2371 = vmatpush1.bf16.xpose.msra.mxu0 0
        %2372 = vmatprep.subr.bf16.mxu0 0
        %2373 = vmatpush1.bf16.xpose.msra.mxu0 0
        %2374 = vmatprep.subr.bf16.mxu0 0
        %2375 = vmatpush1.bf16.xpose.msra.mxu0 0
        %2376 = vmatprep.subr.bf16.mxu0 0
        %2377 = vmatpush1.bf16.xpose.msra.mxu0 0
        %2378 = vmatprep.subr.bf16.mxu0 0
        %2379 = vmatpush1.bf16.xpose.msra.mxu0 0
        %2380 = vmatprep.mubr.bf16.mxu0 0
        %2381 = vmatmul.mubr.bf16.gmra.mrb[0].mxu0 %v2301
        %v2382 = vpop.f32.mrb[0].mxu0
        %v2383 = vadd.f32 0.0, %v2382
        %v2384 = vpop.f32.mrb[0].mxu0
        %v2385 = vpop.f32.mrb[0].mxu0
        %v2386 = vadd.f32 0.0, %v2385
        %v2387 = vpop.f32.mrb[0].mxu0
        %2388 = vmatprep.mubr.bf16.mxu0 0
        %2389 = vmatmul.mubr.bf16.gmra.mrb[0].mxu0 %v2304
        %v2390 = vpop.f32.mrb[0].mxu0
        %v2391 = vadd.f32 0.0, %v2390
        %v2392 = vpop.f32.mrb[0].mxu0
        %v2393 = vpop.f32.mrb[0].mxu0
        %v2394 = vadd.f32 0.0, %v2393
        %v2395 = vpop.f32.mrb[0].mxu0
        %2396 = vmatprep.mubr.bf16.mxu0 0
        %2397 = vmatmul.mubr.bf16.gmra.mrb[0].mxu0 %v2307
        %v2398 = vpop.f32.mrb[0].mxu0
        %v2399 = vadd.f32 0.0, %v2398
        %v2400 = vpop.f32.mrb[0].mxu0
        %v2401 = vpop.f32.mrb[0].mxu0
        %v2402 = vadd.f32 0.0, %v2401
        %v2403 = vpop.f32.mrb[0].mxu0
        %2404 = vmatprep.mubr.bf16.mxu0 0
        %2405 = vmatmul.mubr.bf16.gmra.mrb[0].mxu0 %v2310
        %v2406 = vpop.f32.mrb[0].mxu0
        %v2407 = vadd.f32 0.0, %v2406
        %v2408 = vpop.f32.mrb[0].mxu0
        %v2409 = vpop.f32.mrb[0].mxu0
        %v2410 = vadd.f32 0.0, %v2409
        %v2411 = vpop.f32.mrb[0].mxu0
        %2412 = vmatprep.mubr.bf16.mxu0 0
        %2413 = vmatmul.mubr.bf16.gmra.mrb[0].mxu0 %v2313
        %v2414 = vpop.f32.mrb[0].mxu0
        %v2415 = vadd.f32 0.0, %v2414
        %v2416 = vpop.f32.mrb[0].mxu0
        %v2417 = vpop.f32.mrb[0].mxu0
        %v2418 = vadd.f32 0.0, %v2417
        %v2419 = vpop.f32.mrb[0].mxu0
        %2420 = vmatprep.mubr.bf16.mxu0 0
        %2421 = vmatmul.mubr.bf16.gmra.mrb[0].mxu0 %v2316
        %v2422 = vpop.f32.mrb[0].mxu0
        %v2423 = vadd.f32 0.0, %v2422
        %v2424 = vpop.f32.mrb[0].mxu0
        %v2425 = vpop.f32.mrb[0].mxu0
        %v2426 = vadd.f32 0.0, %v2425
        %v2427 = vpop.f32.mrb[0].mxu0
        %2428 = vmatprep.mubr.bf16.mxu0 0
        %2429 = vmatmul.mubr.bf16.gmra.mrb[0].mxu0 %v2319
        %v2430 = vpop.f32.mrb[0].mxu0
        %v2431 = vadd.f32 0.0, %v2430
        %v2432 = vpop.f32.mrb[0].mxu0
        %v2433 = vpop.f32.mrb[0].mxu0
        %v2434 = vadd.f32 0.0, %v2433
        %v2435 = vpop.f32.mrb[0].mxu0
        %2436 = vmatprep.mubr.bf16.mxu0 0
        %2437 = vmatmul.mubr.bf16.gmra.mrb[0].mxu0 %v2322
        %v2438 = vpop.f32.mrb[0].mxu0
        %v2439 = vadd.f32 0.0, %v2438
        %v2440 = vpop.f32.mrb[0].mxu0
        %v2441 = vpop.f32.mrb[0].mxu0
        %v2442 = vadd.f32 0.0, %v2441
        %v2443 = vpop.f32.mrb[0].mxu0
        %2444 = vdwg.mxu0
        %v2445 = vsel %vm826, %v2383, -1e+30
        %v2446 = vsel %vm826, %v2386, -1e+30
        %v2447 = vsel %vm826, %v2391, -1e+30
        %v2448 = vsel %vm826, %v2394, -1e+30
        %v2449 = vsel %vm826, %v2399, -1e+30
        %v2450 = vsel %vm826, %v2402, -1e+30
        %v2451 = vsel %vm826, %v2407, -1e+30
        %v2452 = vsel %vm826, %v2410, -1e+30
        %v2453 = vsel %vm826, %v2415, -1e+30
        %v2454 = vsel %vm826, %v2418, -1e+30
        %v2455 = vsel %vm826, %v2423, -1e+30
        %v2456 = vsel %vm826, %v2426, -1e+30
        %v2457 = vsel %vm826, %v2431, -1e+30
        %v2458 = vsel %vm826, %v2434, -1e+30
        %v2459 = vsel %vm826, %v2439, -1e+30
        %v2460 = vsel %vm826, %v2442, -1e+30
        %2461 = vmax.xlane.f32.xlu0 %v2445
        %v2462 = vpop.xlane.xlu0 %2461
        %2463 = vmax.xlane.f32.xlu0 %v2446
        %v2464 = vpop.xlane.xlu0 %2463
        %2465 = vmax.xlane.f32.xlu0 %v2447
        %v2466 = vpop.xlane.xlu0 %2465
        %2467 = vmax.xlane.f32.xlu0 %v2448
        %v2468 = vpop.xlane.xlu0 %2467
        %2469 = vmax.xlane.f32.xlu0 %v2449
        %v2470 = vpop.xlane.xlu0 %2469
        %2471 = vmax.xlane.f32.xlu0 %v2450
        %v2472 = vpop.xlane.xlu0 %2471
        %2473 = vmax.xlane.f32.xlu0 %v2451
        %v2474 = vpop.xlane.xlu0 %2473
        %2475 = vmax.xlane.f32.xlu0 %v2452
        %v2476 = vpop.xlane.xlu0 %2475
        %2477 = vmax.xlane.f32.xlu0 %v2453
        %v2478 = vpop.xlane.xlu0 %2477
        %2479 = vmax.xlane.f32.xlu0 %v2454
        %v2480 = vpop.xlane.xlu0 %2479
        %2481 = vmax.xlane.f32.xlu0 %v2455
        %v2482 = vpop.xlane.xlu0 %2481
        %2483 = vmax.xlane.f32.xlu0 %v2456
        %v2484 = vpop.xlane.xlu0 %2483
        %2485 = vmax.xlane.f32.xlu0 %v2457
        %v2486 = vpop.xlane.xlu0 %2485
        %2487 = vmax.xlane.f32.xlu0 %v2458
        %v2488 = vpop.xlane.xlu0 %2487
        %2489 = vmax.xlane.f32.xlu0 %v2459
        %v2490 = vpop.xlane.xlu0 %2489
        %2491 = vmax.xlane.f32.xlu0 %v2460
        %v2492 = vpop.xlane.xlu0 %2491
        %v2493 = vsub.f32 %v2445, %v2462
        %v2494 = vsub.f32 %v2446, %v2464
        %v2495 = vsub.f32 %v2447, %v2466
        %v2496 = vsub.f32 %v2448, %v2468
        %v2497 = vsub.f32 %v2449, %v2470
        %v2498 = vsub.f32 %v2450, %v2472
        %v2499 = vsub.f32 %v2451, %v2474
        %v2500 = vsub.f32 %v2452, %v2476
        %v2501 = vsub.f32 %v2453, %v2478
        %v2502 = vsub.f32 %v2454, %v2480
        %v2503 = vsub.f32 %v2455, %v2482
        %v2504 = vsub.f32 %v2456, %v2484
        %v2505 = vsub.f32 %v2457, %v2486
        %v2506 = vsub.f32 %v2458, %v2488
        %v2507 = vsub.f32 %v2459, %v2490
        %v2508 = vsub.f32 %v2460, %v2492
        %v2509 = vmul.f32 %v2493, 1.442695
        %v2510 = vpow.pop %v2509
        %v2511 = vmul.f32 %v2494, 1.442695
        %v2512 = vpow.pop %v2511
        %v2513 = vmul.f32 %v2495, 1.442695
        %v2514 = vpow.pop %v2513
        %v2515 = vmul.f32 %v2496, 1.442695
        %v2516 = vpow.pop %v2515
        %v2517 = vmul.f32 %v2497, 1.442695
        %v2518 = vpow.pop %v2517
        %v2519 = vmul.f32 %v2498, 1.442695
        %v2520 = vpow.pop %v2519
        %v2521 = vmul.f32 %v2499, 1.442695
        %v2522 = vpow.pop %v2521
        %v2523 = vmul.f32 %v2500, 1.442695
        %v2524 = vpow.pop %v2523
        %v2525 = vmul.f32 %v2501, 1.442695
        %v2526 = vpow.pop %v2525
        %v2527 = vmul.f32 %v2502, 1.442695
        %v2528 = vpow.pop %v2527
        %v2529 = vmul.f32 %v2503, 1.442695
        %v2530 = vpow.pop %v2529
        %v2531 = vmul.f32 %v2504, 1.442695
        %v2532 = vpow.pop %v2531
        %v2533 = vmul.f32 %v2505, 1.442695
        %v2534 = vpow.pop %v2533
        %v2535 = vmul.f32 %v2506, 1.442695
        %v2536 = vpow.pop %v2535
        %v2537 = vmul.f32 %v2507, 1.442695
        %v2538 = vpow.pop %v2537
        %v2539 = vmul.f32 %v2508, 1.442695
        %v2540 = vpow.pop %v2539
        %2541 = vadd.xlane.f32.xlu0 %v2510
        %v2542 = vpop.xlane.xlu0 %2541
        %2543 = vadd.xlane.f32.xlu0 %v2512
        %v2544 = vpop.xlane.xlu0 %2543
        %2545 = vadd.xlane.f32.xlu0 %v2514
        %v2546 = vpop.xlane.xlu0 %2545
        %2547 = vadd.xlane.f32.xlu0 %v2516
        %v2548 = vpop.xlane.xlu0 %2547
        %2549 = vadd.xlane.f32.xlu0 %v2518
        %v2550 = vpop.xlane.xlu0 %2549
        %2551 = vadd.xlane.f32.xlu0 %v2520
        %v2552 = vpop.xlane.xlu0 %2551
        %2553 = vadd.xlane.f32.xlu0 %v2522
        %v2554 = vpop.xlane.xlu0 %2553
        %2555 = vadd.xlane.f32.xlu0 %v2524
        %v2556 = vpop.xlane.xlu0 %2555
        %2557 = vadd.xlane.f32.xlu0 %v2526
        %v2558 = vpop.xlane.xlu0 %2557
        %2559 = vadd.xlane.f32.xlu0 %v2528
        %v2560 = vpop.xlane.xlu0 %2559
        %2561 = vadd.xlane.f32.xlu0 %v2530
        %v2562 = vpop.xlane.xlu0 %2561
        %2563 = vadd.xlane.f32.xlu0 %v2532
        %v2564 = vpop.xlane.xlu0 %2563
        %2565 = vadd.xlane.f32.xlu0 %v2534
        %v2566 = vpop.xlane.xlu0 %2565
        %2567 = vadd.xlane.f32.xlu0 %v2536
        %v2568 = vpop.xlane.xlu0 %2567
        %2569 = vadd.xlane.f32.xlu0 %v2538
        %v2570 = vpop.xlane.xlu0 %2569
        %2571 = vadd.xlane.f32.xlu0 %v2540
        %v2572 = vpop.xlane.xlu0 %2571
        %v2573 = vrcp.pop %v2542
        %v2574 = vrcp.pop %v2544
        %v2575 = vrcp.pop %v2546
        %v2576 = vrcp.pop %v2548
        %v2577 = vrcp.pop %v2550
        %v2578 = vrcp.pop %v2552
        %v2579 = vrcp.pop %v2554
        %v2580 = vrcp.pop %v2556
        %v2581 = vrcp.pop %v2558
        %v2582 = vrcp.pop %v2560
        %v2583 = vrcp.pop %v2562
        %v2584 = vrcp.pop %v2564
        %v2585 = vrcp.pop %v2566
        %v2586 = vrcp.pop %v2568
        %v2587 = vrcp.pop %v2570
        %v2588 = vrcp.pop %v2572
        %v2589 = vmul.f32 %v2510, %v2573
        %v2590 = vmul.f32 %v2512, %v2574
        %v2591 = vmul.f32 %v2514, %v2575
        %v2592 = vmul.f32 %v2516, %v2576
        %v2593 = vmul.f32 %v2518, %v2577
        %v2594 = vmul.f32 %v2520, %v2578
        %v2595 = vmul.f32 %v2522, %v2579
        %v2596 = vmul.f32 %v2524, %v2580
        %v2597 = vmul.f32 %v2526, %v2581
        %v2598 = vmul.f32 %v2528, %v2582
        %v2599 = vmul.f32 %v2530, %v2583
        %v2600 = vmul.f32 %v2532, %v2584
        %v2601 = vmul.f32 %v2534, %v2585
        %v2602 = vmul.f32 %v2536, %v2586
        %v2603 = vmul.f32 %v2538, %v2587
        %v2604 = vmul.f32 %v2540, %v2588
        %s2605 = scalar_lea.vmem %s360, 384 [#allocation4]
        %2606 = vst [vmem:[%s2605] sm:$0xff] %v2589
        %2607 = vst [vmem:[%s2605 + $0x8] sm:$0xff] %v2590
        %2608 = vst [vmem:[%s2605 + $0x10] sm:$0xff] %v2591
        %2609 = vst [vmem:[%s2605 + $0x18] sm:$0xff] %v2592
        %2610 = vst [vmem:[%s2605 + $0x20] sm:$0xff] %v2593
        %2611 = vst [vmem:[%s2605 + $0x28] sm:$0xff] %v2594
        %2612 = vst [vmem:[%s2605 + $0x30] sm:$0xff] %v2595
        %2613 = vst [vmem:[%s2605 + $0x38] sm:$0xff] %v2596
        %2614 = vst [vmem:[%s2605 + $0x40] sm:$0xff] %v2597
        %2615 = vst [vmem:[%s2605 + $0x48] sm:$0xff] %v2598
        %2616 = vst [vmem:[%s2605 + $0x50] sm:$0xff] %v2599
        %2617 = vst [vmem:[%s2605 + $0x58] sm:$0xff] %v2600
        %2618 = vst [vmem:[%s2605 + $0x60] sm:$0xff] %v2601
        %2619 = vst [vmem:[%s2605 + $0x68] sm:$0xff] %v2602
        %2620 = vst [vmem:[%s2605 + $0x70] sm:$0xff] %v2603
        %2621 = vst [vmem:[%s2605 + $0x78] sm:$0xff] %v2604
        %v2622 = vpack.c.bf16 %v2590, %v2589
        %v2623 = vpack.c.bf16 %v2592, %v2591
        %v2624 = vpack.c.bf16 %v2594, %v2593
        %v2625 = vpack.c.bf16 %v2596, %v2595
        %v2626 = vpack.c.bf16 %v2598, %v2597
        %v2627 = vpack.c.bf16 %v2600, %v2599
        %v2628 = vpack.c.bf16 %v2602, %v2601
        %v2629 = vpack.c.bf16 %v2604, %v2603
        %2630 = vrot.lane.b32.xlu0 %v816, 116
        %v2631 = vpop.permute.xlu0 %2630
        %2632 = vrot.lane.b32.xlu0 %v817, 116
        %v2633 = vpop.permute.xlu0 %2632
        %2634 = vrot.lane.b32.xlu0 %v818, 116
        %v2635 = vpop.permute.xlu0 %2634
        %2636 = vrot.lane.b32.xlu0 %v819, 116
        %v2637 = vpop.permute.xlu0 %2636
        %2638 = vrot.lane.b32.xlu0 %v820, 116
        %v2639 = vpop.permute.xlu0 %2638
        %2640 = vrot.lane.b32.xlu0 %v821, 116
        %v2641 = vpop.permute.xlu0 %2640
        %2642 = vrot.lane.b32.xlu0 %v822, 116
        %v2643 = vpop.permute.xlu0 %2642
        %2644 = vrot.lane.b32.xlu0 %v823, 116
        %v2645 = vpop.permute.xlu0 %2644
        %2654 = vmatprep.subr.bf16.mxu0 0
        %2655 = vmatpush1.bf16.msra.mxu0 %v2631
        %2656 = vmatprep.subr.bf16.mxu0 0
        %2657 = vmatpush1.bf16.msra.mxu0 %v2633
        %2658 = vmatprep.subr.bf16.mxu0 0
        %2659 = vmatpush1.bf16.msra.mxu0 %v2635
        %2660 = vmatprep.subr.bf16.mxu0 0
        %2661 = vmatpush1.bf16.msra.mxu0 %v2637
        %2662 = vmatprep.subr.bf16.mxu0 0
        %2663 = vmatpush1.bf16.msra.mxu0 %v2639
        %2664 = vmatprep.subr.bf16.mxu0 0
        %2665 = vmatpush1.bf16.msra.mxu0 %v2641
        %2666 = vmatprep.subr.bf16.mxu0 0
        %2667 = vmatpush1.bf16.msra.mxu0 %v2643
        %2668 = vmatprep.subr.bf16.mxu0 0
        %2669 = vmatpush1.bf16.msra.mxu0 %v2645
        %2670 = vmatprep.subr.bf16.mxu0 0
        %2671 = vmatpush1.bf16.msra.mxu0 0
        %2672 = vmatprep.subr.bf16.mxu0 0
        %2673 = vmatpush1.bf16.msra.mxu0 0
        %2674 = vmatprep.subr.bf16.mxu0 0
        %2675 = vmatpush1.bf16.msra.mxu0 0
        %2676 = vmatprep.subr.bf16.mxu0 0
        %2677 = vmatpush1.bf16.msra.mxu0 0
        %2678 = vmatprep.subr.bf16.mxu0 0
        %2679 = vmatpush1.bf16.msra.mxu0 0
        %2680 = vmatprep.subr.bf16.mxu0 0
        %2681 = vmatpush1.bf16.msra.mxu0 0
        %2682 = vmatprep.subr.bf16.mxu0 0
        %2683 = vmatpush1.bf16.msra.mxu0 0
        %2684 = vmatprep.subr.bf16.mxu0 0
        %2685 = vmatpush1.bf16.msra.mxu0 0
        %2686 = vmatprep.mubr.bf16.mxu0 0
        %2687 = vmatmul.mubr.bf16.gmra.mrb[0].mxu0 %v2622
        %v2688 = vpop.f32.mrb[0].mxu0
        %v2689 = vadd.f32 0.0, %v2688
        %v2690 = vpop.f32.mrb[0].mxu0
        %v2691 = vpop.f32.mrb[0].mxu0
        %v2692 = vadd.f32 0.0, %v2691
        %v2693 = vpop.f32.mrb[0].mxu0
        %2694 = vmatprep.mubr.bf16.mxu0 0
        %2695 = vmatmul.mubr.bf16.gmra.mrb[0].mxu0 %v2623
        %v2696 = vpop.f32.mrb[0].mxu0
        %v2697 = vadd.f32 0.0, %v2696
        %v2698 = vpop.f32.mrb[0].mxu0
        %v2699 = vpop.f32.mrb[0].mxu0
        %v2700 = vadd.f32 0.0, %v2699
        %v2701 = vpop.f32.mrb[0].mxu0
        %2702 = vmatprep.mubr.bf16.mxu0 0
        %2703 = vmatmul.mubr.bf16.gmra.mrb[0].mxu0 %v2624
        %v2704 = vpop.f32.mrb[0].mxu0
        %v2705 = vadd.f32 0.0, %v2704
        %v2706 = vpop.f32.mrb[0].mxu0
        %v2707 = vpop.f32.mrb[0].mxu0
        %v2708 = vadd.f32 0.0, %v2707
        %v2709 = vpop.f32.mrb[0].mxu0
        %2710 = vmatprep.mubr.bf16.mxu0 0
        %2711 = vmatmul.mubr.bf16.gmra.mrb[0].mxu0 %v2625
        %v2712 = vpop.f32.mrb[0].mxu0
        %v2713 = vadd.f32 0.0, %v2712
        %v2714 = vpop.f32.mrb[0].mxu0
        %v2715 = vpop.f32.mrb[0].mxu0
        %v2716 = vadd.f32 0.0, %v2715
        %v2717 = vpop.f32.mrb[0].mxu0
        %2718 = vmatprep.mubr.bf16.mxu0 0
        %2719 = vmatmul.mubr.bf16.gmra.mrb[0].mxu0 %v2626
        %v2720 = vpop.f32.mrb[0].mxu0
        %v2721 = vadd.f32 0.0, %v2720
        %v2722 = vpop.f32.mrb[0].mxu0
        %v2723 = vpop.f32.mrb[0].mxu0
        %v2724 = vadd.f32 0.0, %v2723
        %v2725 = vpop.f32.mrb[0].mxu0
        %2726 = vmatprep.mubr.bf16.mxu0 0
        %2727 = vmatmul.mubr.bf16.gmra.mrb[0].mxu0 %v2627
        %v2728 = vpop.f32.mrb[0].mxu0
        %v2729 = vadd.f32 0.0, %v2728
        %v2730 = vpop.f32.mrb[0].mxu0
        %v2731 = vpop.f32.mrb[0].mxu0
        %v2732 = vadd.f32 0.0, %v2731
        %v2733 = vpop.f32.mrb[0].mxu0
        %2734 = vmatprep.mubr.bf16.mxu0 0
        %2735 = vmatmul.mubr.bf16.gmra.mrb[0].mxu0 %v2628
        %v2736 = vpop.f32.mrb[0].mxu0
        %v2737 = vadd.f32 0.0, %v2736
        %v2738 = vpop.f32.mrb[0].mxu0
        %v2739 = vpop.f32.mrb[0].mxu0
        %v2740 = vadd.f32 0.0, %v2739
        %v2741 = vpop.f32.mrb[0].mxu0
        %2742 = vmatprep.mubr.bf16.mxu0 0
        %2743 = vmatmul.mubr.bf16.gmra.mrb[0].mxu0 %v2629
        %v2744 = vpop.f32.mrb[0].mxu0
        %v2745 = vadd.f32 0.0, %v2744
        %v2746 = vpop.f32.mrb[0].mxu0
        %v2747 = vpop.f32.mrb[0].mxu0
        %v2748 = vadd.f32 0.0, %v2747
        %v2749 = vpop.f32.mrb[0].mxu0
        %2750 = vdwg.mxu0
        %v2751 = vpack.c.bf16 %v2692, %v2689
        %v2752 = vpack.c.bf16 %v2700, %v2697
        %v2753 = vpack.c.bf16 %v2708, %v2705
        %v2754 = vpack.c.bf16 %v2716, %v2713
        %v2755 = vpack.c.bf16 %v2724, %v2721
        %v2756 = vpack.c.bf16 %v2732, %v2729
        %v2757 = vpack.c.bf16 %v2740, %v2737
        %v2758 = vpack.c.bf16 %v2748, %v2745
        %2767 = vrot.lane.b32.xlu0 %v1769, 4
        %v2768 = vpop.permute.xlu0 %2767
        %2769 = vrot.lane.b32.xlu0 %v1770, 4
        %v2770 = vpop.permute.xlu0 %2769
        %2771 = vrot.lane.b32.xlu0 %v1771, 4
        %v2772 = vpop.permute.xlu0 %2771
        %2773 = vrot.lane.b32.xlu0 %v1772, 4
        %v2774 = vpop.permute.xlu0 %2773
        %2775 = vrot.lane.b32.xlu0 %v1773, 4
        %v2776 = vpop.permute.xlu0 %2775
        %2777 = vrot.lane.b32.xlu0 %v1774, 4
        %v2778 = vpop.permute.xlu0 %2777
        %2779 = vrot.lane.b32.xlu0 %v1775, 4
        %v2780 = vpop.permute.xlu0 %2779
        %2781 = vrot.lane.b32.xlu0 %v1776, 4
        %v2782 = vpop.permute.xlu0 %2781
        %2791 = vrot.lane.b32.xlu0 %v2260, 8
        %v2792 = vpop.permute.xlu0 %2791
        %2793 = vrot.lane.b32.xlu0 %v2261, 8
        %v2794 = vpop.permute.xlu0 %2793
        %2795 = vrot.lane.b32.xlu0 %v2262, 8
        %v2796 = vpop.permute.xlu0 %2795
        %2797 = vrot.lane.b32.xlu0 %v2263, 8
        %v2798 = vpop.permute.xlu0 %2797
        %2799 = vrot.lane.b32.xlu0 %v2264, 8
        %v2800 = vpop.permute.xlu0 %2799
        %2801 = vrot.lane.b32.xlu0 %v2265, 8
        %v2802 = vpop.permute.xlu0 %2801
        %2803 = vrot.lane.b32.xlu0 %v2266, 8
        %v2804 = vpop.permute.xlu0 %2803
        %2805 = vrot.lane.b32.xlu0 %v2267, 8
        %v2806 = vpop.permute.xlu0 %2805
        %2815 = vrot.lane.b32.xlu0 %v2751, 12
        %v2816 = vpop.permute.xlu0 %2815
        %2817 = vrot.lane.b32.xlu0 %v2752, 12
        %v2818 = vpop.permute.xlu0 %2817
        %2819 = vrot.lane.b32.xlu0 %v2753, 12
        %v2820 = vpop.permute.xlu0 %2819
        %2821 = vrot.lane.b32.xlu0 %v2754, 12
        %v2822 = vpop.permute.xlu0 %2821
        %2823 = vrot.lane.b32.xlu0 %v2755, 12
        %v2824 = vpop.permute.xlu0 %2823
        %2825 = vrot.lane.b32.xlu0 %v2756, 12
        %v2826 = vpop.permute.xlu0 %2825
        %2827 = vrot.lane.b32.xlu0 %v2757, 12
        %v2828 = vpop.permute.xlu0 %2827
        %2829 = vrot.lane.b32.xlu0 %v2758, 12
        %v2830 = vpop.permute.xlu0 %2829
        %v2833 = vsel %vm827, %v1254, %v2768
        %v2836 = vsel %vm827, %v1255, %v2770
        %v2839 = vsel %vm827, %v1256, %v2772
        %v2842 = vsel %vm827, %v1257, %v2774
        %v2845 = vsel %vm827, %v1258, %v2776
        %v2848 = vsel %vm827, %v1259, %v2778
        %v2851 = vsel %vm827, %v1260, %v2780
        %v2854 = vsel %vm827, %v1261, %v2782
        %vm2855 = vcmask 64512
        %v2857 = vsel %vm2855, %v2833, %v2792
        %v2859 = vsel %vm2855, %v2836, %v2794
        %v2861 = vsel %vm2855, %v2839, %v2796
        %v2863 = vsel %vm2855, %v2842, %v2798
        %v2865 = vsel %vm2855, %v2845, %v2800
        %v2867 = vsel %vm2855, %v2848, %v2802
        %v2869 = vsel %vm2855, %v2851, %v2804
        %v2871 = vsel %vm2855, %v2854, %v2806
        %vm2872 = vcmask 97280
        %v2874 = vsel %vm2872, %v2857, %v2816
        %v2876 = vsel %vm2872, %v2859, %v2818
        %v2878 = vsel %vm2872, %v2861, %v2820
        %v2880 = vsel %vm2872, %v2863, %v2822
        %v2882 = vsel %vm2872, %v2865, %v2824
        %v2884 = vsel %vm2872, %v2867, %v2826
        %v2886 = vsel %vm2872, %v2869, %v2828
        %v2888 = vsel %vm2872, %v2871, %v2830
        %v2889 = vld [vmem:[%s370] sm:$0xf]
        %v2890 = vld [vmem:[%s370 + $0x4] sm:$0xf]
        %v2893 = vunpack.c.l.b16 %v2889
        %v2894 = vunpack.c.l.b16 %v2890
        %v2895 = vpack.c.b16 %v2894, %v2893
        %vm2897 = vcmask 130048
        %v2898 = vsel %vm2897, %v2874, 0
        %v2900 = vsel %vm2897, %v2876, 0
        %v2902 = vsel %vm2897, %v2878, 0
        %v2904 = vsel %vm2897, %v2880, 0
        %v2906 = vsel %vm2897, %v2882, 0
        %v2908 = vsel %vm2897, %v2884, 0
        %v2910 = vsel %vm2897, %v2886, 0
        %v2912 = vsel %vm2897, %v2888, 0
        %2914 = vmatprep.subr.bf16.mxu0 0
        %2915 = vmatpush1.bf16.msra.mxu0 %v2895
        %2916 = vmatprep.subr.bf16.mxu0 0
        %2917 = vmatpush1.bf16.msra.mxu0 0
        %2918 = vmatprep.subr.bf16.mxu0 0
        %2919 = vmatpush1.bf16.msra.mxu0 0
        %2920 = vmatprep.subr.bf16.mxu0 0
        %2921 = vmatpush1.bf16.msra.mxu0 0
        %2922 = vmatprep.subr.bf16.mxu0 0
        %2923 = vmatpush1.bf16.msra.mxu0 0
        %2924 = vmatprep.subr.bf16.mxu0 0
        %2925 = vmatpush1.bf16.msra.mxu0 0
        %2926 = vmatprep.subr.bf16.mxu0 0
        %2927 = vmatpush1.bf16.msra.mxu0 0
        %2928 = vmatprep.subr.bf16.mxu0 0
        %2929 = vmatpush1.bf16.msra.mxu0 0
        %2930 = vmatprep.subr.bf16.mxu0 0
        %2931 = vmatpush1.bf16.msra.mxu0 0
        %2932 = vmatprep.subr.bf16.mxu0 0
        %2933 = vmatpush1.bf16.msra.mxu0 0
        %2934 = vmatprep.subr.bf16.mxu0 0
        %2935 = vmatpush1.bf16.msra.mxu0 0
        %2936 = vmatprep.subr.bf16.mxu0 0
        %2937 = vmatpush1.bf16.msra.mxu0 0
        %2938 = vmatprep.subr.bf16.mxu0 0
        %2939 = vmatpush1.bf16.msra.mxu0 0
        %2940 = vmatprep.subr.bf16.mxu0 0
        %2941 = vmatpush1.bf16.msra.mxu0 0
        %2942 = vmatprep.subr.bf16.mxu0 0
        %2943 = vmatpush1.bf16.msra.mxu0 0
        %2944 = vmatprep.subr.bf16.mxu0 0
        %2945 = vmatpush1.bf16.msra.mxu0 0
        %2946 = vmatprep.mubr.bf16.mxu0 0
        %2947 = vmatmul.mubr.bf16.gmra.mrb[0].mxu0 %v2898
        %v2948 = vpop.f32.mrb[0].mxu0
        %v2949 = vadd.f32 0.0, %v2948
        %v2950 = vpop.f32.mrb[0].mxu0
        %v2951 = vpop.f32.mrb[0].mxu0
        %v2952 = vadd.f32 0.0, %v2951
        %v2953 = vpop.f32.mrb[0].mxu0
        %2954 = vmatprep.mubr.bf16.mxu0 0
        %2955 = vmatmul.mubr.bf16.gmra.mrb[0].mxu0 %v2900
        %v2956 = vpop.f32.mrb[0].mxu0
        %v2957 = vadd.f32 0.0, %v2956
        %v2958 = vpop.f32.mrb[0].mxu0
        %v2959 = vpop.f32.mrb[0].mxu0
        %v2960 = vadd.f32 0.0, %v2959
        %v2961 = vpop.f32.mrb[0].mxu0
        %2962 = vmatprep.mubr.bf16.mxu0 0
        %2963 = vmatmul.mubr.bf16.gmra.mrb[0].mxu0 %v2902
        %v2964 = vpop.f32.mrb[0].mxu0
        %v2965 = vadd.f32 0.0, %v2964
        %v2966 = vpop.f32.mrb[0].mxu0
        %v2967 = vpop.f32.mrb[0].mxu0
        %v2968 = vadd.f32 0.0, %v2967
        %v2969 = vpop.f32.mrb[0].mxu0
        %2970 = vmatprep.mubr.bf16.mxu0 0
        %2971 = vmatmul.mubr.bf16.gmra.mrb[0].mxu0 %v2904
        %v2972 = vpop.f32.mrb[0].mxu0
        %v2973 = vadd.f32 0.0, %v2972
        %v2974 = vpop.f32.mrb[0].mxu0
        %v2975 = vpop.f32.mrb[0].mxu0
        %v2976 = vadd.f32 0.0, %v2975
        %v2977 = vpop.f32.mrb[0].mxu0
        %2978 = vmatprep.mubr.bf16.mxu0 0
        %2979 = vmatmul.mubr.bf16.gmra.mrb[0].mxu0 %v2906
        %v2980 = vpop.f32.mrb[0].mxu0
        %v2981 = vadd.f32 0.0, %v2980
        %v2982 = vpop.f32.mrb[0].mxu0
        %v2983 = vpop.f32.mrb[0].mxu0
        %v2984 = vadd.f32 0.0, %v2983
        %v2985 = vpop.f32.mrb[0].mxu0
        %2986 = vmatprep.mubr.bf16.mxu0 0
        %2987 = vmatmul.mubr.bf16.gmra.mrb[0].mxu0 %v2908
        %v2988 = vpop.f32.mrb[0].mxu0
        %v2989 = vadd.f32 0.0, %v2988
        %v2990 = vpop.f32.mrb[0].mxu0
        %v2991 = vpop.f32.mrb[0].mxu0
        %v2992 = vadd.f32 0.0, %v2991
        %v2993 = vpop.f32.mrb[0].mxu0
        %2994 = vmatprep.mubr.bf16.mxu0 0
        %2995 = vmatmul.mubr.bf16.gmra.mrb[0].mxu0 %v2910
        %v2996 = vpop.f32.mrb[0].mxu0
        %v2997 = vadd.f32 0.0, %v2996
        %v2998 = vpop.f32.mrb[0].mxu0
        %v2999 = vpop.f32.mrb[0].mxu0
        %v3000 = vadd.f32 0.0, %v2999
        %v3001 = vpop.f32.mrb[0].mxu0
        %3002 = vmatprep.mubr.bf16.mxu0 0
        %3003 = vmatmul.mubr.bf16.gmra.mrb[0].mxu0 %v2912
        %v3004 = vpop.f32.mrb[0].mxu0
        %v3005 = vadd.f32 0.0, %v3004
        %v3006 = vpop.f32.mrb[0].mxu0
        %v3007 = vpop.f32.mrb[0].mxu0
        %v3008 = vadd.f32 0.0, %v3007
        %v3009 = vpop.f32.mrb[0].mxu0
        %3010 = vdwg.mxu0
        %p3011 = scmp.eq.s32.totalorder %s25, 0
        // Predicated region
        $region78: #{tpu_custom_call.1} parent=72 // pred_check
          %p3012 = pneg %p3011
        $region79: #{tpu_custom_call.1} parent=72 // pred_check_branch
          %3014 = sbr.rel (%p3012) target = $region81
        $region80: #{tpu_custom_call.1} parent=72 // pred_region
          %3015 = vst.msk [vmem:[#allocation2] sm:$0xff] %vm450, 0.0
          %3016 = vst.msk [vmem:[#allocation2 + $0x8] sm:$0xff] %vm450, 0.0
          %3017 = vst.msk [vmem:[#allocation2 + $0x10] sm:$0xff] %vm450, 0.0
          %3018 = vst.msk [vmem:[#allocation2 + $0x18] sm:$0xff] %vm450, 0.0
          %3019 = vst.msk [vmem:[#allocation2 + $0x20] sm:$0xff] %vm450, 0.0
          %3020 = vst.msk [vmem:[#allocation2 + $0x28] sm:$0xff] %vm450, 0.0
          %3021 = vst.msk [vmem:[#allocation2 + $0x30] sm:$0xff] %vm450, 0.0
          %3022 = vst.msk [vmem:[#allocation2 + $0x38] sm:$0xff] %vm450, 0.0
          %3023 = vst.msk [vmem:[#allocation2 + $0x40] sm:$0xff] %vm450, 0.0
          %3024 = vst.msk [vmem:[#allocation2 + $0x48] sm:$0xff] %vm450, 0.0
          %3025 = vst.msk [vmem:[#allocation2 + $0x50] sm:$0xff] %vm450, 0.0
          %3026 = vst.msk [vmem:[#allocation2 + $0x58] sm:$0xff] %vm450, 0.0
          %3027 = vst.msk [vmem:[#allocation2 + $0x60] sm:$0xff] %vm450, 0.0
          %3028 = vst.msk [vmem:[#allocation2 + $0x68] sm:$0xff] %vm450, 0.0
          %3029 = vst.msk [vmem:[#allocation2 + $0x70] sm:$0xff] %vm450, 0.0
          %3030 = vst.msk [vmem:[#allocation2 + $0x78] sm:$0xff] %vm450, 0.0
        $region81: #{tpu_custom_call.1} parent=72 // pred_fallthru
          _
        %v3031 = vld [vmem:[#allocation2] sm:$0xff]
        %v3032 = vld [vmem:[#allocation2 + $0x8] sm:$0xff]
        %v3033 = vld [vmem:[#allocation2 + $0x10] sm:$0xff]
        %v3034 = vld [vmem:[#allocation2 + $0x18] sm:$0xff]
        %v3035 = vld [vmem:[#allocation2 + $0x20] sm:$0xff]
        %v3036 = vld [vmem:[#allocation2 + $0x28] sm:$0xff]
        %v3037 = vld [vmem:[#allocation2 + $0x30] sm:$0xff]
        %v3038 = vld [vmem:[#allocation2 + $0x38] sm:$0xff]
        %v3039 = vld [vmem:[#allocation2 + $0x40] sm:$0xff]
        %v3040 = vld [vmem:[#allocation2 + $0x48] sm:$0xff]
        %v3041 = vld [vmem:[#allocation2 + $0x50] sm:$0xff]
        %v3042 = vld [vmem:[#allocation2 + $0x58] sm:$0xff]
        %v3043 = vld [vmem:[#allocation2 + $0x60] sm:$0xff]
        %v3044 = vld [vmem:[#allocation2 + $0x68] sm:$0xff]
        %v3045 = vld [vmem:[#allocation2 + $0x70] sm:$0xff]
        %v3046 = vld [vmem:[#allocation2 + $0x78] sm:$0xff]
        %v3047 = vadd.f32 %v3031, %v2949
        %v3048 = vadd.f32 %v3032, %v2952
        %v3049 = vadd.f32 %v3033, %v2957
        %v3050 = vadd.f32 %v3034, %v2960
        %v3051 = vadd.f32 %v3035, %v2965
        %v3052 = vadd.f32 %v3036, %v2968
        %v3053 = vadd.f32 %v3037, %v2973
        %v3054 = vadd.f32 %v3038, %v2976
        %v3055 = vadd.f32 %v3039, %v2981
        %v3056 = vadd.f32 %v3040, %v2984
        %v3057 = vadd.f32 %v3041, %v2989
        %v3058 = vadd.f32 %v3042, %v2992
        %v3059 = vadd.f32 %v3043, %v2997
        %v3060 = vadd.f32 %v3044, %v3000
        %v3061 = vadd.f32 %v3045, %v3005
        %v3062 = vadd.f32 %v3046, %v3008
        %3063 = vst.msk [vmem:[#allocation2] sm:$0xff] %vm450, %v3047
        %3064 = vst.msk [vmem:[#allocation2 + $0x8] sm:$0xff] %vm450, %v3048
        %3065 = vst.msk [vmem:[#allocation2 + $0x10] sm:$0xff] %vm450, %v3049
        %3066 = vst.msk [vmem:[#allocation2 + $0x18] sm:$0xff] %vm450, %v3050
        %3067 = vst.msk [vmem:[#allocation2 + $0x20] sm:$0xff] %vm450, %v3051
        %3068 = vst.msk [vmem:[#allocation2 + $0x28] sm:$0xff] %vm450, %v3052
        %3069 = vst.msk [vmem:[#allocation2 + $0x30] sm:$0xff] %vm450, %v3053
        %3070 = vst.msk [vmem:[#allocation2 + $0x38] sm:$0xff] %vm450, %v3054
        %3071 = vst.msk [vmem:[#allocation2 + $0x40] sm:$0xff] %vm450, %v3055
        %3072 = vst.msk [vmem:[#allocation2 + $0x48] sm:$0xff] %vm450, %v3056
        %3073 = vst.msk [vmem:[#allocation2 + $0x50] sm:$0xff] %vm450, %v3057
        %3074 = vst.msk [vmem:[#allocation2 + $0x58] sm:$0xff] %vm450, %v3058
        %3075 = vst.msk [vmem:[#allocation2 + $0x60] sm:$0xff] %vm450, %v3059
        %3076 = vst.msk [vmem:[#allocation2 + $0x68] sm:$0xff] %vm450, %v3060
        %3077 = vst.msk [vmem:[#allocation2 + $0x70] sm:$0xff] %vm450, %v3061
        %3078 = vst.msk [vmem:[#allocation2 + $0x78] sm:$0xff] %vm450, %v3062
        %p3079 = scmp.eq.s32.totalorder %s25, 1
        // Predicated region
        $region82: #{tpu_custom_call.1} parent=72 // pred_check
          %p3080 = pneg %p3079
        $region83: #{tpu_custom_call.1} parent=72 // pred_check_branch
          %3082 = sbr.rel (%p3080) target = $region85
        $region84: #{tpu_custom_call.1} parent=72 // pred_region
          %v3083 = vld [vmem:[#allocation2] sm:$0xff]
          %v3084 = vld [vmem:[#allocation2 + $0x8] sm:$0xff]
          %v3085 = vld [vmem:[#allocation2 + $0x10] sm:$0xff]
          %v3086 = vld [vmem:[#allocation2 + $0x18] sm:$0xff]
          %v3087 = vld [vmem:[#allocation2 + $0x20] sm:$0xff]
          %v3088 = vld [vmem:[#allocation2 + $0x28] sm:$0xff]
          %v3089 = vld [vmem:[#allocation2 + $0x30] sm:$0xff]
          %v3090 = vld [vmem:[#allocation2 + $0x38] sm:$0xff]
          %v3091 = vld [vmem:[#allocation2 + $0x40] sm:$0xff]
          %v3092 = vld [vmem:[#allocation2 + $0x48] sm:$0xff]
          %v3093 = vld [vmem:[#allocation2 + $0x50] sm:$0xff]
          %v3094 = vld [vmem:[#allocation2 + $0x58] sm:$0xff]
          %v3095 = vld [vmem:[#allocation2 + $0x60] sm:$0xff]
          %v3096 = vld [vmem:[#allocation2 + $0x68] sm:$0xff]
          %v3097 = vld [vmem:[#allocation2 + $0x70] sm:$0xff]
          %v3098 = vld [vmem:[#allocation2 + $0x78] sm:$0xff]
          %v3099 = vld [vmem:[%s3] sm:$0x1]
          %v3101 = vlaneseq
          %v3102 = vshrl.u32 %v3101, 7
          %v3103 = vsub.s32 0, %v3102
          %v3104 = vrot.slane %v3099, %v3103
          %v3106 = vadd.f32 %v3083, %v3104
          %v3107 = vadd.f32 %v3084, %v3104
          %v3108 = vadd.f32 %v3085, %v3104
          %v3109 = vadd.f32 %v3086, %v3104
          %v3110 = vadd.f32 %v3087, %v3104
          %v3111 = vadd.f32 %v3088, %v3104
          %v3112 = vadd.f32 %v3089, %v3104
          %v3113 = vadd.f32 %v3090, %v3104
          %v3114 = vadd.f32 %v3091, %v3104
          %v3115 = vadd.f32 %v3092, %v3104
          %v3116 = vadd.f32 %v3093, %v3104
          %v3117 = vadd.f32 %v3094, %v3104
          %v3118 = vadd.f32 %v3095, %v3104
          %v3119 = vadd.f32 %v3096, %v3104
          %v3120 = vadd.f32 %v3097, %v3104
          %v3121 = vadd.f32 %v3098, %v3104
          %3122 = vst.msk [vmem:[%s375] sm:$0xff] %vm450, %v3106
          %3123 = vst.msk [vmem:[%s375 + $0x8] sm:$0xff] %vm450, %v3107
          %3124 = vst.msk [vmem:[%s375 + $0x10] sm:$0xff] %vm450, %v3108
          %3125 = vst.msk [vmem:[%s375 + $0x18] sm:$0xff] %vm450, %v3109
          %3126 = vst.msk [vmem:[%s375 + $0x20] sm:$0xff] %vm450, %v3110
          %3127 = vst.msk [vmem:[%s375 + $0x28] sm:$0xff] %vm450, %v3111
          %3128 = vst.msk [vmem:[%s375 + $0x30] sm:$0xff] %vm450, %v3112
          %3129 = vst.msk [vmem:[%s375 + $0x38] sm:$0xff] %vm450, %v3113
          %3130 = vst.msk [vmem:[%s375 + $0x40] sm:$0xff] %vm450, %v3114
          %3131 = vst.msk [vmem:[%s375 + $0x48] sm:$0xff] %vm450, %v3115
          %3132 = vst.msk [vmem:[%s375 + $0x50] sm:$0xff] %vm450, %v3116
          %3133 = vst.msk [vmem:[%s375 + $0x58] sm:$0xff] %vm450, %v3117
          %3134 = vst.msk [vmem:[%s375 + $0x60] sm:$0xff] %vm450, %v3118
          %3135 = vst.msk [vmem:[%s375 + $0x68] sm:$0xff] %vm450, %v3119
          %3136 = vst.msk [vmem:[%s375 + $0x70] sm:$0xff] %vm450, %v3120
          %3137 = vst.msk [vmem:[%s375 + $0x78] sm:$0xff] %vm450, %v3121
        $region85: #{tpu_custom_call.1} parent=72 // pred_fallthru
          _
        %p3138 = scmp.lt.s32.totalorder %s24, 1
        %s3139 = scalar_select %p3138, %s24, 1
        %s3140 = smul.addr %s3139, 16
        %s3141 = smul.addr %s3140, 8
        %s3142 = scalar_lea.vmem %s4, %s3141
        %s3143 = sand.u32 %s167, 1
        %s3144 = scalar_lea.sflag [#allocation5], %s3143
        %s3145 = sand.u32 %s167, 1
        %s3146 = smul.addr %s3145, 512
        %s3147 = scalar_lea.vmem [#allocation4], %s3146
        // Predicated region
        $region86: #{tpu_custom_call.1} parent=72 // pred_check
          %p3148 = pneg %p149
        $region87: #{tpu_custom_call.1} parent=72 // pred_check_branch
          %3150 = sbr.rel (%p3148) target = $region89
        $region88: #{tpu_custom_call.1} parent=72 // pred_region
          _
        $region89: #{tpu_custom_call.1} parent=72 // pred_fallthru
          _
        // Predicated region
        $region90: #{tpu_custom_call.1} parent=72 // pred_check
          %p3151 = pneg %p177
        $region91: #{tpu_custom_call.1} parent=72 // pred_check_branch
          %3153 = sbr.rel (%p3151) target = $region93
        $region92: #{tpu_custom_call.1} parent=72 // pred_region
          %s3154 = smul.u32 4, %s25
          %s3156 = ssub.s32 8192, 8192
          %3157 = vsyncadd %s3144, %s3156
          %s3158 = smul.addr %s3154, 16
          %s3159 = smul.addr %s24, 128
          %s3160 = sadd.s32 %s3158, %s3159
          %s3161 = smul.addr %s3160, 128
          %s3162 = scalar_lea.hbm %s5, %s3161
          %s3163 = sshll.u32 %s3147, 4
          %s3164 = int_to_ptr.vmem [resolvable:$true] %s3163
          %3169 = dma.vmem_to_hbm [thread:$0]  %s3164, 8192, %s3162, %s3144, 128, 128, 8
        $region93: #{tpu_custom_call.1} parent=72 // pred_fallthru
          _
      $region73: #{tpu_custom_call.1} parent=5 // pred_fallthru
        _
      %p3170 = scmp.le.s32.totalorder 2, %s15
      // Predicated region
      $region94: #{tpu_custom_call.1} parent=5 // pred_check
        %p3171 = pneg %p3170
      $region95: #{tpu_custom_call.1} parent=5 // pred_check_branch
        %3173 = sbr.rel (%p3171) target = $region97
      $region96: #{tpu_custom_call.1} parent=5 // pred_region
        %s3174 = ssub.s32 %s15, 2
        // Predicated region
        $region98: #{tpu_custom_call.1} parent=96 // pred_check
          %p3175 = pneg %p155
        $region99: #{tpu_custom_call.1} parent=96 // pred_check_branch
          %3177 = sbr.rel (%p3175) target = $region101
        $region100: #{tpu_custom_call.1} parent=96 // pred_region
          %p3178 = scmp.lt.s32.totalorder %s26, 1
          %s3179 = scalar_select %p3178, %s26, 1
          %s3180 = smul.addr %s3179, 16
          %s3181 = smul.addr %s3180, 8
          %s3182 = scalar_lea.vmem %s4, %s3181
        $region101: #{tpu_custom_call.1} parent=96 // pred_fallthru
          _
        // Predicated region
        $region102: #{tpu_custom_call.1} parent=96 // pred_check
          %p3183 = pneg %p183
        $region103: #{tpu_custom_call.1} parent=96 // pred_check_branch
          %3185 = sbr.rel (%p3183) target = $region105
        $region104: #{tpu_custom_call.1} parent=96 // pred_region
          %s3186 = sand.u32 %s168, 1
          %s3187 = scalar_lea.sflag [#allocation5], %s3186
          %s3188 = sand.u32 %s168, 1
          %s3189 = smul.addr %s3188, 512
          %s3190 = scalar_lea.vmem [#allocation4], %s3189
          %3191 = dma.done %s3187, 8192
        $region105: #{tpu_custom_call.1} parent=96 // pred_fallthru
          _
      $region97: #{tpu_custom_call.1} parent=5 // pred_fallthru
        _
    $region6: #{tpu_custom_call.1} parent=1 // loop_footer
      %s19 = sadd.s32 1, %s15
    $region7: #{tpu_custom_call.1} parent=1 // loop_footer_branch
      %14 = sbr.rel target = $region3
    $region8: #{tpu_custom_call.1} parent=1 // loop_exit
      _
    %3192 = vsyncpa [#allocation5], 1
    %s3193 = scalar_lea.sflag [#allocation5], 1
    %3194 = vsyncpa %s3193, 1

</llo_original>
